<compile_context>
chip_gen: v7x
topology: tpu7x:2x2x1
jax: 0.10.0
libtpu: 0.0.40
codegen_flags: <defaults>
</compile_context>

<pallas_src>
import jax
import jax.numpy as jnp
from jax.experimental import pallas as pl
from jax.experimental.pallas import tpu as pltpu


def _lane_running_max(feat):
    """(H, TN) -> (H, 128) per-lane max via a VPU-only pairwise tree of 128-wide chunks."""
    h, n = feat.shape
    if n < 128 or n % 128 != 0:
        # Rare ragged-N fallback: one cross-lane reduce, broadcast into all lanes.
        return jnp.broadcast_to(jnp.max(feat, axis=-1, keepdims=True), (h, 128))
    chunks = [feat[:, i * 128:(i + 1) * 128] for i in range(n // 128)]
    while len(chunks) > 1:
        nxt = [jnp.maximum(chunks[i], chunks[i + 1])
               for i in range(0, len(chunks) - 1, 2)]
        if len(chunks) % 2:
            nxt.append(chunks[-1])
        chunks = nxt
    return chunks[0]


def isonet_kernel(x_ref, wiso_ref, w1ft_ref, iso_ref, pooled_ref):
    """grid = (S, B, T); the point-tile axis t (last) is the max-pool reduction axis."""
    t = pl.program_id(2)

    @pl.when(t == 0)
    def _():
        # pooled_ref block is resident across the t axis -> use it as the accumulator.
        pooled_ref[...] = jnp.full(pooled_ref.shape, -jnp.inf, pooled_ref.dtype)

    x = x_ref[0].astype(jnp.float32)        # (3, TN)  channel-major points
    w = wiso_ref[...].astype(jnp.float32)   # (3, 3)   ISO weight

    # ISO transform on the VPU: y[c, :] = sum_k W_iso[c, k] * x[k, :]   (lane-dense store)
    y = (w[:, 0:1] * x[0:1, :]
         + w[:, 1:2] * x[1:2, :]
         + w[:, 2:3] * x[2:3, :])           # (3, TN)
    iso_ref[0] = y.astype(iso_ref.dtype)

    # Stand-in model body: fused ISO+lift on the MXU, ReLU, lane-dense running max-pool.
    feat = jnp.maximum(
        jnp.dot(w1ft_ref[...], x, preferred_element_type=jnp.float32), 0.0
    )                                        # (H, TN)
    lanes = _lane_running_max(feat)          # (H, 128)  VPU-only partial max
    pooled_ref[0, 0] = jnp.maximum(pooled_ref[0, 0], lanes)


# Keep a healthy margin under v5e's 16 MiB scoped default and v7x's 64 MiB physical
# VMEM; we also raise vmem_limit_bytes to 32 MiB in CompilerParams.
_VMEM_BUDGET_BYTES = 12 * 1024 * 1024


def _tile_fits(tn, h):
    # Double-buffered x-in + iso-out blocks (2 bufs x 2 arrays x 3 x TN x 4 B)
    # + f32 feat temporary (H x TN x 4 B) + pooled accumulator + small slack.
    blocks = 2 * 2 * 3 * tn * 4
    temps = (h + 3) * tn * 4
    pooled = 2 * h * 128 * 4
    return blocks + temps + pooled + (256 * 1024) <= _VMEM_BUDGET_BYTES


def _pick_point_tile(n, h):
    # Whole-N (fewest grid steps) when it's lane-dense and fits the VMEM budget.
    if n % 128 == 0 and _tile_fits(n, h):
        return n
    for t in (16384, 8192, 4096, 2048, 1024, 512, 256, 128):
        if n % t == 0 and _tile_fits(t, h):
            return t
    # TODO(synk): ragged / huge N falls back to a single whole-N block; legal but
    # may exceed v7x VMEM for very large non-divisible N.
    return n


@jax.jit
def isonet_forward(x, w_iso, w1, w2):
    """x: (B, 3, N) like the PyTorch module. Returns (iso_points (B,3,N), logits (B,C))."""
    B, C, N = x.shape
    assert C == 3
    H = w1.shape[1]

    tn = _pick_point_tile(N, H)
    total_tiles = N // tn

    # Megacore split (v7x: 2 TCs): when B == 1, add a size-2 parallel segment axis
    # over point-halves; partial pooled blocks are max-combined in XLA below.
    if B == 1 and total_tiles == 1 and tn % 256 == 0:
        tn //= 2
        total_tiles = 2
    segs = 2 if (B == 1 and total_tiles >= 2 and total_tiles % 2 == 0) else 1
    tiles_per_seg = total_tiles // segs

    # Fuse the ISO linear into the lift: relu((x^T W_iso^T) w1) = relu(x^T (W_iso^T w1)).
    # Channel-major form needs (W_iso^T w1)^T = w1^T W_iso, shape (H, 3).
    w1f_t = (w1.T @ w_iso).astype(jnp.float32)

    # NOTE(per review): emitting iso_out in bf16 would halve the dominant HBM write
    # stream; kept at x.dtype here to preserve the module's numerics exactly.
    iso_out, pooled = pl.pallas_call(
        isonet_kernel,
        out_shape=(
            jax.ShapeDtypeStruct((B, 3, N), x.dtype),               # ISO-transformed points
            jax.ShapeDtypeStruct((segs, B, H, 128), jnp.float32),   # per-lane max-pool partials
        ),
        grid_spec=pltpu.PrefetchScalarGridSpec(
            num_scalar_prefetch=0,
            grid=(segs, B, tiles_per_seg),
            in_specs=[
                pl.BlockSpec((1, 3, tn),
                             lambda s, b, t: (b, 0, s * tiles_per_seg + t)),  # points
                pl.BlockSpec((3, 3), lambda s, b, t: (0, 0)),                 # W_iso
                pl.BlockSpec((H, 3), lambda s, b, t: (0, 0)),                 # fused lift^T
            ],
            out_specs=[
                pl.BlockSpec((1, 3, tn),
                             lambda s, b, t: (b, 0, s * tiles_per_seg + t)),
                pl.BlockSpec((1, 1, H, 128), lambda s, b, t: (s, b, 0, 0)),
            ],
        ),
        compiler_params=pltpu.CompilerParams(
            dimension_semantics=("parallel", "parallel", "arbitrary"),
            vmem_limit_bytes=32 * 1024 * 1024,
        ),
    )(x, w_iso, w1f_t)

    # Tiny classifier head stays in XLA: final segment + lane reduction (128 -> 1)
    # and the (H x num_classes) matmul on (B, H) pooled features.
    pooled_bh = jnp.max(pooled, axis=(0, 3))          # (B, H)
    logits = (pooled_bh @ w2).astype(x.dtype)
    return iso_out, logits


if __name__ == "__main__":
    key = jax.random.PRNGKey(0)
    kx, k0, k1, k2 = jax.random.split(key, 4)

    B, N, H, NC = 2, 4096, 64, 16   # N=4096 -> whole-N tile fits the VMEM budget
    x = jax.random.normal(kx, (B, 3, N), dtype=jnp.float32)

    # Deterministic parameter init (nn.Linear(3, 3, bias=False) + stand-in model weights).
    w_iso = jax.random.normal(k0, (3, 3), jnp.float32) * 0.5    # ISO linear weight W
    w1 = jax.random.normal(k1, (3, H), jnp.float32) * 0.2       # stand-in model lift
    w2 = jax.random.normal(k2, (H, NC), jnp.float32) * 0.1      # stand-in model head

    iso_pts, logits = isonet_forward(x, w_iso, w1, w2)
    jax.block_until_ready(iso_pts)
    jax.block_until_ready(logits)

    # Pure-JAX reference for correctness (same stand-in model, unfused).
    xt = jnp.transpose(x, (0, 2, 1))                # (B, N, 3)
    y_ref = xt @ w_iso.T                            # nn.Linear(3,3,bias=False)
    iso_ref = jnp.transpose(y_ref, (0, 2, 1))       # (B, 3, N)
    feat_ref = jnp.maximum(y_ref @ w1, 0.0)         # (B, N, H)
    logits_ref = (jnp.max(feat_ref, axis=1) @ w2).astype(x.dtype)

    assert jnp.allclose(iso_pts, iso_ref, atol=1e-4), "ISO transform mismatch"
    assert jnp.allclose(logits, logits_ref, atol=1e-3, rtol=1e-3), "stand-in model mismatch"

    print("KERNEL_OK")
</pallas_src>

<mosaic_0001>
module attributes {stable_mosaic.version = 11 : i64} {
  func.func @isonet_kernel(%arg0: i32, %arg1: i32, %arg2: i32, %arg3: memref<1x3x4096xf32, #tpu.memory_space<vmem>>, %arg4: memref<3x3xf32, #tpu.memory_space<vmem>>, %arg5: memref<64x3xf32, #tpu.memory_space<vmem>>, %arg6: memref<1x3x4096xf32, #tpu.memory_space<vmem>>, %arg7: memref<1x1x64x128xf32, #tpu.memory_space<vmem>>) attributes {dimension_semantics = [#tpu.dimension_semantics<parallel>, #tpu.dimension_semantics<parallel>, #tpu.dimension_semantics<arbitrary>], iteration_bounds = array<i64: 1, 2, 1>, scalar_prefetch = 0 : i64, scratch_operands = 0 : i64, tpu.core_type = #tpu.core_type<tc>, window_params = [{transform_indices = @transform_0, window_bounds = array<i64: 1, 3, 4096>}, {pipeline_mode = #tpu.pipeline_mode<synchronous>, transform_indices = @transform_1, window_bounds = array<i64: 3, 3>}, {pipeline_mode = #tpu.pipeline_mode<synchronous>, transform_indices = @transform_2, window_bounds = array<i64: 64, 3>}, {transform_indices = @transform_3, window_bounds = array<i64: 1, 3, 4096>}, {transform_indices = @transform_4, window_bounds = array<i64: 1, 1, 64, 128>}]} {
    %c0_i32 = arith.constant 0 : i32
    %0 = arith.cmpi eq, %arg2, %c0_i32 : i32
    %1 = arith.extui %0 : i1 to i32
    %c0_i32_0 = arith.constant 0 : i32
    %2 = arith.cmpi ne, %1, %c0_i32_0 : i32
    scf.if %2 {
      %cst_19 = arith.constant 0xFF800000 : f32
      %99 = vector.broadcast %cst_19 : f32 to vector<1x1x64x128xf32>
      %c0_20 = arith.constant 0 : index
      %c0_21 = arith.constant 0 : index
      %c0_22 = arith.constant 0 : index
      %c0_23 = arith.constant 0 : index
      %100 = vector.load %arg7[%c0_20, %c0_21, %c0_22, %c0_23] : memref<1x1x64x128xf32, #tpu.memory_space<vmem>>, vector<1x1x64x128xf32>
      tpu.vector_store %arg7[%c0_20, %c0_21, %c0_22, %c0_23], %99 {strides = array<i32>} : memref<1x1x64x128xf32, #tpu.memory_space<vmem>>, vector<1x1x64x128xf32>,
    } else {
    }
    %c0 = arith.constant 0 : index
    %c0_1 = arith.constant 0 : index
    %c0_2 = arith.constant 0 : index
    %3 = vector.load %arg3[%c0, %c0_1, %c0_2] : memref<1x3x4096xf32, #tpu.memory_space<vmem>>, vector<1x3x4096xf32>
    %4 = vector.shape_cast %3 : vector<1x3x4096xf32> to vector<3x4096xf32>
    %c0_3 = arith.constant 0 : index
    %c0_4 = arith.constant 0 : index
    %5 = vector.load %arg4[%c0_3, %c0_4] : memref<3x3xf32, #tpu.memory_space<vmem>>, vector<3x3xf32>
    %6 = vector.extract_strided_slice %5 {offsets = [0, 0], sizes = [3, 1], strides = [1, 1]} : vector<3x3xf32> to vector<3x1xf32>
    %7 = vector.extract_strided_slice %4 {offsets = [0, 0], sizes = [1, 4096], strides = [1, 1]} : vector<3x4096xf32> to vector<1x4096xf32>
    %8 = vector.broadcast %6 : vector<3x1xf32> to vector<3x4096xf32>
    %9 = vector.broadcast %7 : vector<1x4096xf32> to vector<3x4096xf32>
    %10 = arith.mulf %8, %9 : vector<3x4096xf32>
    %11 = vector.extract_strided_slice %5 {offsets = [0, 1], sizes = [3, 1], strides = [1, 1]} : vector<3x3xf32> to vector<3x1xf32>
    %12 = vector.extract_strided_slice %4 {offsets = [1, 0], sizes = [1, 4096], strides = [1, 1]} : vector<3x4096xf32> to vector<1x4096xf32>
    %13 = vector.broadcast %11 : vector<3x1xf32> to vector<3x4096xf32>
    %14 = vector.broadcast %12 : vector<1x4096xf32> to vector<3x4096xf32>
    %15 = arith.mulf %13, %14 : vector<3x4096xf32>
    %16 = arith.addf %10, %15 : vector<3x4096xf32>
    %17 = vector.extract_strided_slice %5 {offsets = [0, 2], sizes = [3, 1], strides = [1, 1]} : vector<3x3xf32> to vector<3x1xf32>
    %18 = vector.extract_strided_slice %4 {offsets = [2, 0], sizes = [1, 4096], strides = [1, 1]} : vector<3x4096xf32> to vector<1x4096xf32>
    %19 = vector.broadcast %17 : vector<3x1xf32> to vector<3x4096xf32>
    %20 = vector.broadcast %18 : vector<1x4096xf32> to vector<3x4096xf32>
    %21 = arith.mulf %19, %20 : vector<3x4096xf32>
    %22 = arith.addf %16, %21 : vector<3x4096xf32>
    %c0_5 = arith.constant 0 : index
    %c0_6 = arith.constant 0 : index
    %c0_7 = arith.constant 0 : index
    %23 = vector.load %arg6[%c0_5, %c0_6, %c0_7] : memref<1x3x4096xf32, #tpu.memory_space<vmem>>, vector<1x3x4096xf32>
    %24 = vector.shape_cast %23 : vector<1x3x4096xf32> to vector<3x4096xf32>
    %25 = vector.shape_cast %22 : vector<3x4096xf32> to vector<1x3x4096xf32>
    tpu.vector_store %arg6[%c0_5, %c0_6, %c0_7], %25 {strides = array<i32>} : memref<1x3x4096xf32, #tpu.memory_space<vmem>>, vector<1x3x4096xf32>,
    %c0_8 = arith.constant 0 : index
    %c0_9 = arith.constant 0 : index
    %26 = vector.load %arg5[%c0_8, %c0_9] : memref<64x3xf32, #tpu.memory_space<vmem>>, vector<64x3xf32>
    %cst = arith.constant dense<0.000000e+00> : vector<64x4096xf32>
    %27 = tpu.matmul %26, %4, %cst {dimension_numbers = #tpu.dot_dimension_numbers<[1], [0], [0], [1], [0, 0, 1, 1], [], []>} : vector<64x3xf32>, vector<3x4096xf32>, vector<64x4096xf32> -> vector<64x4096xf32>
    %cst_10 = arith.constant 0.000000e+00 : f32
    %28 = vector.broadcast %cst_10 : f32 to vector<64x4096xf32>
    %29 = arith.maximumf %27, %28 : vector<64x4096xf32>
    %30 = vector.extract_strided_slice %29 {offsets = [0, 0], sizes = [64, 128], strides = [1, 1]} : vector<64x4096xf32> to vector<64x128xf32>
    %31 = vector.extract_strided_slice %29 {offsets = [0, 128], sizes = [64, 128], strides = [1, 1]} : vector<64x4096xf32> to vector<64x128xf32>
    %32 = vector.extract_strided_slice %29 {offsets = [0, 256], sizes = [64, 128], strides = [1, 1]} : vector<64x4096xf32> to vector<64x128xf32>
    %33 = vector.extract_strided_slice %29 {offsets = [0, 384], sizes = [64, 128], strides = [1, 1]} : vector<64x4096xf32> to vector<64x128xf32>
    %34 = vector.extract_strided_slice %29 {offsets = [0, 512], sizes = [64, 128], strides = [1, 1]} : vector<64x4096xf32> to vector<64x128xf32>
    %35 = vector.extract_strided_slice %29 {offsets = [0, 640], sizes = [64, 128], strides = [1, 1]} : vector<64x4096xf32> to vector<64x128xf32>
    %36 = vector.extract_strided_slice %29 {offsets = [0, 768], sizes = [64, 128], strides = [1, 1]} : vector<64x4096xf32> to vector<64x128xf32>
    %37 = vector.extract_strided_slice %29 {offsets = [0, 896], sizes = [64, 128], strides = [1, 1]} : vector<64x4096xf32> to vector<64x128xf32>
    %38 = vector.extract_strided_slice %29 {offsets = [0, 1024], sizes = [64, 128], strides = [1, 1]} : vector<64x4096xf32> to vector<64x128xf32>
    %39 = vector.extract_strided_slice %29 {offsets = [0, 1152], sizes = [64, 128], strides = [1, 1]} : vector<64x4096xf32> to vector<64x128xf32>
    %40 = vector.extract_strided_slice %29 {offsets = [0, 1280], sizes = [64, 128], strides = [1, 1]} : vector<64x4096xf32> to vector<64x128xf32>
    %41 = vector.extract_strided_slice %29 {offsets = [0, 1408], sizes = [64, 128], strides = [1, 1]} : vector<64x4096xf32> to vector<64x128xf32>
    %42 = vector.extract_strided_slice %29 {offsets = [0, 1536], sizes = [64, 128], strides = [1, 1]} : vector<64x4096xf32> to vector<64x128xf32>
    %43 = vector.extract_strided_slice %29 {offsets = [0, 1664], sizes = [64, 128], strides = [1, 1]} : vector<64x4096xf32> to vector<64x128xf32>
    %44 = vector.extract_strided_slice %29 {offsets = [0, 1792], sizes = [64, 128], strides = [1, 1]} : vector<64x4096xf32> to vector<64x128xf32>
    %45 = vector.extract_strided_slice %29 {offsets = [0, 1920], sizes = [64, 128], strides = [1, 1]} : vector<64x4096xf32> to vector<64x128xf32>
    %46 = vector.extract_strided_slice %29 {offsets = [0, 2048], sizes = [64, 128], strides = [1, 1]} : vector<64x4096xf32> to vector<64x128xf32>
    %47 = vector.extract_strided_slice %29 {offsets = [0, 2176], sizes = [64, 128], strides = [1, 1]} : vector<64x4096xf32> to vector<64x128xf32>
    %48 = vector.extract_strided_slice %29 {offsets = [0, 2304], sizes = [64, 128], strides = [1, 1]} : vector<64x4096xf32> to vector<64x128xf32>
    %49 = vector.extract_strided_slice %29 {offsets = [0, 2432], sizes = [64, 128], strides = [1, 1]} : vector<64x4096xf32> to vector<64x128xf32>
    %50 = vector.extract_strided_slice %29 {offsets = [0, 2560], sizes = [64, 128], strides = [1, 1]} : vector<64x4096xf32> to vector<64x128xf32>
    %51 = vector.extract_strided_slice %29 {offsets = [0, 2688], sizes = [64, 128], strides = [1, 1]} : vector<64x4096xf32> to vector<64x128xf32>
    %52 = vector.extract_strided_slice %29 {offsets = [0, 2816], sizes = [64, 128], strides = [1, 1]} : vector<64x4096xf32> to vector<64x128xf32>
    %53 = vector.extract_strided_slice %29 {offsets = [0, 2944], sizes = [64, 128], strides = [1, 1]} : vector<64x4096xf32> to vector<64x128xf32>
    %54 = vector.extract_strided_slice %29 {offsets = [0, 3072], sizes = [64, 128], strides = [1, 1]} : vector<64x4096xf32> to vector<64x128xf32>
    %55 = vector.extract_strided_slice %29 {offsets = [0, 3200], sizes = [64, 128], strides = [1, 1]} : vector<64x4096xf32> to vector<64x128xf32>
    %56 = vector.extract_strided_slice %29 {offsets = [0, 3328], sizes = [64, 128], strides = [1, 1]} : vector<64x4096xf32> to vector<64x128xf32>
    %57 = vector.extract_strided_slice %29 {offsets = [0, 3456], sizes = [64, 128], strides = [1, 1]} : vector<64x4096xf32> to vector<64x128xf32>
    %58 = vector.extract_strided_slice %29 {offsets = [0, 3584], sizes = [64, 128], strides = [1, 1]} : vector<64x4096xf32> to vector<64x128xf32>
    %59 = vector.extract_strided_slice %29 {offsets = [0, 3712], sizes = [64, 128], strides = [1, 1]} : vector<64x4096xf32> to vector<64x128xf32>
    %60 = vector.extract_strided_slice %29 {offsets = [0, 3840], sizes = [64, 128], strides = [1, 1]} : vector<64x4096xf32> to vector<64x128xf32>
    %61 = vector.extract_strided_slice %29 {offsets = [0, 3968], sizes = [64, 128], strides = [1, 1]} : vector<64x4096xf32> to vector<64x128xf32>
    %62 = arith.maximumf %30, %31 : vector<64x128xf32>
    %63 = arith.maximumf %32, %33 : vector<64x128xf32>
    %64 = arith.maximumf %34, %35 : vector<64x128xf32>
    %65 = arith.maximumf %36, %37 : vector<64x128xf32>
    %66 = arith.maximumf %38, %39 : vector<64x128xf32>
    %67 = arith.maximumf %40, %41 : vector<64x128xf32>
    %68 = arith.maximumf %42, %43 : vector<64x128xf32>
    %69 = arith.maximumf %44, %45 : vector<64x128xf32>
    %70 = arith.maximumf %46, %47 : vector<64x128xf32>
    %71 = arith.maximumf %48, %49 : vector<64x128xf32>
    %72 = arith.maximumf %50, %51 : vector<64x128xf32>
    %73 = arith.maximumf %52, %53 : vector<64x128xf32>
    %74 = arith.maximumf %54, %55 : vector<64x128xf32>
    %75 = arith.maximumf %56, %57 : vector<64x128xf32>
    %76 = arith.maximumf %58, %59 : vector<64x128xf32>
    %77 = arith.maximumf %60, %61 : vector<64x128xf32>
    %78 = arith.maximumf %62, %63 : vector<64x128xf32>
    %79 = arith.maximumf %64, %65 : vector<64x128xf32>
    %80 = arith.maximumf %66, %67 : vector<64x128xf32>
    %81 = arith.maximumf %68, %69 : vector<64x128xf32>
    %82 = arith.maximumf %70, %71 : vector<64x128xf32>
    %83 = arith.maximumf %72, %73 : vector<64x128xf32>
    %84 = arith.maximumf %74, %75 : vector<64x128xf32>
    %85 = arith.maximumf %76, %77 : vector<64x128xf32>
    %86 = arith.maximumf %78, %79 : vector<64x128xf32>
    %87 = arith.maximumf %80, %81 : vector<64x128xf32>
    %88 = arith.maximumf %82, %83 : vector<64x128xf32>
    %89 = arith.maximumf %84, %85 : vector<64x128xf32>
    %90 = arith.maximumf %86, %87 : vector<64x128xf32>
    %91 = arith.maximumf %88, %89 : vector<64x128xf32>
    %92 = arith.maximumf %90, %91 : vector<64x128xf32>
    %c0_11 = arith.constant 0 : index
    %c0_12 = arith.constant 0 : index
    %c0_13 = arith.constant 0 : index
    %c0_14 = arith.constant 0 : index
    %93 = vector.load %arg7[%c0_11, %c0_12, %c0_13, %c0_14] : memref<1x1x64x128xf32, #tpu.memory_space<vmem>>, vector<1x1x64x128xf32>
    %94 = vector.shape_cast %93 : vector<1x1x64x128xf32> to vector<64x128xf32>
    %95 = arith.maximumf %94, %92 : vector<64x128xf32>
    %c0_15 = arith.constant 0 : index
    %c0_16 = arith.constant 0 : index
    %c0_17 = arith.constant 0 : index
    %c0_18 = arith.constant 0 : index
    %96 = vector.load %arg7[%c0_15, %c0_16, %c0_17, %c0_18] : memref<1x1x64x128xf32, #tpu.memory_space<vmem>>, vector<1x1x64x128xf32>
    %97 = vector.shape_cast %96 : vector<1x1x64x128xf32> to vector<64x128xf32>
    %98 = vector.shape_cast %95 : vector<64x128xf32> to vector<1x1x64x128xf32>
    tpu.vector_store %arg7[%c0_15, %c0_16, %c0_17, %c0_18], %98 {strides = array<i32>} : memref<1x1x64x128xf32, #tpu.memory_space<vmem>>, vector<1x1x64x128xf32>,
    return
  }
  func.func @transform_0(%arg0: i32, %arg1: i32, %arg2: i32) -> (i32, i32, i32) {
    %c1_i32 = arith.constant 1 : i32
    %0 = arith.muli %arg0, %c1_i32 : i32
    %1 = arith.addi %0, %arg2 : i32
    %c0_i32 = arith.constant 0 : i32
    %c0_i32_0 = arith.constant 0 : i32
    return %arg1, %c0_i32, %1 : i32, i32, i32
  }
  func.func @transform_1(%arg0: i32, %arg1: i32, %arg2: i32) -> (i32, i32) {
    %c0_i32 = arith.constant 0 : i32
    %c0_i32_0 = arith.constant 0 : i32
    %c0_i32_1 = arith.constant 0 : i32
    return %c0_i32, %c0_i32_0 : i32, i32
  }
  func.func @transform_2(%arg0: i32, %arg1: i32, %arg2: i32) -> (i32, i32) {
    %c0_i32 = arith.constant 0 : i32
    %c0_i32_0 = arith.constant 0 : i32
    %c0_i32_1 = arith.constant 0 : i32
    return %c0_i32, %c0_i32_0 : i32, i32
  }
  func.func @transform_3(%arg0: i32, %arg1: i32, %arg2: i32) -> (i32, i32, i32) {
    %c1_i32 = arith.constant 1 : i32
    %0 = arith.muli %arg0, %c1_i32 : i32
    %1 = arith.addi %0, %arg2 : i32
    %c0_i32 = arith.constant 0 : i32
    %c0_i32_0 = arith.constant 0 : i32
    return %arg1, %c0_i32, %1 : i32, i32, i32
  }
  func.func @transform_4(%arg0: i32, %arg1: i32, %arg2: i32) -> (i32, i32, i32, i32) {
    %c0_i32 = arith.constant 0 : i32
    %c0_i32_0 = arith.constant 0 : i32
    %c0_i32_1 = arith.constant 0 : i32
    return %arg0, %arg1, %c0_i32, %c0_i32_0 : i32, i32, i32, i32
  }
}

</mosaic_0001>

<llo_original>
// kernel: isonet_forward.1
$region0: #{isonet_forward.1}
  #allocation0 [shape = 'u32[]', space=smem, size = 0x4, offset = 0x4, fixed_abs, tag = 'smem constant byte address 0x4 - core index']
  #allocation1 [shape = 'u32[144,128]{1,0:T(1,128)}', space=vmem, size = 0x12000, scoped, tag = 'internal scratch']
  %s0 = inlined_call_operand.vmem [shape: f32[2,3,4096], index: 0, kind: input, shape index: {}]
  %s1 = inlined_call_operand.vmem [shape: f32[3,3], index: 1, kind: input, shape index: {}]
  %s2 = inlined_call_operand.vmem [shape: f32[64,3], index: 2, kind: input, shape index: {}]
  %s3 = inlined_call_operand.vmem [shape: f32[2,3,4096], index: 3, kind: output, shape index: {0}]
  %s4 = inlined_call_operand.vmem [shape: f32[1,2,64,128], index: 4, kind: output, shape index: {1}]
  %5 = xla_tuple %s3, %s4
  %s6 = sld [smem:[#allocation0]]
  $region57: #{isonet_forward.1} parent=0
    _
  %s8 = ssub.s32 1, %s6
  %s9 = scalar_select 0, %s8, %s6
  loop: start=0, step=1, limit=4
  $region2: #{isonet_forward.1} parent=0 // loop_pre_header
    _
  $region3: #{isonet_forward.1} parent=0 // loop_header
    %s11 = sphi 0, %s15
    %p12 = scmp.ge.s32.totalorder %s11, 4
    %s18 = sphi 0, %s37
    %s19 = sphi 0, %s33
    %s20 = sphi 0, %s29
    %s21 = sphi 0, %s18
    %s22 = sphi 0, %s19
    %s23 = sphi 0, %s20
    %s24 = sphi 0, %s21
    %s25 = sphi 0, %s22
    %s26 = sphi 0, %s23
    %s44 = sphi 0, %s46
    %s47 = sphi 0, %s44
    %s48 = sphi 0, %s47
    %s64 = sphi 0, %s48
    %s68 = sphi 0, %s68
    %s70 = sphi 0, %s68
    %s71 = sphi 0, %s70
    %s85 = sphi 0, %s71
    %s89 = sphi 0, %s89
    %s91 = sphi 0, %s89
    %s92 = sphi 0, %s91
    %s106 = sphi 0, %s92
    %s116 = sphi 0, %s118
    %s119 = sphi 0, %s116
    %s120 = sphi 0, %s119
    %s136 = sphi 0, %s120
    %s144 = sphi 0, %s146
    %s147 = sphi 0, %s144
    %s148 = sphi 0, %s147
    %s164 = sphi 0, %s148
  $region4: #{isonet_forward.1} parent=0 // loop_header_branch
    %14 = sbr.rel (%p12) target = $region8
  $region5: #{isonet_forward.1} parent=0 // loop_body
    %s16 = ssub.s32 %s11, 1
    %s17 = ssub.s32 %s11, 2
    %s27 = sadd.s32 1, %s20
    %p28 = scmp.ge.s32.totalorder %s27, 1
    %s29 = scalar_select %p28, 0, %s27
    %s30 = sadd.s32 1, %s19
    %s31 = scalar_select %p28, %s30, %s19
    %p32 = scmp.ge.s32.totalorder %s31, 2
    %s33 = scalar_select %p32, 0, %s31
    %s34 = sadd.s32 1, %s18
    %s35 = scalar_select %p32, %s34, %s18
    %p36 = scmp.ge.s32.totalorder %s35, 1
    %s37 = scalar_select %p36, 0, %s35
    %s38 = sadd.s32 %s18, %s20
    %s39 = sadd.s32 %s37, %s29
    %s40 = ssub.s32 %s19, %s33
    %s41 = ssub.s32 %s38, %s39
    %s42 = sor.u32 %s40, %s41
    %p43 = scmp.eq.s32.totalorder %s42, 0
    %s45 = sadd.s32 %s44, 1
    %s46 = scalar_select %p43, %s44, %s45
    %p49 = pneg %p43
    %p50 = scmp.eq.s32.totalorder %s11, 1
    %p51 = por %p49, %p50
    %p52 = scmp.ne.s32.totalorder %s44, %s47
    %p53 = scmp.eq.s32.totalorder %s11, 0
    %p54 = por %p52, %p53
    %p55 = scmp.ne.s32.totalorder %s44, %s47
    %p56 = scmp.eq.s32.totalorder %s16, 1
    %p57 = por %p55, %p56
    %p58 = scmp.ne.s32.totalorder %s47, %s48
    %p59 = scmp.eq.s32.totalorder %s16, 0
    %p60 = por %p58, %p59
    %p61 = scmp.ne.s32.totalorder %s47, %s48
    %p62 = scmp.eq.s32.totalorder %s17, 1
    %p63 = por %p61, %p62
    %p65 = scmp.ne.s32.totalorder %s48, %s64
    %p66 = scmp.eq.s32.totalorder %s17, 0
    %p67 = por %p65, %p66
    %s69 = sadd.s32 %s68, 1
    %p72 = scmp.eq.s32.totalorder %s11, 1
    %p73 = scmp.ne.s32.totalorder %s68, %s70
    %p74 = scmp.eq.s32.totalorder %s11, 0
    %p75 = por %p73, %p74
    %p76 = scmp.ne.s32.totalorder %s68, %s70
    %p77 = scmp.eq.s32.totalorder %s16, 1
    %p78 = por %p76, %p77
    %p79 = scmp.ne.s32.totalorder %s70, %s71
    %p80 = scmp.eq.s32.totalorder %s16, 0
    %p81 = por %p79, %p80
    %p82 = scmp.ne.s32.totalorder %s70, %s71
    %p83 = scmp.eq.s32.totalorder %s17, 1
    %p84 = por %p82, %p83
    %p86 = scmp.ne.s32.totalorder %s71, %s85
    %p87 = scmp.eq.s32.totalorder %s17, 0
    %p88 = por %p86, %p87
    %s90 = sadd.s32 %s89, 1
    %p93 = scmp.eq.s32.totalorder %s11, 1
    %p94 = scmp.ne.s32.totalorder %s89, %s91
    %p95 = scmp.eq.s32.totalorder %s11, 0
    %p96 = por %p94, %p95
    %p97 = scmp.ne.s32.totalorder %s89, %s91
    %p98 = scmp.eq.s32.totalorder %s16, 1
    %p99 = por %p97, %p98
    %p100 = scmp.ne.s32.totalorder %s91, %s92
    %p101 = scmp.eq.s32.totalorder %s16, 0
    %p102 = por %p100, %p101
    %p103 = scmp.ne.s32.totalorder %s91, %s92
    %p104 = scmp.eq.s32.totalorder %s17, 1
    %p105 = por %p103, %p104
    %p107 = scmp.ne.s32.totalorder %s92, %s106
    %p108 = scmp.eq.s32.totalorder %s17, 0
    %p109 = por %p107, %p108
    %s110 = sadd.s32 %s18, %s20
    %s111 = sadd.s32 %s37, %s29
    %s112 = ssub.s32 %s19, %s33
    %s113 = ssub.s32 %s110, %s111
    %s114 = sor.u32 %s112, %s113
    %p115 = scmp.eq.s32.totalorder %s114, 0
    %s117 = sadd.s32 %s116, 1
    %s118 = scalar_select %p115, %s116, %s117
    %p121 = pneg %p115
    %p122 = scmp.eq.s32.totalorder %s11, 1
    %p123 = por %p121, %p122
    %p124 = scmp.ne.s32.totalorder %s116, %s119
    %p125 = scmp.eq.s32.totalorder %s11, 0
    %p126 = por %p124, %p125
    %p127 = scmp.ne.s32.totalorder %s116, %s119
    %p128 = scmp.eq.s32.totalorder %s16, 1
    %p129 = por %p127, %p128
    %p130 = scmp.ne.s32.totalorder %s119, %s120
    %p131 = scmp.eq.s32.totalorder %s16, 0
    %p132 = por %p130, %p131
    %p133 = scmp.ne.s32.totalorder %s119, %s120
    %p134 = scmp.eq.s32.totalorder %s17, 1
    %p135 = por %p133, %p134
    %p137 = scmp.ne.s32.totalorder %s120, %s136
    %p138 = scmp.eq.s32.totalorder %s17, 0
    %p139 = por %p137, %p138
    %s140 = ssub.s32 %s18, %s37
    %s141 = ssub.s32 %s19, %s33
    %s142 = sor.u32 %s140, %s141
    %p143 = scmp.eq.s32.totalorder %s142, 0
    %s145 = sadd.s32 %s144, 1
    %s146 = scalar_select %p143, %s144, %s145
    %p149 = pneg %p143
    %p150 = scmp.eq.s32.totalorder %s11, 1
    %p151 = por %p149, %p150
    %p152 = scmp.ne.s32.totalorder %s144, %s147
    %p153 = scmp.eq.s32.totalorder %s11, 0
    %p154 = por %p152, %p153
    %p155 = scmp.ne.s32.totalorder %s144, %s147
    %p156 = scmp.eq.s32.totalorder %s16, 1
    %p157 = por %p155, %p156
    %p158 = scmp.ne.s32.totalorder %s147, %s148
    %p159 = scmp.eq.s32.totalorder %s16, 0
    %p160 = por %p158, %p159
    %p161 = scmp.ne.s32.totalorder %s147, %s148
    %p162 = scmp.eq.s32.totalorder %s17, 1
    %p163 = por %p161, %p162
    %p165 = scmp.ne.s32.totalorder %s148, %s164
    %p166 = scmp.eq.s32.totalorder %s17, 0
    %p167 = por %p165, %p166
    %p168 = scmp.le.s32.totalorder 1, %s11
    %p169 = scmp.lt.s32.totalorder %s11, 3
    %p170 = pnand %p168, %p169
    %p171 = pneg %p170
    // Predicated region
    $region9: #{isonet_forward.1} parent=5 // pred_check
      _
    $region10: #{isonet_forward.1} parent=5 // pred_check_branch
      %173 = sbr.rel (%p170) target = $region12
    $region11: #{isonet_forward.1} parent=5 // pred_region
      %s174 = ssub.s32 %s11, 1
      // Predicated region
      $region13: #{isonet_forward.1} parent=11 // pred_check
        %p175 = pneg %p81
      $region14: #{isonet_forward.1} parent=11 // pred_check_branch
        %177 = sbr.rel (%p175) target = $region16
      $region15: #{isonet_forward.1} parent=11 // pred_region
        _
      $region16: #{isonet_forward.1} parent=11 // pred_fallthru
        _
      // Predicated region
      $region17: #{isonet_forward.1} parent=11 // pred_check
        %p178 = pneg %p102
      $region18: #{isonet_forward.1} parent=11 // pred_check_branch
        %180 = sbr.rel (%p178) target = $region20
      $region19: #{isonet_forward.1} parent=11 // pred_region
        _
      $region20: #{isonet_forward.1} parent=11 // pred_fallthru
        _
    $region12: #{isonet_forward.1} parent=5 // pred_fallthru
      _
    %p181 = scmp.lt.s32.totalorder %s11, 2
    // Predicated region
    $region21: #{isonet_forward.1} parent=5 // pred_check
      %p182 = pneg %p181
    $region22: #{isonet_forward.1} parent=5 // pred_check_branch
      %184 = sbr.rel (%p182) target = $region24
    $region23: #{isonet_forward.1} parent=5 // pred_region
      // Predicated region
      $region25: #{isonet_forward.1} parent=23 // pred_check
        %p185 = pneg %p54
      $region26: #{isonet_forward.1} parent=23 // pred_check_branch
        %187 = sbr.rel (%p185) target = $region28
      $region27: #{isonet_forward.1} parent=23 // pred_region
        %s188 = sadd.s32 %s18, %s20
        %s189 = smul.u32 32, %s188
        %p190 = scmp.lt.s32.totalorder %s19, 1
        %s191 = scalar_select %p190, %s19, 1
        %p192 = scmp.lt.s32.totalorder %s189, 31
        %s193 = scalar_select %p192, %s189, 31
        %s194 = smul.addr %s191, 32
        %s195 = sadd.s32 %s193, %s194
        %s196 = smul.addr %s195, 4
        %s197 = scalar_lea.vmem %s0, %s196
        %s198 = sadd.s32 %s18, %s20
        %s199 = smul.u32 32, %s198
      $region28: #{isonet_forward.1} parent=23 // pred_fallthru
        _
    $region24: #{isonet_forward.1} parent=5 // pred_fallthru
      _
    %p200 = scmp.le.s32.totalorder 1, %s11
    %p201 = scmp.lt.s32.totalorder %s11, 3
    %p202 = pnand %p200, %p201
    %p203 = pneg %p202
    // Predicated region
    $region29: #{isonet_forward.1} parent=5 // pred_check
      _
    $region30: #{isonet_forward.1} parent=5 // pred_check_branch
      %205 = sbr.rel (%p202) target = $region32
    $region31: #{isonet_forward.1} parent=5 // pred_region
      %s206 = ssub.s32 %s11, 1
      %s207 = sadd.s32 %s21, %s23
      %s208 = smul.u32 32, %s207
      %p209 = scmp.lt.s32.totalorder %s22, 1
      %s210 = scalar_select %p209, %s22, 1
      %p211 = scmp.lt.s32.totalorder %s208, 31
      %s212 = scalar_select %p211, %s208, 31
      %s213 = smul.addr %s210, 32
      %s214 = sadd.s32 %s212, %s213
      %s215 = smul.addr %s214, 4
      %s216 = scalar_lea.vmem %s0, %s215
      %p217 = pneg %p60
      %p218 = pneg %p57
      %p219 = pneg %p81
      %p220 = pneg %p78
      %p221 = pneg %p102
      %p222 = pneg %p99
      %p223 = pneg %p132
      %p224 = pneg %p129
      %s225 = sadd.s32 %s21, %s23
      %s226 = smul.u32 32, %s225
      %p227 = scmp.lt.s32.totalorder %s22, 1
      %s228 = scalar_select %p227, %s22, 1
      %p229 = scmp.lt.s32.totalorder %s226, 31
      %s230 = scalar_select %p229, %s226, 31
      %s231 = smul.addr %s228, 32
      %s232 = sadd.s32 %s230, %s231
      %s233 = smul.addr %s232, 4
      %s234 = scalar_lea.vmem %s3, %s233
      %p235 = pneg %p160
      %p236 = pneg %p157
      %p237 = scmp.lt.s32.totalorder %s21, 0
      %s238 = scalar_select %p237, %s21, 0
      %p239 = scmp.lt.s32.totalorder %s22, 1
      %s240 = scalar_select %p239, %s22, 1
      %s241 = smul.addr %s240, 8
      %s242 = smul.addr %s238, 16
      %s243 = sadd.s32 %s241, %s242
      %s244 = smul.addr %s243, 8
      %s245 = scalar_lea.vmem %s4, %s244
      %s246 = sadd.s32 %s21, %s23
      %s247 = smul.u32 32, %s246
      %p248 = scmp.lt.s32.totalorder %s22, 1
      %s249 = scalar_select %p248, %s22, 1
      %p250 = scmp.lt.s32.totalorder %s247, 31
      %s251 = scalar_select %p250, %s247, 31
      %s252 = smul.addr %s249, 32
      %s253 = sadd.s32 %s251, %s252
      %s254 = smul.addr %s253, 4
      %s255 = scalar_lea.vmem %s0, %s254
      %s256 = sadd.s32 %s21, %s23
      %s257 = smul.u32 32, %s256
      %s258 = sadd.s32 %s21, %s23
      %s259 = smul.u32 32, %s258
      %p260 = scmp.lt.s32.totalorder %s22, 1
      %s261 = scalar_select %p260, %s22, 1
      %p262 = scmp.lt.s32.totalorder %s259, 31
      %s263 = scalar_select %p262, %s259, 31
      %s264 = smul.addr %s261, 32
      %s265 = sadd.s32 %s263, %s264
      %s266 = smul.addr %s265, 4
      %s267 = scalar_lea.vmem %s3, %s266
      %s268 = sadd.s32 %s21, %s23
      %s269 = smul.u32 32, %s268
      %p270 = scmp.lt.s32.totalorder %s21, 0
      %s271 = scalar_select %p270, %s21, 0
      %p272 = scmp.lt.s32.totalorder %s22, 1
      %s273 = scalar_select %p272, %s22, 1
      %s274 = smul.addr %s273, 8
      %s275 = smul.addr %s271, 16
      %s276 = sadd.s32 %s274, %s275
      %s277 = smul.addr %s276, 8
      %s278 = scalar_lea.vmem %s4, %s277
      %p279 = scmp.eq.s32.totalorder %s23, 0
      // Predicated region
      $region33: #{isonet_forward.1} parent=31 // pred_check
        %p280 = pneg %p279
      $region34: #{isonet_forward.1} parent=31 // pred_check_branch
        %282 = sbr.rel (%p280) target = $region36
      $region35: #{isonet_forward.1} parent=31 // pred_region
        %283 = vst [vmem:[%s278] sm:$0xff] -inf
        %284 = vst [vmem:[%s278 + $0x8] sm:$0xff] -inf
        %285 = vst [vmem:[%s278 + $0x10] sm:$0xff] -inf
        %286 = vst [vmem:[%s278 + $0x18] sm:$0xff] -inf
        %287 = vst [vmem:[%s278 + $0x20] sm:$0xff] -inf
        %288 = vst [vmem:[%s278 + $0x28] sm:$0xff] -inf
        %289 = vst [vmem:[%s278 + $0x30] sm:$0xff] -inf
        %290 = vst [vmem:[%s278 + $0x38] sm:$0xff] -inf
      $region36: #{isonet_forward.1} parent=31 // pred_fallthru
        _
      %v291 = vld [vmem:[%s255] sm:$0x77]
      %v292 = vld [vmem:[%s255 + $0x8] sm:$0x77]
      %v293 = vld [vmem:[%s255 + $0x10] sm:$0x77]
      %v294 = vld [vmem:[%s255 + $0x18] sm:$0x77]
      %v295 = vld [vmem:[%s255 + $0x20] sm:$0x77]
      %v296 = vld [vmem:[%s255 + $0x28] sm:$0x77]
      %v297 = vld [vmem:[%s255 + $0x30] sm:$0x77]
      %v298 = vld [vmem:[%s255 + $0x38] sm:$0x77]
      %v299 = vld [vmem:[%s255 + $0x40] sm:$0x77]
      %v300 = vld [vmem:[%s255 + $0x48] sm:$0x77]
      %v301 = vld [vmem:[%s255 + $0x50] sm:$0x77]
      %v302 = vld [vmem:[%s255 + $0x58] sm:$0x77]
      %v303 = vld [vmem:[%s255 + $0x60] sm:$0x77]
      %v304 = vld [vmem:[%s255 + $0x68] sm:$0x77]
      %v305 = vld [vmem:[%s255 + $0x70] sm:$0x77]
      %v306 = vld [vmem:[%s255 + $0x78] sm:$0x77]
      %v307 = vld [vmem:[%s1] sm:$0x7]
      %309 = vset.pattern.permute.xlu0 0
      %310 = vperm.xlu0 %309, %v307
      %v311 = vpop.permute.xlu0 %310
      %v329 = vlaneseq
      %v330 = vshrl.u32 %v329, 7
      %v331 = vsub.s32 0, %v330
      %v332 = vrot.slane %v291, %v331
      %v333 = vlaneseq
      %v334 = vshrl.u32 %v333, 7
      %v335 = vsub.s32 4, %v334
      %v336 = vrot.slane %v291, %v335
      %v337 = vlaneseq
      %v338 = vshrl.u32 %v337, 7
      %v339 = vsub.s32 0, %v338
      %v340 = vrot.slane %v292, %v339
      %v341 = vlaneseq
      %v342 = vshrl.u32 %v341, 7
      %v343 = vsub.s32 4, %v342
      %v344 = vrot.slane %v292, %v343
      %v345 = vlaneseq
      %v346 = vshrl.u32 %v345, 7
      %v347 = vsub.s32 0, %v346
      %v348 = vrot.slane %v293, %v347
      %v349 = vlaneseq
      %v350 = vshrl.u32 %v349, 7
      %v351 = vsub.s32 4, %v350
      %v352 = vrot.slane %v293, %v351
      %v353 = vlaneseq
      %v354 = vshrl.u32 %v353, 7
      %v355 = vsub.s32 0, %v354
      %v356 = vrot.slane %v294, %v355
      %v357 = vlaneseq
      %v358 = vshrl.u32 %v357, 7
      %v359 = vsub.s32 4, %v358
      %v360 = vrot.slane %v294, %v359
      %v361 = vlaneseq
      %v362 = vshrl.u32 %v361, 7
      %v363 = vsub.s32 0, %v362
      %v364 = vrot.slane %v295, %v363
      %v365 = vlaneseq
      %v366 = vshrl.u32 %v365, 7
      %v367 = vsub.s32 4, %v366
      %v368 = vrot.slane %v295, %v367
      %v369 = vlaneseq
      %v370 = vshrl.u32 %v369, 7
      %v371 = vsub.s32 0, %v370
      %v372 = vrot.slane %v296, %v371
      %v373 = vlaneseq
      %v374 = vshrl.u32 %v373, 7
      %v375 = vsub.s32 4, %v374
      %v376 = vrot.slane %v296, %v375
      %v377 = vlaneseq
      %v378 = vshrl.u32 %v377, 7
      %v379 = vsub.s32 0, %v378
      %v380 = vrot.slane %v297, %v379
      %v381 = vlaneseq
      %v382 = vshrl.u32 %v381, 7
      %v383 = vsub.s32 4, %v382
      %v384 = vrot.slane %v297, %v383
      %v385 = vlaneseq
      %v386 = vshrl.u32 %v385, 7
      %v387 = vsub.s32 0, %v386
      %v388 = vrot.slane %v298, %v387
      %v389 = vlaneseq
      %v390 = vshrl.u32 %v389, 7
      %v391 = vsub.s32 4, %v390
      %v392 = vrot.slane %v298, %v391
      %v393 = vlaneseq
      %v394 = vshrl.u32 %v393, 7
      %v395 = vsub.s32 0, %v394
      %v396 = vrot.slane %v299, %v395
      %v397 = vlaneseq
      %v398 = vshrl.u32 %v397, 7
      %v399 = vsub.s32 4, %v398
      %v400 = vrot.slane %v299, %v399
      %v401 = vlaneseq
      %v402 = vshrl.u32 %v401, 7
      %v403 = vsub.s32 0, %v402
      %v404 = vrot.slane %v300, %v403
      %v405 = vlaneseq
      %v406 = vshrl.u32 %v405, 7
      %v407 = vsub.s32 4, %v406
      %v408 = vrot.slane %v300, %v407
      %v409 = vlaneseq
      %v410 = vshrl.u32 %v409, 7
      %v411 = vsub.s32 0, %v410
      %v412 = vrot.slane %v301, %v411
      %v413 = vlaneseq
      %v414 = vshrl.u32 %v413, 7
      %v415 = vsub.s32 4, %v414
      %v416 = vrot.slane %v301, %v415
      %v417 = vlaneseq
      %v418 = vshrl.u32 %v417, 7
      %v419 = vsub.s32 0, %v418
      %v420 = vrot.slane %v302, %v419
      %v421 = vlaneseq
      %v422 = vshrl.u32 %v421, 7
      %v423 = vsub.s32 4, %v422
      %v424 = vrot.slane %v302, %v423
      %v425 = vlaneseq
      %v426 = vshrl.u32 %v425, 7
      %v427 = vsub.s32 0, %v426
      %v428 = vrot.slane %v303, %v427
      %v429 = vlaneseq
      %v430 = vshrl.u32 %v429, 7
      %v431 = vsub.s32 4, %v430
      %v432 = vrot.slane %v303, %v431
      %v433 = vlaneseq
      %v434 = vshrl.u32 %v433, 7
      %v435 = vsub.s32 0, %v434
      %v436 = vrot.slane %v304, %v435
      %v437 = vlaneseq
      %v438 = vshrl.u32 %v437, 7
      %v439 = vsub.s32 4, %v438
      %v440 = vrot.slane %v304, %v439
      %v441 = vlaneseq
      %v442 = vshrl.u32 %v441, 7
      %v443 = vsub.s32 0, %v442
      %v444 = vrot.slane %v305, %v443
      %v445 = vlaneseq
      %v446 = vshrl.u32 %v445, 7
      %v447 = vsub.s32 4, %v446
      %v448 = vrot.slane %v305, %v447
      %v449 = vlaneseq
      %v450 = vshrl.u32 %v449, 7
      %v451 = vsub.s32 0, %v450
      %v452 = vrot.slane %v306, %v451
      %v453 = vlaneseq
      %v454 = vshrl.u32 %v453, 7
      %v455 = vsub.s32 4, %v454
      %v456 = vrot.slane %v306, %v455
      %v489 = vlaneseq
      %v490 = vshrl.u32 %v489, 7
      %v491 = vsub.s32 0, %v490
      %v492 = vrot.slane %v332, %v491
      %v493 = vlaneseq
      %v494 = vshrl.u32 %v493, 7
      %v495 = vsub.s32 0, %v494
      %v496 = vrot.slane %v336, %v495
      %v497 = vlaneseq
      %v498 = vshrl.u32 %v497, 7
      %v499 = vsub.s32 0, %v498
      %v500 = vrot.slane %v340, %v499
      %v501 = vlaneseq
      %v502 = vshrl.u32 %v501, 7
      %v503 = vsub.s32 0, %v502
      %v504 = vrot.slane %v344, %v503
      %v505 = vlaneseq
      %v506 = vshrl.u32 %v505, 7
      %v507 = vsub.s32 0, %v506
      %v508 = vrot.slane %v348, %v507
      %v509 = vlaneseq
      %v510 = vshrl.u32 %v509, 7
      %v511 = vsub.s32 0, %v510
      %v512 = vrot.slane %v352, %v511
      %v513 = vlaneseq
      %v514 = vshrl.u32 %v513, 7
      %v515 = vsub.s32 0, %v514
      %v516 = vrot.slane %v356, %v515
      %v517 = vlaneseq
      %v518 = vshrl.u32 %v517, 7
      %v519 = vsub.s32 0, %v518
      %v520 = vrot.slane %v360, %v519
      %v521 = vlaneseq
      %v522 = vshrl.u32 %v521, 7
      %v523 = vsub.s32 0, %v522
      %v524 = vrot.slane %v364, %v523
      %v525 = vlaneseq
      %v526 = vshrl.u32 %v525, 7
      %v527 = vsub.s32 0, %v526
      %v528 = vrot.slane %v368, %v527
      %v529 = vlaneseq
      %v530 = vshrl.u32 %v529, 7
      %v531 = vsub.s32 0, %v530
      %v532 = vrot.slane %v372, %v531
      %v533 = vlaneseq
      %v534 = vshrl.u32 %v533, 7
      %v535 = vsub.s32 0, %v534
      %v536 = vrot.slane %v376, %v535
      %v537 = vlaneseq
      %v538 = vshrl.u32 %v537, 7
      %v539 = vsub.s32 0, %v538
      %v540 = vrot.slane %v380, %v539
      %v541 = vlaneseq
      %v542 = vshrl.u32 %v541, 7
      %v543 = vsub.s32 0, %v542
      %v544 = vrot.slane %v384, %v543
      %v545 = vlaneseq
      %v546 = vshrl.u32 %v545, 7
      %v547 = vsub.s32 0, %v546
      %v548 = vrot.slane %v388, %v547
      %v549 = vlaneseq
      %v550 = vshrl.u32 %v549, 7
      %v551 = vsub.s32 0, %v550
      %v552 = vrot.slane %v392, %v551
      %v553 = vlaneseq
      %v554 = vshrl.u32 %v553, 7
      %v555 = vsub.s32 0, %v554
      %v556 = vrot.slane %v396, %v555
      %v557 = vlaneseq
      %v558 = vshrl.u32 %v557, 7
      %v559 = vsub.s32 0, %v558
      %v560 = vrot.slane %v400, %v559
      %v561 = vlaneseq
      %v562 = vshrl.u32 %v561, 7
      %v563 = vsub.s32 0, %v562
      %v564 = vrot.slane %v404, %v563
      %v565 = vlaneseq
      %v566 = vshrl.u32 %v565, 7
      %v567 = vsub.s32 0, %v566
      %v568 = vrot.slane %v408, %v567
      %v569 = vlaneseq
      %v570 = vshrl.u32 %v569, 7
      %v571 = vsub.s32 0, %v570
      %v572 = vrot.slane %v412, %v571
      %v573 = vlaneseq
      %v574 = vshrl.u32 %v573, 7
      %v575 = vsub.s32 0, %v574
      %v576 = vrot.slane %v416, %v575
      %v577 = vlaneseq
      %v578 = vshrl.u32 %v577, 7
      %v579 = vsub.s32 0, %v578
      %v580 = vrot.slane %v420, %v579
      %v581 = vlaneseq
      %v582 = vshrl.u32 %v581, 7
      %v583 = vsub.s32 0, %v582
      %v584 = vrot.slane %v424, %v583
      %v585 = vlaneseq
      %v586 = vshrl.u32 %v585, 7
      %v587 = vsub.s32 0, %v586
      %v588 = vrot.slane %v428, %v587
      %v589 = vlaneseq
      %v590 = vshrl.u32 %v589, 7
      %v591 = vsub.s32 0, %v590
      %v592 = vrot.slane %v432, %v591
      %v593 = vlaneseq
      %v594 = vshrl.u32 %v593, 7
      %v595 = vsub.s32 0, %v594
      %v596 = vrot.slane %v436, %v595
      %v597 = vlaneseq
      %v598 = vshrl.u32 %v597, 7
      %v599 = vsub.s32 0, %v598
      %v600 = vrot.slane %v440, %v599
      %v601 = vlaneseq
      %v602 = vshrl.u32 %v601, 7
      %v603 = vsub.s32 0, %v602
      %v604 = vrot.slane %v444, %v603
      %v605 = vlaneseq
      %v606 = vshrl.u32 %v605, 7
      %v607 = vsub.s32 0, %v606
      %v608 = vrot.slane %v448, %v607
      %v609 = vlaneseq
      %v610 = vshrl.u32 %v609, 7
      %v611 = vsub.s32 0, %v610
      %v612 = vrot.slane %v452, %v611
      %v613 = vlaneseq
      %v614 = vshrl.u32 %v613, 7
      %v615 = vsub.s32 0, %v614
      %v616 = vrot.slane %v456, %v615
      %v617 = vmul.f32 %v311, %v492
      %v618 = vmul.f32 %v311, %v496
      %v619 = vmul.f32 %v311, %v500
      %v620 = vmul.f32 %v311, %v504
      %v621 = vmul.f32 %v311, %v508
      %v622 = vmul.f32 %v311, %v512
      %v623 = vmul.f32 %v311, %v516
      %v624 = vmul.f32 %v311, %v520
      %v625 = vmul.f32 %v311, %v524
      %v626 = vmul.f32 %v311, %v528
      %v627 = vmul.f32 %v311, %v532
      %v628 = vmul.f32 %v311, %v536
      %v629 = vmul.f32 %v311, %v540
      %v630 = vmul.f32 %v311, %v544
      %v631 = vmul.f32 %v311, %v548
      %v632 = vmul.f32 %v311, %v552
      %v633 = vmul.f32 %v311, %v556
      %v634 = vmul.f32 %v311, %v560
      %v635 = vmul.f32 %v311, %v564
      %v636 = vmul.f32 %v311, %v568
      %v637 = vmul.f32 %v311, %v572
      %v638 = vmul.f32 %v311, %v576
      %v639 = vmul.f32 %v311, %v580
      %v640 = vmul.f32 %v311, %v584
      %v641 = vmul.f32 %v311, %v588
      %v642 = vmul.f32 %v311, %v592
      %v643 = vmul.f32 %v311, %v596
      %v644 = vmul.f32 %v311, %v600
      %v645 = vmul.f32 %v311, %v604
      %v646 = vmul.f32 %v311, %v608
      %v647 = vmul.f32 %v311, %v612
      %v648 = vmul.f32 %v311, %v616
      %649 = vset.pattern.permute.xlu0 1
      %650 = vperm.xlu0 %649, %v307
      %v651 = vpop.permute.xlu0 %650
      %v653 = vlaneseq
      %v654 = vshrl.u32 %v653, 7
      %v655 = vsub.s32 1, %v654
      %v656 = vrot.slane %v291, %v655
      %v657 = vlaneseq
      %v658 = vshrl.u32 %v657, 7
      %v659 = vsub.s32 5, %v658
      %v660 = vrot.slane %v291, %v659
      %v661 = vlaneseq
      %v662 = vshrl.u32 %v661, 7
      %v663 = vsub.s32 1, %v662
      %v664 = vrot.slane %v292, %v663
      %v665 = vlaneseq
      %v666 = vshrl.u32 %v665, 7
      %v667 = vsub.s32 5, %v666
      %v668 = vrot.slane %v292, %v667
      %v669 = vlaneseq
      %v670 = vshrl.u32 %v669, 7
      %v671 = vsub.s32 1, %v670
      %v672 = vrot.slane %v293, %v671
      %v673 = vlaneseq
      %v674 = vshrl.u32 %v673, 7
      %v675 = vsub.s32 5, %v674
      %v676 = vrot.slane %v293, %v675
      %v677 = vlaneseq
      %v678 = vshrl.u32 %v677, 7
      %v679 = vsub.s32 1, %v678
      %v680 = vrot.slane %v294, %v679
      %v681 = vlaneseq
      %v682 = vshrl.u32 %v681, 7
      %v683 = vsub.s32 5, %v682
      %v684 = vrot.slane %v294, %v683
      %v685 = vlaneseq
      %v686 = vshrl.u32 %v685, 7
      %v687 = vsub.s32 1, %v686
      %v688 = vrot.slane %v295, %v687
      %v689 = vlaneseq
      %v690 = vshrl.u32 %v689, 7
      %v691 = vsub.s32 5, %v690
      %v692 = vrot.slane %v295, %v691
      %v693 = vlaneseq
      %v694 = vshrl.u32 %v693, 7
      %v695 = vsub.s32 1, %v694
      %v696 = vrot.slane %v296, %v695
      %v697 = vlaneseq
      %v698 = vshrl.u32 %v697, 7
      %v699 = vsub.s32 5, %v698
      %v700 = vrot.slane %v296, %v699
      %v701 = vlaneseq
      %v702 = vshrl.u32 %v701, 7
      %v703 = vsub.s32 1, %v702
      %v704 = vrot.slane %v297, %v703
      %v705 = vlaneseq
      %v706 = vshrl.u32 %v705, 7
      %v707 = vsub.s32 5, %v706
      %v708 = vrot.slane %v297, %v707
      %v709 = vlaneseq
      %v710 = vshrl.u32 %v709, 7
      %v711 = vsub.s32 1, %v710
      %v712 = vrot.slane %v298, %v711
      %v713 = vlaneseq
      %v714 = vshrl.u32 %v713, 7
      %v715 = vsub.s32 5, %v714
      %v716 = vrot.slane %v298, %v715
      %v717 = vlaneseq
      %v718 = vshrl.u32 %v717, 7
      %v719 = vsub.s32 1, %v718
      %v720 = vrot.slane %v299, %v719
      %v721 = vlaneseq
      %v722 = vshrl.u32 %v721, 7
      %v723 = vsub.s32 5, %v722
      %v724 = vrot.slane %v299, %v723
      %v725 = vlaneseq
      %v726 = vshrl.u32 %v725, 7
      %v727 = vsub.s32 1, %v726
      %v728 = vrot.slane %v300, %v727
      %v729 = vlaneseq
      %v730 = vshrl.u32 %v729, 7
      %v731 = vsub.s32 5, %v730
      %v732 = vrot.slane %v300, %v731
      %v733 = vlaneseq
      %v734 = vshrl.u32 %v733, 7
      %v735 = vsub.s32 1, %v734
      %v736 = vrot.slane %v301, %v735
      %v737 = vlaneseq
      %v738 = vshrl.u32 %v737, 7
      %v739 = vsub.s32 5, %v738
      %v740 = vrot.slane %v301, %v739
      %v741 = vlaneseq
      %v742 = vshrl.u32 %v741, 7
      %v743 = vsub.s32 1, %v742
      %v744 = vrot.slane %v302, %v743
      %v745 = vlaneseq
      %v746 = vshrl.u32 %v745, 7
      %v747 = vsub.s32 5, %v746
      %v748 = vrot.slane %v302, %v747
      %v749 = vlaneseq
      %v750 = vshrl.u32 %v749, 7
      %v751 = vsub.s32 1, %v750
      %v752 = vrot.slane %v303, %v751
      %v753 = vlaneseq
      %v754 = vshrl.u32 %v753, 7
      %v755 = vsub.s32 5, %v754
      %v756 = vrot.slane %v303, %v755
      %v757 = vlaneseq
      %v758 = vshrl.u32 %v757, 7
      %v759 = vsub.s32 1, %v758
      %v760 = vrot.slane %v304, %v759
      %v761 = vlaneseq
      %v762 = vshrl.u32 %v761, 7
      %v763 = vsub.s32 5, %v762
      %v764 = vrot.slane %v304, %v763
      %v765 = vlaneseq
      %v766 = vshrl.u32 %v765, 7
      %v767 = vsub.s32 1, %v766
      %v768 = vrot.slane %v305, %v767
      %v769 = vlaneseq
      %v770 = vshrl.u32 %v769, 7
      %v771 = vsub.s32 5, %v770
      %v772 = vrot.slane %v305, %v771
      %v773 = vlaneseq
      %v774 = vshrl.u32 %v773, 7
      %v775 = vsub.s32 1, %v774
      %v776 = vrot.slane %v306, %v775
      %v777 = vlaneseq
      %v778 = vshrl.u32 %v777, 7
      %v779 = vsub.s32 5, %v778
      %v780 = vrot.slane %v306, %v779
      %v813 = vlaneseq
      %v814 = vshrl.u32 %v813, 7
      %v815 = vsub.s32 1, %v814
      %v816 = vrot.slane %v656, %v815
      %v817 = vlaneseq
      %v818 = vshrl.u32 %v817, 7
      %v819 = vsub.s32 1, %v818
      %v820 = vrot.slane %v660, %v819
      %v821 = vlaneseq
      %v822 = vshrl.u32 %v821, 7
      %v823 = vsub.s32 1, %v822
      %v824 = vrot.slane %v664, %v823
      %v825 = vlaneseq
      %v826 = vshrl.u32 %v825, 7
      %v827 = vsub.s32 1, %v826
      %v828 = vrot.slane %v668, %v827
      %v829 = vlaneseq
      %v830 = vshrl.u32 %v829, 7
      %v831 = vsub.s32 1, %v830
      %v832 = vrot.slane %v672, %v831
      %v833 = vlaneseq
      %v834 = vshrl.u32 %v833, 7
      %v835 = vsub.s32 1, %v834
      %v836 = vrot.slane %v676, %v835
      %v837 = vlaneseq
      %v838 = vshrl.u32 %v837, 7
      %v839 = vsub.s32 1, %v838
      %v840 = vrot.slane %v680, %v839
      %v841 = vlaneseq
      %v842 = vshrl.u32 %v841, 7
      %v843 = vsub.s32 1, %v842
      %v844 = vrot.slane %v684, %v843
      %v845 = vlaneseq
      %v846 = vshrl.u32 %v845, 7
      %v847 = vsub.s32 1, %v846
      %v848 = vrot.slane %v688, %v847
      %v849 = vlaneseq
      %v850 = vshrl.u32 %v849, 7
      %v851 = vsub.s32 1, %v850
      %v852 = vrot.slane %v692, %v851
      %v853 = vlaneseq
      %v854 = vshrl.u32 %v853, 7
      %v855 = vsub.s32 1, %v854
      %v856 = vrot.slane %v696, %v855
      %v857 = vlaneseq
      %v858 = vshrl.u32 %v857, 7
      %v859 = vsub.s32 1, %v858
      %v860 = vrot.slane %v700, %v859
      %v861 = vlaneseq
      %v862 = vshrl.u32 %v861, 7
      %v863 = vsub.s32 1, %v862
      %v864 = vrot.slane %v704, %v863
      %v865 = vlaneseq
      %v866 = vshrl.u32 %v865, 7
      %v867 = vsub.s32 1, %v866
      %v868 = vrot.slane %v708, %v867
      %v869 = vlaneseq
      %v870 = vshrl.u32 %v869, 7
      %v871 = vsub.s32 1, %v870
      %v872 = vrot.slane %v712, %v871
      %v873 = vlaneseq
      %v874 = vshrl.u32 %v873, 7
      %v875 = vsub.s32 1, %v874
      %v876 = vrot.slane %v716, %v875
      %v877 = vlaneseq
      %v878 = vshrl.u32 %v877, 7
      %v879 = vsub.s32 1, %v878
      %v880 = vrot.slane %v720, %v879
      %v881 = vlaneseq
      %v882 = vshrl.u32 %v881, 7
      %v883 = vsub.s32 1, %v882
      %v884 = vrot.slane %v724, %v883
      %v885 = vlaneseq
      %v886 = vshrl.u32 %v885, 7
      %v887 = vsub.s32 1, %v886
      %v888 = vrot.slane %v728, %v887
      %v889 = vlaneseq
      %v890 = vshrl.u32 %v889, 7
      %v891 = vsub.s32 1, %v890
      %v892 = vrot.slane %v732, %v891
      %v893 = vlaneseq
      %v894 = vshrl.u32 %v893, 7
      %v895 = vsub.s32 1, %v894
      %v896 = vrot.slane %v736, %v895
      %v897 = vlaneseq
      %v898 = vshrl.u32 %v897, 7
      %v899 = vsub.s32 1, %v898
      %v900 = vrot.slane %v740, %v899
      %v901 = vlaneseq
      %v902 = vshrl.u32 %v901, 7
      %v903 = vsub.s32 1, %v902
      %v904 = vrot.slane %v744, %v903
      %v905 = vlaneseq
      %v906 = vshrl.u32 %v905, 7
      %v907 = vsub.s32 1, %v906
      %v908 = vrot.slane %v748, %v907
      %v909 = vlaneseq
      %v910 = vshrl.u32 %v909, 7
      %v911 = vsub.s32 1, %v910
      %v912 = vrot.slane %v752, %v911
      %v913 = vlaneseq
      %v914 = vshrl.u32 %v913, 7
      %v915 = vsub.s32 1, %v914
      %v916 = vrot.slane %v756, %v915
      %v917 = vlaneseq
      %v918 = vshrl.u32 %v917, 7
      %v919 = vsub.s32 1, %v918
      %v920 = vrot.slane %v760, %v919
      %v921 = vlaneseq
      %v922 = vshrl.u32 %v921, 7
      %v923 = vsub.s32 1, %v922
      %v924 = vrot.slane %v764, %v923
      %v925 = vlaneseq
      %v926 = vshrl.u32 %v925, 7
      %v927 = vsub.s32 1, %v926
      %v928 = vrot.slane %v768, %v927
      %v929 = vlaneseq
      %v930 = vshrl.u32 %v929, 7
      %v931 = vsub.s32 1, %v930
      %v932 = vrot.slane %v772, %v931
      %v933 = vlaneseq
      %v934 = vshrl.u32 %v933, 7
      %v935 = vsub.s32 1, %v934
      %v936 = vrot.slane %v776, %v935
      %v937 = vlaneseq
      %v938 = vshrl.u32 %v937, 7
      %v939 = vsub.s32 1, %v938
      %v940 = vrot.slane %v780, %v939
      %v941 = vmul.f32 %v651, %v816
      %v942 = vmul.f32 %v651, %v820
      %v943 = vmul.f32 %v651, %v824
      %v944 = vmul.f32 %v651, %v828
      %v945 = vmul.f32 %v651, %v832
      %v946 = vmul.f32 %v651, %v836
      %v947 = vmul.f32 %v651, %v840
      %v948 = vmul.f32 %v651, %v844
      %v949 = vmul.f32 %v651, %v848
      %v950 = vmul.f32 %v651, %v852
      %v951 = vmul.f32 %v651, %v856
      %v952 = vmul.f32 %v651, %v860
      %v953 = vmul.f32 %v651, %v864
      %v954 = vmul.f32 %v651, %v868
      %v955 = vmul.f32 %v651, %v872
      %v956 = vmul.f32 %v651, %v876
      %v957 = vmul.f32 %v651, %v880
      %v958 = vmul.f32 %v651, %v884
      %v959 = vmul.f32 %v651, %v888
      %v960 = vmul.f32 %v651, %v892
      %v961 = vmul.f32 %v651, %v896
      %v962 = vmul.f32 %v651, %v900
      %v963 = vmul.f32 %v651, %v904
      %v964 = vmul.f32 %v651, %v908
      %v965 = vmul.f32 %v651, %v912
      %v966 = vmul.f32 %v651, %v916
      %v967 = vmul.f32 %v651, %v920
      %v968 = vmul.f32 %v651, %v924
      %v969 = vmul.f32 %v651, %v928
      %v970 = vmul.f32 %v651, %v932
      %v971 = vmul.f32 %v651, %v936
      %v972 = vmul.f32 %v651, %v940
      %v973 = vadd.f32 %v617, %v941
      %v974 = vadd.f32 %v618, %v942
      %v975 = vadd.f32 %v619, %v943
      %v976 = vadd.f32 %v620, %v944
      %v977 = vadd.f32 %v621, %v945
      %v978 = vadd.f32 %v622, %v946
      %v979 = vadd.f32 %v623, %v947
      %v980 = vadd.f32 %v624, %v948
      %v981 = vadd.f32 %v625, %v949
      %v982 = vadd.f32 %v626, %v950
      %v983 = vadd.f32 %v627, %v951
      %v984 = vadd.f32 %v628, %v952
      %v985 = vadd.f32 %v629, %v953
      %v986 = vadd.f32 %v630, %v954
      %v987 = vadd.f32 %v631, %v955
      %v988 = vadd.f32 %v632, %v956
      %v989 = vadd.f32 %v633, %v957
      %v990 = vadd.f32 %v634, %v958
      %v991 = vadd.f32 %v635, %v959
      %v992 = vadd.f32 %v636, %v960
      %v993 = vadd.f32 %v637, %v961
      %v994 = vadd.f32 %v638, %v962
      %v995 = vadd.f32 %v639, %v963
      %v996 = vadd.f32 %v640, %v964
      %v997 = vadd.f32 %v641, %v965
      %v998 = vadd.f32 %v642, %v966
      %v999 = vadd.f32 %v643, %v967
      %v1000 = vadd.f32 %v644, %v968
      %v1001 = vadd.f32 %v645, %v969
      %v1002 = vadd.f32 %v646, %v970
      %v1003 = vadd.f32 %v647, %v971
      %v1004 = vadd.f32 %v648, %v972
      %1005 = vset.pattern.permute.xlu0 2
      %1006 = vperm.xlu0 %1005, %v307
      %v1007 = vpop.permute.xlu0 %1006
      %v1009 = vlaneseq
      %v1010 = vshrl.u32 %v1009, 7
      %v1011 = vsub.s32 2, %v1010
      %v1012 = vrot.slane %v291, %v1011
      %v1013 = vlaneseq
      %v1014 = vshrl.u32 %v1013, 7
      %v1015 = vsub.s32 6, %v1014
      %v1016 = vrot.slane %v291, %v1015
      %v1017 = vlaneseq
      %v1018 = vshrl.u32 %v1017, 7
      %v1019 = vsub.s32 2, %v1018
      %v1020 = vrot.slane %v292, %v1019
      %v1021 = vlaneseq
      %v1022 = vshrl.u32 %v1021, 7
      %v1023 = vsub.s32 6, %v1022
      %v1024 = vrot.slane %v292, %v1023
      %v1025 = vlaneseq
      %v1026 = vshrl.u32 %v1025, 7
      %v1027 = vsub.s32 2, %v1026
      %v1028 = vrot.slane %v293, %v1027
      %v1029 = vlaneseq
      %v1030 = vshrl.u32 %v1029, 7
      %v1031 = vsub.s32 6, %v1030
      %v1032 = vrot.slane %v293, %v1031
      %v1033 = vlaneseq
      %v1034 = vshrl.u32 %v1033, 7
      %v1035 = vsub.s32 2, %v1034
      %v1036 = vrot.slane %v294, %v1035
      %v1037 = vlaneseq
      %v1038 = vshrl.u32 %v1037, 7
      %v1039 = vsub.s32 6, %v1038
      %v1040 = vrot.slane %v294, %v1039
      %v1041 = vlaneseq
      %v1042 = vshrl.u32 %v1041, 7
      %v1043 = vsub.s32 2, %v1042
      %v1044 = vrot.slane %v295, %v1043
      %v1045 = vlaneseq
      %v1046 = vshrl.u32 %v1045, 7
      %v1047 = vsub.s32 6, %v1046
      %v1048 = vrot.slane %v295, %v1047
      %v1049 = vlaneseq
      %v1050 = vshrl.u32 %v1049, 7
      %v1051 = vsub.s32 2, %v1050
      %v1052 = vrot.slane %v296, %v1051
      %v1053 = vlaneseq
      %v1054 = vshrl.u32 %v1053, 7
      %v1055 = vsub.s32 6, %v1054
      %v1056 = vrot.slane %v296, %v1055
      %v1057 = vlaneseq
      %v1058 = vshrl.u32 %v1057, 7
      %v1059 = vsub.s32 2, %v1058
      %v1060 = vrot.slane %v297, %v1059
      %v1061 = vlaneseq
      %v1062 = vshrl.u32 %v1061, 7
      %v1063 = vsub.s32 6, %v1062
      %v1064 = vrot.slane %v297, %v1063
      %v1065 = vlaneseq
      %v1066 = vshrl.u32 %v1065, 7
      %v1067 = vsub.s32 2, %v1066
      %v1068 = vrot.slane %v298, %v1067
      %v1069 = vlaneseq
      %v1070 = vshrl.u32 %v1069, 7
      %v1071 = vsub.s32 6, %v1070
      %v1072 = vrot.slane %v298, %v1071
      %v1073 = vlaneseq
      %v1074 = vshrl.u32 %v1073, 7
      %v1075 = vsub.s32 2, %v1074
      %v1076 = vrot.slane %v299, %v1075
      %v1077 = vlaneseq
      %v1078 = vshrl.u32 %v1077, 7
      %v1079 = vsub.s32 6, %v1078
      %v1080 = vrot.slane %v299, %v1079
      %v1081 = vlaneseq
      %v1082 = vshrl.u32 %v1081, 7
      %v1083 = vsub.s32 2, %v1082
      %v1084 = vrot.slane %v300, %v1083
      %v1085 = vlaneseq
      %v1086 = vshrl.u32 %v1085, 7
      %v1087 = vsub.s32 6, %v1086
      %v1088 = vrot.slane %v300, %v1087
      %v1089 = vlaneseq
      %v1090 = vshrl.u32 %v1089, 7
      %v1091 = vsub.s32 2, %v1090
      %v1092 = vrot.slane %v301, %v1091
      %v1093 = vlaneseq
      %v1094 = vshrl.u32 %v1093, 7
      %v1095 = vsub.s32 6, %v1094
      %v1096 = vrot.slane %v301, %v1095
      %v1097 = vlaneseq
      %v1098 = vshrl.u32 %v1097, 7
      %v1099 = vsub.s32 2, %v1098
      %v1100 = vrot.slane %v302, %v1099
      %v1101 = vlaneseq
      %v1102 = vshrl.u32 %v1101, 7
      %v1103 = vsub.s32 6, %v1102
      %v1104 = vrot.slane %v302, %v1103
      %v1105 = vlaneseq
      %v1106 = vshrl.u32 %v1105, 7
      %v1107 = vsub.s32 2, %v1106
      %v1108 = vrot.slane %v303, %v1107
      %v1109 = vlaneseq
      %v1110 = vshrl.u32 %v1109, 7
      %v1111 = vsub.s32 6, %v1110
      %v1112 = vrot.slane %v303, %v1111
      %v1113 = vlaneseq
      %v1114 = vshrl.u32 %v1113, 7
      %v1115 = vsub.s32 2, %v1114
      %v1116 = vrot.slane %v304, %v1115
      %v1117 = vlaneseq
      %v1118 = vshrl.u32 %v1117, 7
      %v1119 = vsub.s32 6, %v1118
      %v1120 = vrot.slane %v304, %v1119
      %v1121 = vlaneseq
      %v1122 = vshrl.u32 %v1121, 7
      %v1123 = vsub.s32 2, %v1122
      %v1124 = vrot.slane %v305, %v1123
      %v1125 = vlaneseq
      %v1126 = vshrl.u32 %v1125, 7
      %v1127 = vsub.s32 6, %v1126
      %v1128 = vrot.slane %v305, %v1127
      %v1129 = vlaneseq
      %v1130 = vshrl.u32 %v1129, 7
      %v1131 = vsub.s32 2, %v1130
      %v1132 = vrot.slane %v306, %v1131
      %v1133 = vlaneseq
      %v1134 = vshrl.u32 %v1133, 7
      %v1135 = vsub.s32 6, %v1134
      %v1136 = vrot.slane %v306, %v1135
      %v1169 = vlaneseq
      %v1170 = vshrl.u32 %v1169, 7
      %v1171 = vsub.s32 2, %v1170
      %v1172 = vrot.slane %v1012, %v1171
      %v1173 = vlaneseq
      %v1174 = vshrl.u32 %v1173, 7
      %v1175 = vsub.s32 2, %v1174
      %v1176 = vrot.slane %v1016, %v1175
      %v1177 = vlaneseq
      %v1178 = vshrl.u32 %v1177, 7
      %v1179 = vsub.s32 2, %v1178
      %v1180 = vrot.slane %v1020, %v1179
      %v1181 = vlaneseq
      %v1182 = vshrl.u32 %v1181, 7
      %v1183 = vsub.s32 2, %v1182
      %v1184 = vrot.slane %v1024, %v1183
      %v1185 = vlaneseq
      %v1186 = vshrl.u32 %v1185, 7
      %v1187 = vsub.s32 2, %v1186
      %v1188 = vrot.slane %v1028, %v1187
      %v1189 = vlaneseq
      %v1190 = vshrl.u32 %v1189, 7
      %v1191 = vsub.s32 2, %v1190
      %v1192 = vrot.slane %v1032, %v1191
      %v1193 = vlaneseq
      %v1194 = vshrl.u32 %v1193, 7
      %v1195 = vsub.s32 2, %v1194
      %v1196 = vrot.slane %v1036, %v1195
      %v1197 = vlaneseq
      %v1198 = vshrl.u32 %v1197, 7
      %v1199 = vsub.s32 2, %v1198
      %v1200 = vrot.slane %v1040, %v1199
      %v1201 = vlaneseq
      %v1202 = vshrl.u32 %v1201, 7
      %v1203 = vsub.s32 2, %v1202
      %v1204 = vrot.slane %v1044, %v1203
      %v1205 = vlaneseq
      %v1206 = vshrl.u32 %v1205, 7
      %v1207 = vsub.s32 2, %v1206
      %v1208 = vrot.slane %v1048, %v1207
      %v1209 = vlaneseq
      %v1210 = vshrl.u32 %v1209, 7
      %v1211 = vsub.s32 2, %v1210
      %v1212 = vrot.slane %v1052, %v1211
      %v1213 = vlaneseq
      %v1214 = vshrl.u32 %v1213, 7
      %v1215 = vsub.s32 2, %v1214
      %v1216 = vrot.slane %v1056, %v1215
      %v1217 = vlaneseq
      %v1218 = vshrl.u32 %v1217, 7
      %v1219 = vsub.s32 2, %v1218
      %v1220 = vrot.slane %v1060, %v1219
      %v1221 = vlaneseq
      %v1222 = vshrl.u32 %v1221, 7
      %v1223 = vsub.s32 2, %v1222
      %v1224 = vrot.slane %v1064, %v1223
      %v1225 = vlaneseq
      %v1226 = vshrl.u32 %v1225, 7
      %v1227 = vsub.s32 2, %v1226
      %v1228 = vrot.slane %v1068, %v1227
      %v1229 = vlaneseq
      %v1230 = vshrl.u32 %v1229, 7
      %v1231 = vsub.s32 2, %v1230
      %v1232 = vrot.slane %v1072, %v1231
      %v1233 = vlaneseq
      %v1234 = vshrl.u32 %v1233, 7
      %v1235 = vsub.s32 2, %v1234
      %v1236 = vrot.slane %v1076, %v1235
      %v1237 = vlaneseq
      %v1238 = vshrl.u32 %v1237, 7
      %v1239 = vsub.s32 2, %v1238
      %v1240 = vrot.slane %v1080, %v1239
      %v1241 = vlaneseq
      %v1242 = vshrl.u32 %v1241, 7
      %v1243 = vsub.s32 2, %v1242
      %v1244 = vrot.slane %v1084, %v1243
      %v1245 = vlaneseq
      %v1246 = vshrl.u32 %v1245, 7
      %v1247 = vsub.s32 2, %v1246
      %v1248 = vrot.slane %v1088, %v1247
      %v1249 = vlaneseq
      %v1250 = vshrl.u32 %v1249, 7
      %v1251 = vsub.s32 2, %v1250
      %v1252 = vrot.slane %v1092, %v1251
      %v1253 = vlaneseq
      %v1254 = vshrl.u32 %v1253, 7
      %v1255 = vsub.s32 2, %v1254
      %v1256 = vrot.slane %v1096, %v1255
      %v1257 = vlaneseq
      %v1258 = vshrl.u32 %v1257, 7
      %v1259 = vsub.s32 2, %v1258
      %v1260 = vrot.slane %v1100, %v1259
      %v1261 = vlaneseq
      %v1262 = vshrl.u32 %v1261, 7
      %v1263 = vsub.s32 2, %v1262
      %v1264 = vrot.slane %v1104, %v1263
      %v1265 = vlaneseq
      %v1266 = vshrl.u32 %v1265, 7
      %v1267 = vsub.s32 2, %v1266
      %v1268 = vrot.slane %v1108, %v1267
      %v1269 = vlaneseq
      %v1270 = vshrl.u32 %v1269, 7
      %v1271 = vsub.s32 2, %v1270
      %v1272 = vrot.slane %v1112, %v1271
      %v1273 = vlaneseq
      %v1274 = vshrl.u32 %v1273, 7
      %v1275 = vsub.s32 2, %v1274
      %v1276 = vrot.slane %v1116, %v1275
      %v1277 = vlaneseq
      %v1278 = vshrl.u32 %v1277, 7
      %v1279 = vsub.s32 2, %v1278
      %v1280 = vrot.slane %v1120, %v1279
      %v1281 = vlaneseq
      %v1282 = vshrl.u32 %v1281, 7
      %v1283 = vsub.s32 2, %v1282
      %v1284 = vrot.slane %v1124, %v1283
      %v1285 = vlaneseq
      %v1286 = vshrl.u32 %v1285, 7
      %v1287 = vsub.s32 2, %v1286
      %v1288 = vrot.slane %v1128, %v1287
      %v1289 = vlaneseq
      %v1290 = vshrl.u32 %v1289, 7
      %v1291 = vsub.s32 2, %v1290
      %v1292 = vrot.slane %v1132, %v1291
      %v1293 = vlaneseq
      %v1294 = vshrl.u32 %v1293, 7
      %v1295 = vsub.s32 2, %v1294
      %v1296 = vrot.slane %v1136, %v1295
      %v1297 = vmul.f32 %v1007, %v1172
      %v1298 = vmul.f32 %v1007, %v1176
      %v1299 = vmul.f32 %v1007, %v1180
      %v1300 = vmul.f32 %v1007, %v1184
      %v1301 = vmul.f32 %v1007, %v1188
      %v1302 = vmul.f32 %v1007, %v1192
      %v1303 = vmul.f32 %v1007, %v1196
      %v1304 = vmul.f32 %v1007, %v1200
      %v1305 = vmul.f32 %v1007, %v1204
      %v1306 = vmul.f32 %v1007, %v1208
      %v1307 = vmul.f32 %v1007, %v1212
      %v1308 = vmul.f32 %v1007, %v1216
      %v1309 = vmul.f32 %v1007, %v1220
      %v1310 = vmul.f32 %v1007, %v1224
      %v1311 = vmul.f32 %v1007, %v1228
      %v1312 = vmul.f32 %v1007, %v1232
      %v1313 = vmul.f32 %v1007, %v1236
      %v1314 = vmul.f32 %v1007, %v1240
      %v1315 = vmul.f32 %v1007, %v1244
      %v1316 = vmul.f32 %v1007, %v1248
      %v1317 = vmul.f32 %v1007, %v1252
      %v1318 = vmul.f32 %v1007, %v1256
      %v1319 = vmul.f32 %v1007, %v1260
      %v1320 = vmul.f32 %v1007, %v1264
      %v1321 = vmul.f32 %v1007, %v1268
      %v1322 = vmul.f32 %v1007, %v1272
      %v1323 = vmul.f32 %v1007, %v1276
      %v1324 = vmul.f32 %v1007, %v1280
      %v1325 = vmul.f32 %v1007, %v1284
      %v1326 = vmul.f32 %v1007, %v1288
      %v1327 = vmul.f32 %v1007, %v1292
      %v1328 = vmul.f32 %v1007, %v1296
      %v1329 = vadd.f32 %v973, %v1297
      %v1330 = vadd.f32 %v974, %v1298
      %v1331 = vadd.f32 %v975, %v1299
      %v1332 = vadd.f32 %v976, %v1300
      %v1333 = vadd.f32 %v977, %v1301
      %v1334 = vadd.f32 %v978, %v1302
      %v1335 = vadd.f32 %v979, %v1303
      %v1336 = vadd.f32 %v980, %v1304
      %v1337 = vadd.f32 %v981, %v1305
      %v1338 = vadd.f32 %v982, %v1306
      %v1339 = vadd.f32 %v983, %v1307
      %v1340 = vadd.f32 %v984, %v1308
      %v1341 = vadd.f32 %v985, %v1309
      %v1342 = vadd.f32 %v986, %v1310
      %v1343 = vadd.f32 %v987, %v1311
      %v1344 = vadd.f32 %v988, %v1312
      %v1345 = vadd.f32 %v989, %v1313
      %v1346 = vadd.f32 %v990, %v1314
      %v1347 = vadd.f32 %v991, %v1315
      %v1348 = vadd.f32 %v992, %v1316
      %v1349 = vadd.f32 %v993, %v1317
      %v1350 = vadd.f32 %v994, %v1318
      %v1351 = vadd.f32 %v995, %v1319
      %v1352 = vadd.f32 %v996, %v1320
      %v1353 = vadd.f32 %v997, %v1321
      %v1354 = vadd.f32 %v998, %v1322
      %v1355 = vadd.f32 %v999, %v1323
      %v1356 = vadd.f32 %v1000, %v1324
      %v1357 = vadd.f32 %v1001, %v1325
      %v1358 = vadd.f32 %v1002, %v1326
      %v1359 = vadd.f32 %v1003, %v1327
      %v1360 = vadd.f32 %v1004, %v1328
      %v1393 = vcombine.low %v1329, %v1330
      %v1394 = vcombine.low %v1331, %v1332
      %v1395 = vcombine.low %v1333, %v1334
      %v1396 = vcombine.low %v1335, %v1336
      %v1397 = vcombine.low %v1337, %v1338
      %v1398 = vcombine.low %v1339, %v1340
      %v1399 = vcombine.low %v1341, %v1342
      %v1400 = vcombine.low %v1343, %v1344
      %v1401 = vcombine.low %v1345, %v1346
      %v1402 = vcombine.low %v1347, %v1348
      %v1403 = vcombine.low %v1349, %v1350
      %v1404 = vcombine.low %v1351, %v1352
      %v1405 = vcombine.low %v1353, %v1354
      %v1406 = vcombine.low %v1355, %v1356
      %v1407 = vcombine.low %v1357, %v1358
      %v1408 = vcombine.low %v1359, %v1360
      %1425 = vst [vmem:[%s267] sm:$0x77] %v1393
      %1426 = vst [vmem:[%s267 + $0x8] sm:$0x77] %v1394
      %1427 = vst [vmem:[%s267 + $0x10] sm:$0x77] %v1395
      %1428 = vst [vmem:[%s267 + $0x18] sm:$0x77] %v1396
      %1429 = vst [vmem:[%s267 + $0x20] sm:$0x77] %v1397
      %1430 = vst [vmem:[%s267 + $0x28] sm:$0x77] %v1398
      %1431 = vst [vmem:[%s267 + $0x30] sm:$0x77] %v1399
      %1432 = vst [vmem:[%s267 + $0x38] sm:$0x77] %v1400
      %1433 = vst [vmem:[%s267 + $0x40] sm:$0x77] %v1401
      %1434 = vst [vmem:[%s267 + $0x48] sm:$0x77] %v1402
      %1435 = vst [vmem:[%s267 + $0x50] sm:$0x77] %v1403
      %1436 = vst [vmem:[%s267 + $0x58] sm:$0x77] %v1404
      %1437 = vst [vmem:[%s267 + $0x60] sm:$0x77] %v1405
      %1438 = vst [vmem:[%s267 + $0x68] sm:$0x77] %v1406
      %1439 = vst [vmem:[%s267 + $0x70] sm:$0x77] %v1407
      %1440 = vst [vmem:[%s267 + $0x78] sm:$0x77] %v1408
      %v1441 = vld [vmem:[%s2] sm:$0xff]
      %v1442 = vld [vmem:[%s2 + $0x8] sm:$0xff]
      %v1443 = vld [vmem:[%s2 + $0x10] sm:$0xff]
      %v1444 = vld [vmem:[%s2 + $0x18] sm:$0xff]
      %v1445 = vld [vmem:[%s2 + $0x20] sm:$0xff]
      %v1446 = vld [vmem:[%s2 + $0x28] sm:$0xff]
      %v1447 = vld [vmem:[%s2 + $0x30] sm:$0xff]
      %v1448 = vld [vmem:[%s2 + $0x38] sm:$0xff]
      %v1449 = vcombine.high %v291, %v291
      %v1450 = vcombine.high %v292, %v292
      %v1451 = vcombine.high %v293, %v293
      %v1452 = vcombine.high %v294, %v294
      %v1453 = vcombine.high %v295, %v295
      %v1454 = vcombine.high %v296, %v296
      %v1455 = vcombine.high %v297, %v297
      %v1456 = vcombine.high %v298, %v298
      %v1457 = vcombine.high %v299, %v299
      %v1458 = vcombine.high %v300, %v300
      %v1459 = vcombine.high %v301, %v301
      %v1460 = vcombine.high %v302, %v302
      %v1461 = vcombine.high %v303, %v303
      %v1462 = vcombine.high %v304, %v304
      %v1463 = vcombine.high %v305, %v305
      %v1464 = vcombine.high %v306, %v306
      %vm1465 = vcmask 23552
      %v1467 = vsel %vm1465, %v1441, 0
      %v1470 = vsel %vm1465, %v1442, 0
      %v1473 = vsel %vm1465, %v1443, 0
      %v1476 = vsel %vm1465, %v1444, 0
      %v1479 = vsel %vm1465, %v1445, 0
      %v1482 = vsel %vm1465, %v1446, 0
      %v1485 = vsel %vm1465, %v1447, 0
      %v1488 = vsel %vm1465, %v1448, 0
      %vm1490 = vcmask 1042432
      %v1491 = vsel %vm1490, %v291, 0
      %v1493 = vsel %vm1490, %v1449, 0
      %v1495 = vsel %vm1490, %v292, 0
      %v1497 = vsel %vm1490, %v1450, 0
      %v1499 = vsel %vm1490, %v293, 0
      %v1501 = vsel %vm1490, %v1451, 0
      %v1503 = vsel %vm1490, %v294, 0
      %v1505 = vsel %vm1490, %v1452, 0
      %v1507 = vsel %vm1490, %v295, 0
      %v1509 = vsel %vm1490, %v1453, 0
      %v1511 = vsel %vm1490, %v296, 0
      %v1513 = vsel %vm1490, %v1454, 0
      %v1515 = vsel %vm1490, %v297, 0
      %v1517 = vsel %vm1490, %v1455, 0
      %v1519 = vsel %vm1490, %v298, 0
      %v1521 = vsel %vm1490, %v1456, 0
      %v1523 = vsel %vm1490, %v299, 0
      %v1525 = vsel %vm1490, %v1457, 0
      %v1527 = vsel %vm1490, %v300, 0
      %v1529 = vsel %vm1490, %v1458, 0
      %v1531 = vsel %vm1490, %v301, 0
      %v1533 = vsel %vm1490, %v1459, 0
      %v1535 = vsel %vm1490, %v302, 0
      %v1537 = vsel %vm1490, %v1460, 0
      %v1539 = vsel %vm1490, %v303, 0
      %v1541 = vsel %vm1490, %v1461, 0
      %v1543 = vsel %vm1490, %v304, 0
      %v1545 = vsel %vm1490, %v1462, 0
      %v1547 = vsel %vm1490, %v305, 0
      %v1549 = vsel %vm1490, %v1463, 0
      %v1551 = vsel %vm1490, %v306, 0
      %v1553 = vsel %vm1490, %v1464, 0
      %1555 = vmatprep.subr.mxu0 %v1493
      %1556 = vmatpush1.msra.mxu0 %v1491
      %1557 = vmatprep.subr.mxu0 0.0
      %1558 = vmatpush1.msra.mxu0 0.0
      %1559 = vmatprep.subr.mxu0 0.0
      %1560 = vmatpush1.msra.mxu0 0.0
      %1561 = vmatprep.subr.mxu0 0.0
      %1562 = vmatpush1.msra.mxu0 0.0
      %1563 = vmatprep.subr.mxu0 0.0
      %1564 = vmatpush1.msra.mxu0 0.0
      %1565 = vmatprep.subr.mxu0 0.0
      %1566 = vmatpush1.msra.mxu0 0.0
      %1567 = vmatprep.subr.mxu0 0.0
      %1568 = vmatpush1.msra.mxu0 0.0
      %1569 = vmatprep.subr.mxu0 0.0
      %1570 = vmatpush1.msra.mxu0 0.0
      %1571 = vmatprep.subr.mxu0 0.0
      %1572 = vmatpush1.msra.mxu0 0.0
      %1573 = vmatprep.subr.mxu0 0.0
      %1574 = vmatpush1.msra.mxu0 0.0
      %1575 = vmatprep.subr.mxu0 0.0
      %1576 = vmatpush1.msra.mxu0 0.0
      %1577 = vmatprep.subr.mxu0 0.0
      %1578 = vmatpush1.msra.mxu0 0.0
      %1579 = vmatprep.subr.mxu0 0.0
      %1580 = vmatpush1.msra.mxu0 0.0
      %1581 = vmatprep.subr.mxu0 0.0
      %1582 = vmatpush1.msra.mxu0 0.0
      %1583 = vmatprep.subr.mxu0 0.0
      %1584 = vmatpush1.msra.mxu0 0.0
      %1585 = vmatprep.subr.mxu0 0.0
      %1586 = vmatpush1.msra.mxu0 0.0
      %1587 = vmatprep.subr.mxu0 0.0
      %1588 = vmatpush1.msra.mxu0 0.0
      %1589 = vmatprep.subr.mxu0 0.0
      %1590 = vmatpush1.msra.mxu0 0.0
      %1591 = vmatprep.subr.mxu0 0.0
      %1592 = vmatpush1.msra.mxu0 0.0
      %1593 = vmatprep.subr.mxu0 0.0
      %1594 = vmatpush1.msra.mxu0 0.0
      %1595 = vmatprep.subr.mxu0 0.0
      %1596 = vmatpush1.msra.mxu0 0.0
      %1597 = vmatprep.subr.mxu0 0.0
      %1598 = vmatpush1.msra.mxu0 0.0
      %1599 = vmatprep.subr.mxu0 0.0
      %1600 = vmatpush1.msra.mxu0 0.0
      %1601 = vmatprep.subr.mxu0 0.0
      %1602 = vmatpush1.msra.mxu0 0.0
      %1603 = vmatprep.subr.mxu0 0.0
      %1604 = vmatpush1.msra.mxu0 0.0
      %1605 = vmatprep.subr.mxu0 0.0
      %1606 = vmatpush1.msra.mxu0 0.0
      %1607 = vmatprep.subr.mxu0 0.0
      %1608 = vmatpush1.msra.mxu0 0.0
      %1609 = vmatprep.subr.mxu0 0.0
      %1610 = vmatpush1.msra.mxu0 0.0
      %1611 = vmatprep.subr.mxu0 0.0
      %1612 = vmatpush1.msra.mxu0 0.0
      %1613 = vmatprep.subr.mxu0 0.0
      %1614 = vmatpush1.msra.mxu0 0.0
      %1615 = vmatprep.subr.mxu0 0.0
      %1616 = vmatpush1.msra.mxu0 0.0
      %1617 = vmatprep.subr.mxu0 0.0
      %1618 = vmatpush1.msra.mxu0 0.0
      %1619 = vmatprep.mubr.f32.mxu0 0.0
      %1620 = vmatmul.mubr.f32.gmra.mrb[0].mxu0 %v1467
      %v1621 = vpop.f32.mrb[0].mxu0
      %v1622 = vadd.f32 0.0, %v1621
      %v1623 = vpop.f32.mrb[0].mxu0
      %v1624 = vadd.f32 0.0, %v1623
      %1625 = vmatprep.mubr.f32.mxu0 0.0
      %1626 = vmatmul.mubr.f32.gmra.mrb[0].mxu0 %v1470
      %v1627 = vpop.f32.mrb[0].mxu0
      %v1628 = vadd.f32 0.0, %v1627
      %v1629 = vpop.f32.mrb[0].mxu0
      %v1630 = vadd.f32 0.0, %v1629
      %1631 = vmatprep.mubr.f32.mxu0 0.0
      %1632 = vmatmul.mubr.f32.gmra.mrb[0].mxu0 %v1473
      %v1633 = vpop.f32.mrb[0].mxu0
      %v1634 = vadd.f32 0.0, %v1633
      %v1635 = vpop.f32.mrb[0].mxu0
      %v1636 = vadd.f32 0.0, %v1635
      %1637 = vmatprep.mubr.f32.mxu0 0.0
      %1638 = vmatmul.mubr.f32.gmra.mrb[0].mxu0 %v1476
      %v1639 = vpop.f32.mrb[0].mxu0
      %v1640 = vadd.f32 0.0, %v1639
      %v1641 = vpop.f32.mrb[0].mxu0
      %v1642 = vadd.f32 0.0, %v1641
      %1643 = vmatprep.mubr.f32.mxu0 0.0
      %1644 = vmatmul.mubr.f32.gmra.mrb[0].mxu0 %v1479
      %v1645 = vpop.f32.mrb[0].mxu0
      %v1646 = vadd.f32 0.0, %v1645
      %v1647 = vpop.f32.mrb[0].mxu0
      %v1648 = vadd.f32 0.0, %v1647
      %1649 = vmatprep.mubr.f32.mxu0 0.0
      %1650 = vmatmul.mubr.f32.gmra.mrb[0].mxu0 %v1482
      %v1651 = vpop.f32.mrb[0].mxu0
      %v1652 = vadd.f32 0.0, %v1651
      %v1653 = vpop.f32.mrb[0].mxu0
      %v1654 = vadd.f32 0.0, %v1653
      %1655 = vmatprep.mubr.f32.mxu0 0.0
      %1656 = vmatmul.mubr.f32.gmra.mrb[0].mxu0 %v1485
      %v1657 = vpop.f32.mrb[0].mxu0
      %v1658 = vadd.f32 0.0, %v1657
      %v1659 = vpop.f32.mrb[0].mxu0
      %v1660 = vadd.f32 0.0, %v1659
      %1661 = vmatprep.mubr.f32.mxu0 0.0
      %1662 = vmatmul.mubr.f32.gmra.mrb[0].mxu0 %v1488
      %v1663 = vpop.f32.mrb[0].mxu0
      %v1664 = vadd.f32 0.0, %v1663
      %v1665 = vpop.f32.mrb[0].mxu0
      %v1666 = vadd.f32 0.0, %v1665
      %1667 = vdwg.mxu0
      %1668 = vmatprep.subr.mxu0 %v1497
      %1669 = vmatpush1.msra.mxu0 %v1495
      %1670 = vmatprep.subr.mxu0 0.0
      %1671 = vmatpush1.msra.mxu0 0.0
      %1672 = vmatprep.subr.mxu0 0.0
      %1673 = vmatpush1.msra.mxu0 0.0
      %1674 = vmatprep.subr.mxu0 0.0
      %1675 = vmatpush1.msra.mxu0 0.0
      %1676 = vmatprep.subr.mxu0 0.0
      %1677 = vmatpush1.msra.mxu0 0.0
      %1678 = vmatprep.subr.mxu0 0.0
      %1679 = vmatpush1.msra.mxu0 0.0
      %1680 = vmatprep.subr.mxu0 0.0
      %1681 = vmatpush1.msra.mxu0 0.0
      %1682 = vmatprep.subr.mxu0 0.0
      %1683 = vmatpush1.msra.mxu0 0.0
      %1684 = vmatprep.subr.mxu0 0.0
      %1685 = vmatpush1.msra.mxu0 0.0
      %1686 = vmatprep.subr.mxu0 0.0
      %1687 = vmatpush1.msra.mxu0 0.0
      %1688 = vmatprep.subr.mxu0 0.0
      %1689 = vmatpush1.msra.mxu0 0.0
      %1690 = vmatprep.subr.mxu0 0.0
      %1691 = vmatpush1.msra.mxu0 0.0
      %1692 = vmatprep.subr.mxu0 0.0
      %1693 = vmatpush1.msra.mxu0 0.0
      %1694 = vmatprep.subr.mxu0 0.0
      %1695 = vmatpush1.msra.mxu0 0.0
      %1696 = vmatprep.subr.mxu0 0.0
      %1697 = vmatpush1.msra.mxu0 0.0
      %1698 = vmatprep.subr.mxu0 0.0
      %1699 = vmatpush1.msra.mxu0 0.0
      %1700 = vmatprep.subr.mxu0 0.0
      %1701 = vmatpush1.msra.mxu0 0.0
      %1702 = vmatprep.subr.mxu0 0.0
      %1703 = vmatpush1.msra.mxu0 0.0
      %1704 = vmatprep.subr.mxu0 0.0
      %1705 = vmatpush1.msra.mxu0 0.0
      %1706 = vmatprep.subr.mxu0 0.0
      %1707 = vmatpush1.msra.mxu0 0.0
      %1708 = vmatprep.subr.mxu0 0.0
      %1709 = vmatpush1.msra.mxu0 0.0
      %1710 = vmatprep.subr.mxu0 0.0
      %1711 = vmatpush1.msra.mxu0 0.0
      %1712 = vmatprep.subr.mxu0 0.0
      %1713 = vmatpush1.msra.mxu0 0.0
      %1714 = vmatprep.subr.mxu0 0.0
      %1715 = vmatpush1.msra.mxu0 0.0
      %1716 = vmatprep.subr.mxu0 0.0
      %1717 = vmatpush1.msra.mxu0 0.0
      %1718 = vmatprep.subr.mxu0 0.0
      %1719 = vmatpush1.msra.mxu0 0.0
      %1720 = vmatprep.subr.mxu0 0.0
      %1721 = vmatpush1.msra.mxu0 0.0
      %1722 = vmatprep.subr.mxu0 0.0
      %1723 = vmatpush1.msra.mxu0 0.0
      %1724 = vmatprep.subr.mxu0 0.0
      %1725 = vmatpush1.msra.mxu0 0.0
      %1726 = vmatprep.subr.mxu0 0.0
      %1727 = vmatpush1.msra.mxu0 0.0
      %1728 = vmatprep.subr.mxu0 0.0
      %1729 = vmatpush1.msra.mxu0 0.0
      %1730 = vmatprep.subr.mxu0 0.0
      %1731 = vmatpush1.msra.mxu0 0.0
      %1732 = vmatprep.mubr.f32.mxu0 0.0
      %1733 = vmatmul.mubr.f32.gmra.mrb[0].mxu0 %v1467
      %v1734 = vpop.f32.mrb[0].mxu0
      %v1735 = vadd.f32 0.0, %v1734
      %v1736 = vpop.f32.mrb[0].mxu0
      %v1737 = vadd.f32 0.0, %v1736
      %1738 = vmatprep.mubr.f32.mxu0 0.0
      %1739 = vmatmul.mubr.f32.gmra.mrb[0].mxu0 %v1470
      %v1740 = vpop.f32.mrb[0].mxu0
      %v1741 = vadd.f32 0.0, %v1740
      %v1742 = vpop.f32.mrb[0].mxu0
      %v1743 = vadd.f32 0.0, %v1742
      %1744 = vmatprep.mubr.f32.mxu0 0.0
      %1745 = vmatmul.mubr.f32.gmra.mrb[0].mxu0 %v1473
      %v1746 = vpop.f32.mrb[0].mxu0
      %v1747 = vadd.f32 0.0, %v1746
      %v1748 = vpop.f32.mrb[0].mxu0
      %v1749 = vadd.f32 0.0, %v1748
      %1750 = vmatprep.mubr.f32.mxu0 0.0
      %1751 = vmatmul.mubr.f32.gmra.mrb[0].mxu0 %v1476
      %v1752 = vpop.f32.mrb[0].mxu0
      %v1753 = vadd.f32 0.0, %v1752
      %v1754 = vpop.f32.mrb[0].mxu0
      %v1755 = vadd.f32 0.0, %v1754
      %1756 = vmatprep.mubr.f32.mxu0 0.0
      %1757 = vmatmul.mubr.f32.gmra.mrb[0].mxu0 %v1479
      %v1758 = vpop.f32.mrb[0].mxu0
      %v1759 = vadd.f32 0.0, %v1758
      %v1760 = vpop.f32.mrb[0].mxu0
      %v1761 = vadd.f32 0.0, %v1760
      %1762 = vmatprep.mubr.f32.mxu0 0.0
      %1763 = vmatmul.mubr.f32.gmra.mrb[0].mxu0 %v1482
      %v1764 = vpop.f32.mrb[0].mxu0
      %v1765 = vadd.f32 0.0, %v1764
      %v1766 = vpop.f32.mrb[0].mxu0
      %v1767 = vadd.f32 0.0, %v1766
      %1768 = vmatprep.mubr.f32.mxu0 0.0
      %1769 = vmatmul.mubr.f32.gmra.mrb[0].mxu0 %v1485
      %v1770 = vpop.f32.mrb[0].mxu0
      %v1771 = vadd.f32 0.0, %v1770
      %v1772 = vpop.f32.mrb[0].mxu0
      %v1773 = vadd.f32 0.0, %v1772
      %1774 = vmatprep.mubr.f32.mxu0 0.0
      %1775 = vmatmul.mubr.f32.gmra.mrb[0].mxu0 %v1488
      %v1776 = vpop.f32.mrb[0].mxu0
      %v1777 = vadd.f32 0.0, %v1776
      %v1778 = vpop.f32.mrb[0].mxu0
      %v1779 = vadd.f32 0.0, %v1778
      %1780 = vdwg.mxu0
      %1781 = vmatprep.subr.mxu0 %v1501
      %1782 = vmatpush1.msra.mxu0 %v1499
      %1783 = vmatprep.subr.mxu0 0.0
      %1784 = vmatpush1.msra.mxu0 0.0
      %1785 = vmatprep.subr.mxu0 0.0
      %1786 = vmatpush1.msra.mxu0 0.0
      %1787 = vmatprep.subr.mxu0 0.0
      %1788 = vmatpush1.msra.mxu0 0.0
      %1789 = vmatprep.subr.mxu0 0.0
      %1790 = vmatpush1.msra.mxu0 0.0
      %1791 = vmatprep.subr.mxu0 0.0
      %1792 = vmatpush1.msra.mxu0 0.0
      %1793 = vmatprep.subr.mxu0 0.0
      %1794 = vmatpush1.msra.mxu0 0.0
      %1795 = vmatprep.subr.mxu0 0.0
      %1796 = vmatpush1.msra.mxu0 0.0
      %1797 = vmatprep.subr.mxu0 0.0
      %1798 = vmatpush1.msra.mxu0 0.0
      %1799 = vmatprep.subr.mxu0 0.0
      %1800 = vmatpush1.msra.mxu0 0.0
      %1801 = vmatprep.subr.mxu0 0.0
      %1802 = vmatpush1.msra.mxu0 0.0
      %1803 = vmatprep.subr.mxu0 0.0
      %1804 = vmatpush1.msra.mxu0 0.0
      %1805 = vmatprep.subr.mxu0 0.0
      %1806 = vmatpush1.msra.mxu0 0.0
      %1807 = vmatprep.subr.mxu0 0.0
      %1808 = vmatpush1.msra.mxu0 0.0
      %1809 = vmatprep.subr.mxu0 0.0
      %1810 = vmatpush1.msra.mxu0 0.0
      %1811 = vmatprep.subr.mxu0 0.0
      %1812 = vmatpush1.msra.mxu0 0.0
      %1813 = vmatprep.subr.mxu0 0.0
      %1814 = vmatpush1.msra.mxu0 0.0
      %1815 = vmatprep.subr.mxu0 0.0
      %1816 = vmatpush1.msra.mxu0 0.0
      %1817 = vmatprep.subr.mxu0 0.0
      %1818 = vmatpush1.msra.mxu0 0.0
      %1819 = vmatprep.subr.mxu0 0.0
      %1820 = vmatpush1.msra.mxu0 0.0
      %1821 = vmatprep.subr.mxu0 0.0
      %1822 = vmatpush1.msra.mxu0 0.0
      %1823 = vmatprep.subr.mxu0 0.0
      %1824 = vmatpush1.msra.mxu0 0.0
      %1825 = vmatprep.subr.mxu0 0.0
      %1826 = vmatpush1.msra.mxu0 0.0
      %1827 = vmatprep.subr.mxu0 0.0
      %1828 = vmatpush1.msra.mxu0 0.0
      %1829 = vmatprep.subr.mxu0 0.0
      %1830 = vmatpush1.msra.mxu0 0.0
      %1831 = vmatprep.subr.mxu0 0.0
      %1832 = vmatpush1.msra.mxu0 0.0
      %1833 = vmatprep.subr.mxu0 0.0
      %1834 = vmatpush1.msra.mxu0 0.0
      %1835 = vmatprep.subr.mxu0 0.0
      %1836 = vmatpush1.msra.mxu0 0.0
      %1837 = vmatprep.subr.mxu0 0.0
      %1838 = vmatpush1.msra.mxu0 0.0
      %1839 = vmatprep.subr.mxu0 0.0
      %1840 = vmatpush1.msra.mxu0 0.0
      %1841 = vmatprep.subr.mxu0 0.0
      %1842 = vmatpush1.msra.mxu0 0.0
      %1843 = vmatprep.subr.mxu0 0.0
      %1844 = vmatpush1.msra.mxu0 0.0
      %1845 = vmatprep.mubr.f32.mxu0 0.0
      %1846 = vmatmul.mubr.f32.gmra.mrb[0].mxu0 %v1467
      %v1847 = vpop.f32.mrb[0].mxu0
      %v1848 = vadd.f32 0.0, %v1847
      %v1849 = vpop.f32.mrb[0].mxu0
      %v1850 = vadd.f32 0.0, %v1849
      %1851 = vmatprep.mubr.f32.mxu0 0.0
      %1852 = vmatmul.mubr.f32.gmra.mrb[0].mxu0 %v1470
      %v1853 = vpop.f32.mrb[0].mxu0
      %v1854 = vadd.f32 0.0, %v1853
      %v1855 = vpop.f32.mrb[0].mxu0
      %v1856 = vadd.f32 0.0, %v1855
      %1857 = vmatprep.mubr.f32.mxu0 0.0
      %1858 = vmatmul.mubr.f32.gmra.mrb[0].mxu0 %v1473
      %v1859 = vpop.f32.mrb[0].mxu0
      %v1860 = vadd.f32 0.0, %v1859
      %v1861 = vpop.f32.mrb[0].mxu0
      %v1862 = vadd.f32 0.0, %v1861
      %1863 = vmatprep.mubr.f32.mxu0 0.0
      %1864 = vmatmul.mubr.f32.gmra.mrb[0].mxu0 %v1476
      %v1865 = vpop.f32.mrb[0].mxu0
      %v1866 = vadd.f32 0.0, %v1865
      %v1867 = vpop.f32.mrb[0].mxu0
      %v1868 = vadd.f32 0.0, %v1867
      %1869 = vmatprep.mubr.f32.mxu0 0.0
      %1870 = vmatmul.mubr.f32.gmra.mrb[0].mxu0 %v1479
      %v1871 = vpop.f32.mrb[0].mxu0
      %v1872 = vadd.f32 0.0, %v1871
      %v1873 = vpop.f32.mrb[0].mxu0
      %v1874 = vadd.f32 0.0, %v1873
      %1875 = vmatprep.mubr.f32.mxu0 0.0
      %1876 = vmatmul.mubr.f32.gmra.mrb[0].mxu0 %v1482
      %v1877 = vpop.f32.mrb[0].mxu0
      %v1878 = vadd.f32 0.0, %v1877
      %v1879 = vpop.f32.mrb[0].mxu0
      %v1880 = vadd.f32 0.0, %v1879
      %1881 = vmatprep.mubr.f32.mxu0 0.0
      %1882 = vmatmul.mubr.f32.gmra.mrb[0].mxu0 %v1485
      %v1883 = vpop.f32.mrb[0].mxu0
      %v1884 = vadd.f32 0.0, %v1883
      %v1885 = vpop.f32.mrb[0].mxu0
      %v1886 = vadd.f32 0.0, %v1885
      %1887 = vmatprep.mubr.f32.mxu0 0.0
      %1888 = vmatmul.mubr.f32.gmra.mrb[0].mxu0 %v1488
      %v1889 = vpop.f32.mrb[0].mxu0
      %v1890 = vadd.f32 0.0, %v1889
      %v1891 = vpop.f32.mrb[0].mxu0
      %v1892 = vadd.f32 0.0, %v1891
      %1893 = vdwg.mxu0
      %1894 = vmatprep.subr.mxu0 %v1505
      %1895 = vmatpush1.msra.mxu0 %v1503
      %1896 = vmatprep.subr.mxu0 0.0
      %1897 = vmatpush1.msra.mxu0 0.0
      %1898 = vmatprep.subr.mxu0 0.0
      %1899 = vmatpush1.msra.mxu0 0.0
      %1900 = vmatprep.subr.mxu0 0.0
      %1901 = vmatpush1.msra.mxu0 0.0
      %1902 = vmatprep.subr.mxu0 0.0
      %1903 = vmatpush1.msra.mxu0 0.0
      %1904 = vmatprep.subr.mxu0 0.0
      %1905 = vmatpush1.msra.mxu0 0.0
      %1906 = vmatprep.subr.mxu0 0.0
      %1907 = vmatpush1.msra.mxu0 0.0
      %1908 = vmatprep.subr.mxu0 0.0
      %1909 = vmatpush1.msra.mxu0 0.0
      %1910 = vmatprep.subr.mxu0 0.0
      %1911 = vmatpush1.msra.mxu0 0.0
      %1912 = vmatprep.subr.mxu0 0.0
      %1913 = vmatpush1.msra.mxu0 0.0
      %1914 = vmatprep.subr.mxu0 0.0
      %1915 = vmatpush1.msra.mxu0 0.0
      %1916 = vmatprep.subr.mxu0 0.0
      %1917 = vmatpush1.msra.mxu0 0.0
      %1918 = vmatprep.subr.mxu0 0.0
      %1919 = vmatpush1.msra.mxu0 0.0
      %1920 = vmatprep.subr.mxu0 0.0
      %1921 = vmatpush1.msra.mxu0 0.0
      %1922 = vmatprep.subr.mxu0 0.0
      %1923 = vmatpush1.msra.mxu0 0.0
      %1924 = vmatprep.subr.mxu0 0.0
      %1925 = vmatpush1.msra.mxu0 0.0
      %1926 = vmatprep.subr.mxu0 0.0
      %1927 = vmatpush1.msra.mxu0 0.0
      %1928 = vmatprep.subr.mxu0 0.0
      %1929 = vmatpush1.msra.mxu0 0.0
      %1930 = vmatprep.subr.mxu0 0.0
      %1931 = vmatpush1.msra.mxu0 0.0
      %1932 = vmatprep.subr.mxu0 0.0
      %1933 = vmatpush1.msra.mxu0 0.0
      %1934 = vmatprep.subr.mxu0 0.0
      %1935 = vmatpush1.msra.mxu0 0.0
      %1936 = vmatprep.subr.mxu0 0.0
      %1937 = vmatpush1.msra.mxu0 0.0
      %1938 = vmatprep.subr.mxu0 0.0
      %1939 = vmatpush1.msra.mxu0 0.0
      %1940 = vmatprep.subr.mxu0 0.0
      %1941 = vmatpush1.msra.mxu0 0.0
      %1942 = vmatprep.subr.mxu0 0.0
      %1943 = vmatpush1.msra.mxu0 0.0
      %1944 = vmatprep.subr.mxu0 0.0
      %1945 = vmatpush1.msra.mxu0 0.0
      %1946 = vmatprep.subr.mxu0 0.0
      %1947 = vmatpush1.msra.mxu0 0.0
      %1948 = vmatprep.subr.mxu0 0.0
      %1949 = vmatpush1.msra.mxu0 0.0
      %1950 = vmatprep.subr.mxu0 0.0
      %1951 = vmatpush1.msra.mxu0 0.0
      %1952 = vmatprep.subr.mxu0 0.0
      %1953 = vmatpush1.msra.mxu0 0.0
      %1954 = vmatprep.subr.mxu0 0.0
      %1955 = vmatpush1.msra.mxu0 0.0
      %1956 = vmatprep.subr.mxu0 0.0
      %1957 = vmatpush1.msra.mxu0 0.0
      %1958 = vmatprep.mubr.f32.mxu0 0.0
      %1959 = vmatmul.mubr.f32.gmra.mrb[0].mxu0 %v1467
      %v1960 = vpop.f32.mrb[0].mxu0
      %v1961 = vadd.f32 0.0, %v1960
      %v1962 = vpop.f32.mrb[0].mxu0
      %v1963 = vadd.f32 0.0, %v1962
      %1964 = vmatprep.mubr.f32.mxu0 0.0
      %1965 = vmatmul.mubr.f32.gmra.mrb[0].mxu0 %v1470
      %v1966 = vpop.f32.mrb[0].mxu0
      %v1967 = vadd.f32 0.0, %v1966
      %v1968 = vpop.f32.mrb[0].mxu0
      %v1969 = vadd.f32 0.0, %v1968
      %1970 = vmatprep.mubr.f32.mxu0 0.0
      %1971 = vmatmul.mubr.f32.gmra.mrb[0].mxu0 %v1473
      %v1972 = vpop.f32.mrb[0].mxu0
      %v1973 = vadd.f32 0.0, %v1972
      %v1974 = vpop.f32.mrb[0].mxu0
      %v1975 = vadd.f32 0.0, %v1974
      %1976 = vmatprep.mubr.f32.mxu0 0.0
      %1977 = vmatmul.mubr.f32.gmra.mrb[0].mxu0 %v1476
      %v1978 = vpop.f32.mrb[0].mxu0
      %v1979 = vadd.f32 0.0, %v1978
      %v1980 = vpop.f32.mrb[0].mxu0
      %v1981 = vadd.f32 0.0, %v1980
      %1982 = vmatprep.mubr.f32.mxu0 0.0
      %1983 = vmatmul.mubr.f32.gmra.mrb[0].mxu0 %v1479
      %v1984 = vpop.f32.mrb[0].mxu0
      %v1985 = vadd.f32 0.0, %v1984
      %v1986 = vpop.f32.mrb[0].mxu0
      %v1987 = vadd.f32 0.0, %v1986
      %1988 = vmatprep.mubr.f32.mxu0 0.0
      %1989 = vmatmul.mubr.f32.gmra.mrb[0].mxu0 %v1482
      %v1990 = vpop.f32.mrb[0].mxu0
      %v1991 = vadd.f32 0.0, %v1990
      %v1992 = vpop.f32.mrb[0].mxu0
      %v1993 = vadd.f32 0.0, %v1992
      %1994 = vmatprep.mubr.f32.mxu0 0.0
      %1995 = vmatmul.mubr.f32.gmra.mrb[0].mxu0 %v1485
      %v1996 = vpop.f32.mrb[0].mxu0
      %v1997 = vadd.f32 0.0, %v1996
      %v1998 = vpop.f32.mrb[0].mxu0
      %v1999 = vadd.f32 0.0, %v1998
      %2000 = vmatprep.mubr.f32.mxu0 0.0
      %2001 = vmatmul.mubr.f32.gmra.mrb[0].mxu0 %v1488
      %v2002 = vpop.f32.mrb[0].mxu0
      %v2003 = vadd.f32 0.0, %v2002
      %v2004 = vpop.f32.mrb[0].mxu0
      %v2005 = vadd.f32 0.0, %v2004
      %2006 = vdwg.mxu0
      %2007 = vmatprep.subr.mxu0 %v1509
      %2008 = vmatpush1.msra.mxu0 %v1507
      %2009 = vmatprep.subr.mxu0 0.0
      %2010 = vmatpush1.msra.mxu0 0.0
      %2011 = vmatprep.subr.mxu0 0.0
      %2012 = vmatpush1.msra.mxu0 0.0
      %2013 = vmatprep.subr.mxu0 0.0
      %2014 = vmatpush1.msra.mxu0 0.0
      %2015 = vmatprep.subr.mxu0 0.0
      %2016 = vmatpush1.msra.mxu0 0.0
      %2017 = vmatprep.subr.mxu0 0.0
      %2018 = vmatpush1.msra.mxu0 0.0
      %2019 = vmatprep.subr.mxu0 0.0
      %2020 = vmatpush1.msra.mxu0 0.0
      %2021 = vmatprep.subr.mxu0 0.0
      %2022 = vmatpush1.msra.mxu0 0.0
      %2023 = vmatprep.subr.mxu0 0.0
      %2024 = vmatpush1.msra.mxu0 0.0
      %2025 = vmatprep.subr.mxu0 0.0
      %2026 = vmatpush1.msra.mxu0 0.0
      %2027 = vmatprep.subr.mxu0 0.0
      %2028 = vmatpush1.msra.mxu0 0.0
      %2029 = vmatprep.subr.mxu0 0.0
      %2030 = vmatpush1.msra.mxu0 0.0
      %2031 = vmatprep.subr.mxu0 0.0
      %2032 = vmatpush1.msra.mxu0 0.0
      %2033 = vmatprep.subr.mxu0 0.0
      %2034 = vmatpush1.msra.mxu0 0.0
      %2035 = vmatprep.subr.mxu0 0.0
      %2036 = vmatpush1.msra.mxu0 0.0
      %2037 = vmatprep.subr.mxu0 0.0
      %2038 = vmatpush1.msra.mxu0 0.0
      %2039 = vmatprep.subr.mxu0 0.0
      %2040 = vmatpush1.msra.mxu0 0.0
      %2041 = vmatprep.subr.mxu0 0.0
      %2042 = vmatpush1.msra.mxu0 0.0
      %2043 = vmatprep.subr.mxu0 0.0
      %2044 = vmatpush1.msra.mxu0 0.0
      %2045 = vmatprep.subr.mxu0 0.0
      %2046 = vmatpush1.msra.mxu0 0.0
      %2047 = vmatprep.subr.mxu0 0.0
      %2048 = vmatpush1.msra.mxu0 0.0
      %2049 = vmatprep.subr.mxu0 0.0
      %2050 = vmatpush1.msra.mxu0 0.0
      %2051 = vmatprep.subr.mxu0 0.0
      %2052 = vmatpush1.msra.mxu0 0.0
      %2053 = vmatprep.subr.mxu0 0.0
      %2054 = vmatpush1.msra.mxu0 0.0
      %2055 = vmatprep.subr.mxu0 0.0
      %2056 = vmatpush1.msra.mxu0 0.0
      %2057 = vmatprep.subr.mxu0 0.0
      %2058 = vmatpush1.msra.mxu0 0.0
      %2059 = vmatprep.subr.mxu0 0.0
      %2060 = vmatpush1.msra.mxu0 0.0
      %2061 = vmatprep.subr.mxu0 0.0
      %2062 = vmatpush1.msra.mxu0 0.0
      %2063 = vmatprep.subr.mxu0 0.0
      %2064 = vmatpush1.msra.mxu0 0.0
      %2065 = vmatprep.subr.mxu0 0.0
      %2066 = vmatpush1.msra.mxu0 0.0
      %2067 = vmatprep.subr.mxu0 0.0
      %2068 = vmatpush1.msra.mxu0 0.0
      %2069 = vmatprep.subr.mxu0 0.0
      %2070 = vmatpush1.msra.mxu0 0.0
      %2071 = vmatprep.mubr.f32.mxu0 0.0
      %2072 = vmatmul.mubr.f32.gmra.mrb[0].mxu0 %v1467
      %v2073 = vpop.f32.mrb[0].mxu0
      %v2074 = vadd.f32 0.0, %v2073
      %v2075 = vpop.f32.mrb[0].mxu0
      %v2076 = vadd.f32 0.0, %v2075
      %2077 = vmatprep.mubr.f32.mxu0 0.0
      %2078 = vmatmul.mubr.f32.gmra.mrb[0].mxu0 %v1470
      %v2079 = vpop.f32.mrb[0].mxu0
      %v2080 = vadd.f32 0.0, %v2079
      %v2081 = vpop.f32.mrb[0].mxu0
      %v2082 = vadd.f32 0.0, %v2081
      %2083 = vmatprep.mubr.f32.mxu0 0.0
      %2084 = vmatmul.mubr.f32.gmra.mrb[0].mxu0 %v1473
      %v2085 = vpop.f32.mrb[0].mxu0
      %v2086 = vadd.f32 0.0, %v2085
      %v2087 = vpop.f32.mrb[0].mxu0
      %v2088 = vadd.f32 0.0, %v2087
      %2089 = vmatprep.mubr.f32.mxu0 0.0
      %2090 = vmatmul.mubr.f32.gmra.mrb[0].mxu0 %v1476
      %v2091 = vpop.f32.mrb[0].mxu0
      %v2092 = vadd.f32 0.0, %v2091
      %v2093 = vpop.f32.mrb[0].mxu0
      %v2094 = vadd.f32 0.0, %v2093
      %2095 = vmatprep.mubr.f32.mxu0 0.0
      %2096 = vmatmul.mubr.f32.gmra.mrb[0].mxu0 %v1479
      %v2097 = vpop.f32.mrb[0].mxu0
      %v2098 = vadd.f32 0.0, %v2097
      %v2099 = vpop.f32.mrb[0].mxu0
      %v2100 = vadd.f32 0.0, %v2099
      %2101 = vmatprep.mubr.f32.mxu0 0.0
      %2102 = vmatmul.mubr.f32.gmra.mrb[0].mxu0 %v1482
      %v2103 = vpop.f32.mrb[0].mxu0
      %v2104 = vadd.f32 0.0, %v2103
      %v2105 = vpop.f32.mrb[0].mxu0
      %v2106 = vadd.f32 0.0, %v2105
      %2107 = vmatprep.mubr.f32.mxu0 0.0
      %2108 = vmatmul.mubr.f32.gmra.mrb[0].mxu0 %v1485
      %v2109 = vpop.f32.mrb[0].mxu0
      %v2110 = vadd.f32 0.0, %v2109
      %v2111 = vpop.f32.mrb[0].mxu0
      %v2112 = vadd.f32 0.0, %v2111
      %2113 = vmatprep.mubr.f32.mxu0 0.0
      %2114 = vmatmul.mubr.f32.gmra.mrb[0].mxu0 %v1488
      %v2115 = vpop.f32.mrb[0].mxu0
      %v2116 = vadd.f32 0.0, %v2115
      %v2117 = vpop.f32.mrb[0].mxu0
      %v2118 = vadd.f32 0.0, %v2117
      %2119 = vdwg.mxu0
      %2120 = vmatprep.subr.mxu0 %v1513
      %2121 = vmatpush1.msra.mxu0 %v1511
      %2122 = vmatprep.subr.mxu0 0.0
      %2123 = vmatpush1.msra.mxu0 0.0
      %2124 = vmatprep.subr.mxu0 0.0
      %2125 = vmatpush1.msra.mxu0 0.0
      %2126 = vmatprep.subr.mxu0 0.0
      %2127 = vmatpush1.msra.mxu0 0.0
      %2128 = vmatprep.subr.mxu0 0.0
      %2129 = vmatpush1.msra.mxu0 0.0
      %2130 = vmatprep.subr.mxu0 0.0
      %2131 = vmatpush1.msra.mxu0 0.0
      %2132 = vmatprep.subr.mxu0 0.0
      %2133 = vmatpush1.msra.mxu0 0.0
      %2134 = vmatprep.subr.mxu0 0.0
      %2135 = vmatpush1.msra.mxu0 0.0
      %2136 = vmatprep.subr.mxu0 0.0
      %2137 = vmatpush1.msra.mxu0 0.0
      %2138 = vmatprep.subr.mxu0 0.0
      %2139 = vmatpush1.msra.mxu0 0.0
      %2140 = vmatprep.subr.mxu0 0.0
      %2141 = vmatpush1.msra.mxu0 0.0
      %2142 = vmatprep.subr.mxu0 0.0
      %2143 = vmatpush1.msra.mxu0 0.0
      %2144 = vmatprep.subr.mxu0 0.0
      %2145 = vmatpush1.msra.mxu0 0.0
      %2146 = vmatprep.subr.mxu0 0.0
      %2147 = vmatpush1.msra.mxu0 0.0
      %2148 = vmatprep.subr.mxu0 0.0
      %2149 = vmatpush1.msra.mxu0 0.0
      %2150 = vmatprep.subr.mxu0 0.0
      %2151 = vmatpush1.msra.mxu0 0.0
      %2152 = vmatprep.subr.mxu0 0.0
      %2153 = vmatpush1.msra.mxu0 0.0
      %2154 = vmatprep.subr.mxu0 0.0
      %2155 = vmatpush1.msra.mxu0 0.0
      %2156 = vmatprep.subr.mxu0 0.0
      %2157 = vmatpush1.msra.mxu0 0.0
      %2158 = vmatprep.subr.mxu0 0.0
      %2159 = vmatpush1.msra.mxu0 0.0
      %2160 = vmatprep.subr.mxu0 0.0
      %2161 = vmatpush1.msra.mxu0 0.0
      %2162 = vmatprep.subr.mxu0 0.0
      %2163 = vmatpush1.msra.mxu0 0.0
      %2164 = vmatprep.subr.mxu0 0.0
      %2165 = vmatpush1.msra.mxu0 0.0
      %2166 = vmatprep.subr.mxu0 0.0
      %2167 = vmatpush1.msra.mxu0 0.0
      %2168 = vmatprep.subr.mxu0 0.0
      %2169 = vmatpush1.msra.mxu0 0.0
      %2170 = vmatprep.subr.mxu0 0.0
      %2171 = vmatpush1.msra.mxu0 0.0
      %2172 = vmatprep.subr.mxu0 0.0
      %2173 = vmatpush1.msra.mxu0 0.0
      %2174 = vmatprep.subr.mxu0 0.0
      %2175 = vmatpush1.msra.mxu0 0.0
      %2176 = vmatprep.subr.mxu0 0.0
      %2177 = vmatpush1.msra.mxu0 0.0
      %2178 = vmatprep.subr.mxu0 0.0
      %2179 = vmatpush1.msra.mxu0 0.0
      %2180 = vmatprep.subr.mxu0 0.0
      %2181 = vmatpush1.msra.mxu0 0.0
      %2182 = vmatprep.subr.mxu0 0.0
      %2183 = vmatpush1.msra.mxu0 0.0
      %2184 = vmatprep.mubr.f32.mxu0 0.0
      %2185 = vmatmul.mubr.f32.gmra.mrb[0].mxu0 %v1467
      %v2186 = vpop.f32.mrb[0].mxu0
      %v2187 = vadd.f32 0.0, %v2186
      %v2188 = vpop.f32.mrb[0].mxu0
      %v2189 = vadd.f32 0.0, %v2188
      %2190 = vmatprep.mubr.f32.mxu0 0.0
      %2191 = vmatmul.mubr.f32.gmra.mrb[0].mxu0 %v1470
      %v2192 = vpop.f32.mrb[0].mxu0
      %v2193 = vadd.f32 0.0, %v2192
      %v2194 = vpop.f32.mrb[0].mxu0
      %v2195 = vadd.f32 0.0, %v2194
      %2196 = vmatprep.mubr.f32.mxu0 0.0
      %2197 = vmatmul.mubr.f32.gmra.mrb[0].mxu0 %v1473
      %v2198 = vpop.f32.mrb[0].mxu0
      %v2199 = vadd.f32 0.0, %v2198
      %v2200 = vpop.f32.mrb[0].mxu0
      %v2201 = vadd.f32 0.0, %v2200
      %2202 = vmatprep.mubr.f32.mxu0 0.0
      %2203 = vmatmul.mubr.f32.gmra.mrb[0].mxu0 %v1476
      %v2204 = vpop.f32.mrb[0].mxu0
      %v2205 = vadd.f32 0.0, %v2204
      %v2206 = vpop.f32.mrb[0].mxu0
      %v2207 = vadd.f32 0.0, %v2206
      %2208 = vmatprep.mubr.f32.mxu0 0.0
      %2209 = vmatmul.mubr.f32.gmra.mrb[0].mxu0 %v1479
      %v2210 = vpop.f32.mrb[0].mxu0
      %v2211 = vadd.f32 0.0, %v2210
      %v2212 = vpop.f32.mrb[0].mxu0
      %v2213 = vadd.f32 0.0, %v2212
      %2214 = vmatprep.mubr.f32.mxu0 0.0
      %2215 = vmatmul.mubr.f32.gmra.mrb[0].mxu0 %v1482
      %v2216 = vpop.f32.mrb[0].mxu0
      %v2217 = vadd.f32 0.0, %v2216
      %v2218 = vpop.f32.mrb[0].mxu0
      %v2219 = vadd.f32 0.0, %v2218
      %2220 = vmatprep.mubr.f32.mxu0 0.0
      %2221 = vmatmul.mubr.f32.gmra.mrb[0].mxu0 %v1485
      %v2222 = vpop.f32.mrb[0].mxu0
      %v2223 = vadd.f32 0.0, %v2222
      %v2224 = vpop.f32.mrb[0].mxu0
      %v2225 = vadd.f32 0.0, %v2224
      %2226 = vmatprep.mubr.f32.mxu0 0.0
      %2227 = vmatmul.mubr.f32.gmra.mrb[0].mxu0 %v1488
      %v2228 = vpop.f32.mrb[0].mxu0
      %v2229 = vadd.f32 0.0, %v2228
      %v2230 = vpop.f32.mrb[0].mxu0
      %v2231 = vadd.f32 0.0, %v2230
      %2232 = vdwg.mxu0
      %2233 = vmatprep.subr.mxu0 %v1517
      %2234 = vmatpush1.msra.mxu0 %v1515
      %2235 = vmatprep.subr.mxu0 0.0
      %2236 = vmatpush1.msra.mxu0 0.0
      %2237 = vmatprep.subr.mxu0 0.0
      %2238 = vmatpush1.msra.mxu0 0.0
      %2239 = vmatprep.subr.mxu0 0.0
      %2240 = vmatpush1.msra.mxu0 0.0
      %2241 = vmatprep.subr.mxu0 0.0
      %2242 = vmatpush1.msra.mxu0 0.0
      %2243 = vmatprep.subr.mxu0 0.0
      %2244 = vmatpush1.msra.mxu0 0.0
      %2245 = vmatprep.subr.mxu0 0.0
      %2246 = vmatpush1.msra.mxu0 0.0
      %2247 = vmatprep.subr.mxu0 0.0
      %2248 = vmatpush1.msra.mxu0 0.0
      %2249 = vmatprep.subr.mxu0 0.0
      %2250 = vmatpush1.msra.mxu0 0.0
      %2251 = vmatprep.subr.mxu0 0.0
      %2252 = vmatpush1.msra.mxu0 0.0
      %2253 = vmatprep.subr.mxu0 0.0
      %2254 = vmatpush1.msra.mxu0 0.0
      %2255 = vmatprep.subr.mxu0 0.0
      %2256 = vmatpush1.msra.mxu0 0.0
      %2257 = vmatprep.subr.mxu0 0.0
      %2258 = vmatpush1.msra.mxu0 0.0
      %2259 = vmatprep.subr.mxu0 0.0
      %2260 = vmatpush1.msra.mxu0 0.0
      %2261 = vmatprep.subr.mxu0 0.0
      %2262 = vmatpush1.msra.mxu0 0.0
      %2263 = vmatprep.subr.mxu0 0.0
      %2264 = vmatpush1.msra.mxu0 0.0
      %2265 = vmatprep.subr.mxu0 0.0
      %2266 = vmatpush1.msra.mxu0 0.0
      %2267 = vmatprep.subr.mxu0 0.0
      %2268 = vmatpush1.msra.mxu0 0.0
      %2269 = vmatprep.subr.mxu0 0.0
      %2270 = vmatpush1.msra.mxu0 0.0
      %2271 = vmatprep.subr.mxu0 0.0
      %2272 = vmatpush1.msra.mxu0 0.0
      %2273 = vmatprep.subr.mxu0 0.0
      %2274 = vmatpush1.msra.mxu0 0.0
      %2275 = vmatprep.subr.mxu0 0.0
      %2276 = vmatpush1.msra.mxu0 0.0
      %2277 = vmatprep.subr.mxu0 0.0
      %2278 = vmatpush1.msra.mxu0 0.0
      %2279 = vmatprep.subr.mxu0 0.0
      %2280 = vmatpush1.msra.mxu0 0.0
      %2281 = vmatprep.subr.mxu0 0.0
      %2282 = vmatpush1.msra.mxu0 0.0
      %2283 = vmatprep.subr.mxu0 0.0
      %2284 = vmatpush1.msra.mxu0 0.0
      %2285 = vmatprep.subr.mxu0 0.0
      %2286 = vmatpush1.msra.mxu0 0.0
      %2287 = vmatprep.subr.mxu0 0.0
      %2288 = vmatpush1.msra.mxu0 0.0
      %2289 = vmatprep.subr.mxu0 0.0
      %2290 = vmatpush1.msra.mxu0 0.0
      %2291 = vmatprep.subr.mxu0 0.0
      %2292 = vmatpush1.msra.mxu0 0.0
      %2293 = vmatprep.subr.mxu0 0.0
      %2294 = vmatpush1.msra.mxu0 0.0
      %2295 = vmatprep.subr.mxu0 0.0
      %2296 = vmatpush1.msra.mxu0 0.0
      %2297 = vmatprep.mubr.f32.mxu0 0.0
      %2298 = vmatmul.mubr.f32.gmra.mrb[0].mxu0 %v1467
      %v2299 = vpop.f32.mrb[0].mxu0
      %v2300 = vadd.f32 0.0, %v2299
      %v2301 = vpop.f32.mrb[0].mxu0
      %v2302 = vadd.f32 0.0, %v2301
      %2303 = vmatprep.mubr.f32.mxu0 0.0
      %2304 = vmatmul.mubr.f32.gmra.mrb[0].mxu0 %v1470
      %v2305 = vpop.f32.mrb[0].mxu0
      %v2306 = vadd.f32 0.0, %v2305
      %v2307 = vpop.f32.mrb[0].mxu0
      %v2308 = vadd.f32 0.0, %v2307
      %2309 = vmatprep.mubr.f32.mxu0 0.0
      %2310 = vmatmul.mubr.f32.gmra.mrb[0].mxu0 %v1473
      %v2311 = vpop.f32.mrb[0].mxu0
      %v2312 = vadd.f32 0.0, %v2311
      %v2313 = vpop.f32.mrb[0].mxu0
      %v2314 = vadd.f32 0.0, %v2313
      %2315 = vmatprep.mubr.f32.mxu0 0.0
      %2316 = vmatmul.mubr.f32.gmra.mrb[0].mxu0 %v1476
      %v2317 = vpop.f32.mrb[0].mxu0
      %v2318 = vadd.f32 0.0, %v2317
      %v2319 = vpop.f32.mrb[0].mxu0
      %v2320 = vadd.f32 0.0, %v2319
      %2321 = vmatprep.mubr.f32.mxu0 0.0
      %2322 = vmatmul.mubr.f32.gmra.mrb[0].mxu0 %v1479
      %v2323 = vpop.f32.mrb[0].mxu0
      %v2324 = vadd.f32 0.0, %v2323
      %v2325 = vpop.f32.mrb[0].mxu0
      %v2326 = vadd.f32 0.0, %v2325
      %2327 = vmatprep.mubr.f32.mxu0 0.0
      %2328 = vmatmul.mubr.f32.gmra.mrb[0].mxu0 %v1482
      %v2329 = vpop.f32.mrb[0].mxu0
      %v2330 = vadd.f32 0.0, %v2329
      %v2331 = vpop.f32.mrb[0].mxu0
      %v2332 = vadd.f32 0.0, %v2331
      %2333 = vmatprep.mubr.f32.mxu0 0.0
      %2334 = vmatmul.mubr.f32.gmra.mrb[0].mxu0 %v1485
      %v2335 = vpop.f32.mrb[0].mxu0
      %v2336 = vadd.f32 0.0, %v2335
      %v2337 = vpop.f32.mrb[0].mxu0
      %v2338 = vadd.f32 0.0, %v2337
      %2339 = vmatprep.mubr.f32.mxu0 0.0
      %2340 = vmatmul.mubr.f32.gmra.mrb[0].mxu0 %v1488
      %v2341 = vpop.f32.mrb[0].mxu0
      %v2342 = vadd.f32 0.0, %v2341
      %v2343 = vpop.f32.mrb[0].mxu0
      %v2344 = vadd.f32 0.0, %v2343
      %2345 = vdwg.mxu0
      %2346 = vmatprep.subr.mxu0 %v1521
      %2347 = vmatpush1.msra.mxu0 %v1519
      %2348 = vmatprep.subr.mxu0 0.0
      %2349 = vmatpush1.msra.mxu0 0.0
      %2350 = vmatprep.subr.mxu0 0.0
      %2351 = vmatpush1.msra.mxu0 0.0
      %2352 = vmatprep.subr.mxu0 0.0
      %2353 = vmatpush1.msra.mxu0 0.0
      %2354 = vmatprep.subr.mxu0 0.0
      %2355 = vmatpush1.msra.mxu0 0.0
      %2356 = vmatprep.subr.mxu0 0.0
      %2357 = vmatpush1.msra.mxu0 0.0
      %2358 = vmatprep.subr.mxu0 0.0
      %2359 = vmatpush1.msra.mxu0 0.0
      %2360 = vmatprep.subr.mxu0 0.0
      %2361 = vmatpush1.msra.mxu0 0.0
      %2362 = vmatprep.subr.mxu0 0.0
      %2363 = vmatpush1.msra.mxu0 0.0
      %2364 = vmatprep.subr.mxu0 0.0
      %2365 = vmatpush1.msra.mxu0 0.0
      %2366 = vmatprep.subr.mxu0 0.0
      %2367 = vmatpush1.msra.mxu0 0.0
      %2368 = vmatprep.subr.mxu0 0.0
      %2369 = vmatpush1.msra.mxu0 0.0
      %2370 = vmatprep.subr.mxu0 0.0
      %2371 = vmatpush1.msra.mxu0 0.0
      %2372 = vmatprep.subr.mxu0 0.0
      %2373 = vmatpush1.msra.mxu0 0.0
      %2374 = vmatprep.subr.mxu0 0.0
      %2375 = vmatpush1.msra.mxu0 0.0
      %2376 = vmatprep.subr.mxu0 0.0
      %2377 = vmatpush1.msra.mxu0 0.0
      %2378 = vmatprep.subr.mxu0 0.0
      %2379 = vmatpush1.msra.mxu0 0.0
      %2380 = vmatprep.subr.mxu0 0.0
      %2381 = vmatpush1.msra.mxu0 0.0
      %2382 = vmatprep.subr.mxu0 0.0
      %2383 = vmatpush1.msra.mxu0 0.0
      %2384 = vmatprep.subr.mxu0 0.0
      %2385 = vmatpush1.msra.mxu0 0.0
      %2386 = vmatprep.subr.mxu0 0.0
      %2387 = vmatpush1.msra.mxu0 0.0
      %2388 = vmatprep.subr.mxu0 0.0
      %2389 = vmatpush1.msra.mxu0 0.0
      %2390 = vmatprep.subr.mxu0 0.0
      %2391 = vmatpush1.msra.mxu0 0.0
      %2392 = vmatprep.subr.mxu0 0.0
      %2393 = vmatpush1.msra.mxu0 0.0
      %2394 = vmatprep.subr.mxu0 0.0
      %2395 = vmatpush1.msra.mxu0 0.0
      %2396 = vmatprep.subr.mxu0 0.0
      %2397 = vmatpush1.msra.mxu0 0.0
      %2398 = vmatprep.subr.mxu0 0.0
      %2399 = vmatpush1.msra.mxu0 0.0
      %2400 = vmatprep.subr.mxu0 0.0
      %2401 = vmatpush1.msra.mxu0 0.0
      %2402 = vmatprep.subr.mxu0 0.0
      %2403 = vmatpush1.msra.mxu0 0.0
      %2404 = vmatprep.subr.mxu0 0.0
      %2405 = vmatpush1.msra.mxu0 0.0
      %2406 = vmatprep.subr.mxu0 0.0
      %2407 = vmatpush1.msra.mxu0 0.0
      %2408 = vmatprep.subr.mxu0 0.0
      %2409 = vmatpush1.msra.mxu0 0.0
      %2410 = vmatprep.mubr.f32.mxu0 0.0
      %2411 = vmatmul.mubr.f32.gmra.mrb[0].mxu0 %v1467
      %v2412 = vpop.f32.mrb[0].mxu0
      %v2413 = vadd.f32 0.0, %v2412
      %v2414 = vpop.f32.mrb[0].mxu0
      %v2415 = vadd.f32 0.0, %v2414
      %2416 = vmatprep.mubr.f32.mxu0 0.0
      %2417 = vmatmul.mubr.f32.gmra.mrb[0].mxu0 %v1470
      %v2418 = vpop.f32.mrb[0].mxu0
      %v2419 = vadd.f32 0.0, %v2418
      %v2420 = vpop.f32.mrb[0].mxu0
      %v2421 = vadd.f32 0.0, %v2420
      %2422 = vmatprep.mubr.f32.mxu0 0.0
      %2423 = vmatmul.mubr.f32.gmra.mrb[0].mxu0 %v1473
      %v2424 = vpop.f32.mrb[0].mxu0
      %v2425 = vadd.f32 0.0, %v2424
      %v2426 = vpop.f32.mrb[0].mxu0
      %v2427 = vadd.f32 0.0, %v2426
      %2428 = vmatprep.mubr.f32.mxu0 0.0
      %2429 = vmatmul.mubr.f32.gmra.mrb[0].mxu0 %v1476
      %v2430 = vpop.f32.mrb[0].mxu0
      %v2431 = vadd.f32 0.0, %v2430
      %v2432 = vpop.f32.mrb[0].mxu0
      %v2433 = vadd.f32 0.0, %v2432
      %2434 = vmatprep.mubr.f32.mxu0 0.0
      %2435 = vmatmul.mubr.f32.gmra.mrb[0].mxu0 %v1479
      %v2436 = vpop.f32.mrb[0].mxu0
      %v2437 = vadd.f32 0.0, %v2436
      %v2438 = vpop.f32.mrb[0].mxu0
      %v2439 = vadd.f32 0.0, %v2438
      %2440 = vmatprep.mubr.f32.mxu0 0.0
      %2441 = vmatmul.mubr.f32.gmra.mrb[0].mxu0 %v1482
      %v2442 = vpop.f32.mrb[0].mxu0
      %v2443 = vadd.f32 0.0, %v2442
      %v2444 = vpop.f32.mrb[0].mxu0
      %v2445 = vadd.f32 0.0, %v2444
      %2446 = vmatprep.mubr.f32.mxu0 0.0
      %2447 = vmatmul.mubr.f32.gmra.mrb[0].mxu0 %v1485
      %v2448 = vpop.f32.mrb[0].mxu0
      %v2449 = vadd.f32 0.0, %v2448
      %v2450 = vpop.f32.mrb[0].mxu0
      %v2451 = vadd.f32 0.0, %v2450
      %2452 = vmatprep.mubr.f32.mxu0 0.0
      %2453 = vmatmul.mubr.f32.gmra.mrb[0].mxu0 %v1488
      %v2454 = vpop.f32.mrb[0].mxu0
      %v2455 = vadd.f32 0.0, %v2454
      %v2456 = vpop.f32.mrb[0].mxu0
      %v2457 = vadd.f32 0.0, %v2456
      %2458 = vdwg.mxu0
      %2459 = vmatprep.subr.mxu0 %v1525
      %2460 = vmatpush1.msra.mxu0 %v1523
      %2461 = vmatprep.subr.mxu0 0.0
      %2462 = vmatpush1.msra.mxu0 0.0
      %2463 = vmatprep.subr.mxu0 0.0
      %2464 = vmatpush1.msra.mxu0 0.0
      %2465 = vmatprep.subr.mxu0 0.0
      %2466 = vmatpush1.msra.mxu0 0.0
      %2467 = vmatprep.subr.mxu0 0.0
      %2468 = vmatpush1.msra.mxu0 0.0
      %2469 = vmatprep.subr.mxu0 0.0
      %2470 = vmatpush1.msra.mxu0 0.0
      %2471 = vmatprep.subr.mxu0 0.0
      %2472 = vmatpush1.msra.mxu0 0.0
      %2473 = vmatprep.subr.mxu0 0.0
      %2474 = vmatpush1.msra.mxu0 0.0
      %2475 = vmatprep.subr.mxu0 0.0
      %2476 = vmatpush1.msra.mxu0 0.0
      %2477 = vmatprep.subr.mxu0 0.0
      %2478 = vmatpush1.msra.mxu0 0.0
      %2479 = vmatprep.subr.mxu0 0.0
      %2480 = vmatpush1.msra.mxu0 0.0
      %2481 = vmatprep.subr.mxu0 0.0
      %2482 = vmatpush1.msra.mxu0 0.0
      %2483 = vmatprep.subr.mxu0 0.0
      %2484 = vmatpush1.msra.mxu0 0.0
      %2485 = vmatprep.subr.mxu0 0.0
      %2486 = vmatpush1.msra.mxu0 0.0
      %2487 = vmatprep.subr.mxu0 0.0
      %2488 = vmatpush1.msra.mxu0 0.0
      %2489 = vmatprep.subr.mxu0 0.0
      %2490 = vmatpush1.msra.mxu0 0.0
      %2491 = vmatprep.subr.mxu0 0.0
      %2492 = vmatpush1.msra.mxu0 0.0
      %2493 = vmatprep.subr.mxu0 0.0
      %2494 = vmatpush1.msra.mxu0 0.0
      %2495 = vmatprep.subr.mxu0 0.0
      %2496 = vmatpush1.msra.mxu0 0.0
      %2497 = vmatprep.subr.mxu0 0.0
      %2498 = vmatpush1.msra.mxu0 0.0
      %2499 = vmatprep.subr.mxu0 0.0
      %2500 = vmatpush1.msra.mxu0 0.0
      %2501 = vmatprep.subr.mxu0 0.0
      %2502 = vmatpush1.msra.mxu0 0.0
      %2503 = vmatprep.subr.mxu0 0.0
      %2504 = vmatpush1.msra.mxu0 0.0
      %2505 = vmatprep.subr.mxu0 0.0
      %2506 = vmatpush1.msra.mxu0 0.0
      %2507 = vmatprep.subr.mxu0 0.0
      %2508 = vmatpush1.msra.mxu0 0.0
      %2509 = vmatprep.subr.mxu0 0.0
      %2510 = vmatpush1.msra.mxu0 0.0
      %2511 = vmatprep.subr.mxu0 0.0
      %2512 = vmatpush1.msra.mxu0 0.0
      %2513 = vmatprep.subr.mxu0 0.0
      %2514 = vmatpush1.msra.mxu0 0.0
      %2515 = vmatprep.subr.mxu0 0.0
      %2516 = vmatpush1.msra.mxu0 0.0
      %2517 = vmatprep.subr.mxu0 0.0
      %2518 = vmatpush1.msra.mxu0 0.0
      %2519 = vmatprep.subr.mxu0 0.0
      %2520 = vmatpush1.msra.mxu0 0.0
      %2521 = vmatprep.subr.mxu0 0.0
      %2522 = vmatpush1.msra.mxu0 0.0
      %2523 = vmatprep.mubr.f32.mxu0 0.0
      %2524 = vmatmul.mubr.f32.gmra.mrb[0].mxu0 %v1467
      %v2525 = vpop.f32.mrb[0].mxu0
      %v2526 = vadd.f32 0.0, %v2525
      %v2527 = vpop.f32.mrb[0].mxu0
      %v2528 = vadd.f32 0.0, %v2527
      %2529 = vmatprep.mubr.f32.mxu0 0.0
      %2530 = vmatmul.mubr.f32.gmra.mrb[0].mxu0 %v1470
      %v2531 = vpop.f32.mrb[0].mxu0
      %v2532 = vadd.f32 0.0, %v2531
      %v2533 = vpop.f32.mrb[0].mxu0
      %v2534 = vadd.f32 0.0, %v2533
      %2535 = vmatprep.mubr.f32.mxu0 0.0
      %2536 = vmatmul.mubr.f32.gmra.mrb[0].mxu0 %v1473
      %v2537 = vpop.f32.mrb[0].mxu0
      %v2538 = vadd.f32 0.0, %v2537
      %v2539 = vpop.f32.mrb[0].mxu0
      %v2540 = vadd.f32 0.0, %v2539
      %2541 = vmatprep.mubr.f32.mxu0 0.0
      %2542 = vmatmul.mubr.f32.gmra.mrb[0].mxu0 %v1476
      %v2543 = vpop.f32.mrb[0].mxu0
      %v2544 = vadd.f32 0.0, %v2543
      %v2545 = vpop.f32.mrb[0].mxu0
      %v2546 = vadd.f32 0.0, %v2545
      %2547 = vmatprep.mubr.f32.mxu0 0.0
      %2548 = vmatmul.mubr.f32.gmra.mrb[0].mxu0 %v1479
      %v2549 = vpop.f32.mrb[0].mxu0
      %v2550 = vadd.f32 0.0, %v2549
      %v2551 = vpop.f32.mrb[0].mxu0
      %v2552 = vadd.f32 0.0, %v2551
      %2553 = vmatprep.mubr.f32.mxu0 0.0
      %2554 = vmatmul.mubr.f32.gmra.mrb[0].mxu0 %v1482
      %v2555 = vpop.f32.mrb[0].mxu0
      %v2556 = vadd.f32 0.0, %v2555
      %v2557 = vpop.f32.mrb[0].mxu0
      %v2558 = vadd.f32 0.0, %v2557
      %2559 = vmatprep.mubr.f32.mxu0 0.0
      %2560 = vmatmul.mubr.f32.gmra.mrb[0].mxu0 %v1485
      %v2561 = vpop.f32.mrb[0].mxu0
      %v2562 = vadd.f32 0.0, %v2561
      %v2563 = vpop.f32.mrb[0].mxu0
      %v2564 = vadd.f32 0.0, %v2563
      %2565 = vmatprep.mubr.f32.mxu0 0.0
      %2566 = vmatmul.mubr.f32.gmra.mrb[0].mxu0 %v1488
      %v2567 = vpop.f32.mrb[0].mxu0
      %v2568 = vadd.f32 0.0, %v2567
      %v2569 = vpop.f32.mrb[0].mxu0
      %v2570 = vadd.f32 0.0, %v2569
      %2571 = vdwg.mxu0
      %2572 = vmatprep.subr.mxu0 %v1529
      %2573 = vmatpush1.msra.mxu0 %v1527
      %2574 = vmatprep.subr.mxu0 0.0
      %2575 = vmatpush1.msra.mxu0 0.0
      %2576 = vmatprep.subr.mxu0 0.0
      %2577 = vmatpush1.msra.mxu0 0.0
      %2578 = vmatprep.subr.mxu0 0.0
      %2579 = vmatpush1.msra.mxu0 0.0
      %2580 = vmatprep.subr.mxu0 0.0
      %2581 = vmatpush1.msra.mxu0 0.0
      %2582 = vmatprep.subr.mxu0 0.0
      %2583 = vmatpush1.msra.mxu0 0.0
      %2584 = vmatprep.subr.mxu0 0.0
      %2585 = vmatpush1.msra.mxu0 0.0
      %2586 = vmatprep.subr.mxu0 0.0
      %2587 = vmatpush1.msra.mxu0 0.0
      %2588 = vmatprep.subr.mxu0 0.0
      %2589 = vmatpush1.msra.mxu0 0.0
      %2590 = vmatprep.subr.mxu0 0.0
      %2591 = vmatpush1.msra.mxu0 0.0
      %2592 = vmatprep.subr.mxu0 0.0
      %2593 = vmatpush1.msra.mxu0 0.0
      %2594 = vmatprep.subr.mxu0 0.0
      %2595 = vmatpush1.msra.mxu0 0.0
      %2596 = vmatprep.subr.mxu0 0.0
      %2597 = vmatpush1.msra.mxu0 0.0
      %2598 = vmatprep.subr.mxu0 0.0
      %2599 = vmatpush1.msra.mxu0 0.0
      %2600 = vmatprep.subr.mxu0 0.0
      %2601 = vmatpush1.msra.mxu0 0.0
      %2602 = vmatprep.subr.mxu0 0.0
      %2603 = vmatpush1.msra.mxu0 0.0
      %2604 = vmatprep.subr.mxu0 0.0
      %2605 = vmatpush1.msra.mxu0 0.0
      %2606 = vmatprep.subr.mxu0 0.0
      %2607 = vmatpush1.msra.mxu0 0.0
      %2608 = vmatprep.subr.mxu0 0.0
      %2609 = vmatpush1.msra.mxu0 0.0
      %2610 = vmatprep.subr.mxu0 0.0
      %2611 = vmatpush1.msra.mxu0 0.0
      %2612 = vmatprep.subr.mxu0 0.0
      %2613 = vmatpush1.msra.mxu0 0.0
      %2614 = vmatprep.subr.mxu0 0.0
      %2615 = vmatpush1.msra.mxu0 0.0
      %2616 = vmatprep.subr.mxu0 0.0
      %2617 = vmatpush1.msra.mxu0 0.0
      %2618 = vmatprep.subr.mxu0 0.0
      %2619 = vmatpush1.msra.mxu0 0.0
      %2620 = vmatprep.subr.mxu0 0.0
      %2621 = vmatpush1.msra.mxu0 0.0
      %2622 = vmatprep.subr.mxu0 0.0
      %2623 = vmatpush1.msra.mxu0 0.0
      %2624 = vmatprep.subr.mxu0 0.0
      %2625 = vmatpush1.msra.mxu0 0.0
      %2626 = vmatprep.subr.mxu0 0.0
      %2627 = vmatpush1.msra.mxu0 0.0
      %2628 = vmatprep.subr.mxu0 0.0
      %2629 = vmatpush1.msra.mxu0 0.0
      %2630 = vmatprep.subr.mxu0 0.0
      %2631 = vmatpush1.msra.mxu0 0.0
      %2632 = vmatprep.subr.mxu0 0.0
      %2633 = vmatpush1.msra.mxu0 0.0
      %2634 = vmatprep.subr.mxu0 0.0
      %2635 = vmatpush1.msra.mxu0 0.0
      %2636 = vmatprep.mubr.f32.mxu0 0.0
      %2637 = vmatmul.mubr.f32.gmra.mrb[0].mxu0 %v1467
      %v2638 = vpop.f32.mrb[0].mxu0
      %v2639 = vadd.f32 0.0, %v2638
      %v2640 = vpop.f32.mrb[0].mxu0
      %v2641 = vadd.f32 0.0, %v2640
      %2642 = vmatprep.mubr.f32.mxu0 0.0
      %2643 = vmatmul.mubr.f32.gmra.mrb[0].mxu0 %v1470
      %v2644 = vpop.f32.mrb[0].mxu0
      %v2645 = vadd.f32 0.0, %v2644
      %v2646 = vpop.f32.mrb[0].mxu0
      %v2647 = vadd.f32 0.0, %v2646
      %2648 = vmatprep.mubr.f32.mxu0 0.0
      %2649 = vmatmul.mubr.f32.gmra.mrb[0].mxu0 %v1473
      %v2650 = vpop.f32.mrb[0].mxu0
      %v2651 = vadd.f32 0.0, %v2650
      %v2652 = vpop.f32.mrb[0].mxu0
      %v2653 = vadd.f32 0.0, %v2652
      %2654 = vmatprep.mubr.f32.mxu0 0.0
      %2655 = vmatmul.mubr.f32.gmra.mrb[0].mxu0 %v1476
      %v2656 = vpop.f32.mrb[0].mxu0
      %v2657 = vadd.f32 0.0, %v2656
      %v2658 = vpop.f32.mrb[0].mxu0
      %v2659 = vadd.f32 0.0, %v2658
      %2660 = vmatprep.mubr.f32.mxu0 0.0
      %2661 = vmatmul.mubr.f32.gmra.mrb[0].mxu0 %v1479
      %v2662 = vpop.f32.mrb[0].mxu0
      %v2663 = vadd.f32 0.0, %v2662
      %v2664 = vpop.f32.mrb[0].mxu0
      %v2665 = vadd.f32 0.0, %v2664
      %2666 = vmatprep.mubr.f32.mxu0 0.0
      %2667 = vmatmul.mubr.f32.gmra.mrb[0].mxu0 %v1482
      %v2668 = vpop.f32.mrb[0].mxu0
      %v2669 = vadd.f32 0.0, %v2668
      %v2670 = vpop.f32.mrb[0].mxu0
      %v2671 = vadd.f32 0.0, %v2670
      %2672 = vmatprep.mubr.f32.mxu0 0.0
      %2673 = vmatmul.mubr.f32.gmra.mrb[0].mxu0 %v1485
      %v2674 = vpop.f32.mrb[0].mxu0
      %v2675 = vadd.f32 0.0, %v2674
      %v2676 = vpop.f32.mrb[0].mxu0
      %v2677 = vadd.f32 0.0, %v2676
      %2678 = vmatprep.mubr.f32.mxu0 0.0
      %2679 = vmatmul.mubr.f32.gmra.mrb[0].mxu0 %v1488
      %v2680 = vpop.f32.mrb[0].mxu0
      %v2681 = vadd.f32 0.0, %v2680
      %v2682 = vpop.f32.mrb[0].mxu0
      %v2683 = vadd.f32 0.0, %v2682
      %2684 = vdwg.mxu0
      %2685 = vmatprep.subr.mxu0 %v1533
      %2686 = vmatpush1.msra.mxu0 %v1531
      %2687 = vmatprep.subr.mxu0 0.0
      %2688 = vmatpush1.msra.mxu0 0.0
      %2689 = vmatprep.subr.mxu0 0.0
      %2690 = vmatpush1.msra.mxu0 0.0
      %2691 = vmatprep.subr.mxu0 0.0
      %2692 = vmatpush1.msra.mxu0 0.0
      %2693 = vmatprep.subr.mxu0 0.0
      %2694 = vmatpush1.msra.mxu0 0.0
      %2695 = vmatprep.subr.mxu0 0.0
      %2696 = vmatpush1.msra.mxu0 0.0
      %2697 = vmatprep.subr.mxu0 0.0
      %2698 = vmatpush1.msra.mxu0 0.0
      %2699 = vmatprep.subr.mxu0 0.0
      %2700 = vmatpush1.msra.mxu0 0.0
      %2701 = vmatprep.subr.mxu0 0.0
      %2702 = vmatpush1.msra.mxu0 0.0
      %2703 = vmatprep.subr.mxu0 0.0
      %2704 = vmatpush1.msra.mxu0 0.0
      %2705 = vmatprep.subr.mxu0 0.0
      %2706 = vmatpush1.msra.mxu0 0.0
      %2707 = vmatprep.subr.mxu0 0.0
      %2708 = vmatpush1.msra.mxu0 0.0
      %2709 = vmatprep.subr.mxu0 0.0
      %2710 = vmatpush1.msra.mxu0 0.0
      %2711 = vmatprep.subr.mxu0 0.0
      %2712 = vmatpush1.msra.mxu0 0.0
      %2713 = vmatprep.subr.mxu0 0.0
      %2714 = vmatpush1.msra.mxu0 0.0
      %2715 = vmatprep.subr.mxu0 0.0
      %2716 = vmatpush1.msra.mxu0 0.0
      %2717 = vmatprep.subr.mxu0 0.0
      %2718 = vmatpush1.msra.mxu0 0.0
      %2719 = vmatprep.subr.mxu0 0.0
      %2720 = vmatpush1.msra.mxu0 0.0
      %2721 = vmatprep.subr.mxu0 0.0
      %2722 = vmatpush1.msra.mxu0 0.0
      %2723 = vmatprep.subr.mxu0 0.0
      %2724 = vmatpush1.msra.mxu0 0.0
      %2725 = vmatprep.subr.mxu0 0.0
      %2726 = vmatpush1.msra.mxu0 0.0
      %2727 = vmatprep.subr.mxu0 0.0
      %2728 = vmatpush1.msra.mxu0 0.0
      %2729 = vmatprep.subr.mxu0 0.0
      %2730 = vmatpush1.msra.mxu0 0.0
      %2731 = vmatprep.subr.mxu0 0.0
      %2732 = vmatpush1.msra.mxu0 0.0
      %2733 = vmatprep.subr.mxu0 0.0
      %2734 = vmatpush1.msra.mxu0 0.0
      %2735 = vmatprep.subr.mxu0 0.0
      %2736 = vmatpush1.msra.mxu0 0.0
      %2737 = vmatprep.subr.mxu0 0.0
      %2738 = vmatpush1.msra.mxu0 0.0
      %2739 = vmatprep.subr.mxu0 0.0
      %2740 = vmatpush1.msra.mxu0 0.0
      %2741 = vmatprep.subr.mxu0 0.0
      %2742 = vmatpush1.msra.mxu0 0.0
      %2743 = vmatprep.subr.mxu0 0.0
      %2744 = vmatpush1.msra.mxu0 0.0
      %2745 = vmatprep.subr.mxu0 0.0
      %2746 = vmatpush1.msra.mxu0 0.0
      %2747 = vmatprep.subr.mxu0 0.0
      %2748 = vmatpush1.msra.mxu0 0.0
      %2749 = vmatprep.mubr.f32.mxu0 0.0
      %2750 = vmatmul.mubr.f32.gmra.mrb[0].mxu0 %v1467
      %v2751 = vpop.f32.mrb[0].mxu0
      %v2752 = vadd.f32 0.0, %v2751
      %v2753 = vpop.f32.mrb[0].mxu0
      %v2754 = vadd.f32 0.0, %v2753
      %2755 = vmatprep.mubr.f32.mxu0 0.0
      %2756 = vmatmul.mubr.f32.gmra.mrb[0].mxu0 %v1470
      %v2757 = vpop.f32.mrb[0].mxu0
      %v2758 = vadd.f32 0.0, %v2757
      %v2759 = vpop.f32.mrb[0].mxu0
      %v2760 = vadd.f32 0.0, %v2759
      %2761 = vmatprep.mubr.f32.mxu0 0.0
      %2762 = vmatmul.mubr.f32.gmra.mrb[0].mxu0 %v1473
      %v2763 = vpop.f32.mrb[0].mxu0
      %v2764 = vadd.f32 0.0, %v2763
      %v2765 = vpop.f32.mrb[0].mxu0
      %v2766 = vadd.f32 0.0, %v2765
      %2767 = vmatprep.mubr.f32.mxu0 0.0
      %2768 = vmatmul.mubr.f32.gmra.mrb[0].mxu0 %v1476
      %v2769 = vpop.f32.mrb[0].mxu0
      %v2770 = vadd.f32 0.0, %v2769
      %v2771 = vpop.f32.mrb[0].mxu0
      %v2772 = vadd.f32 0.0, %v2771
      %2773 = vmatprep.mubr.f32.mxu0 0.0
      %2774 = vmatmul.mubr.f32.gmra.mrb[0].mxu0 %v1479
      %v2775 = vpop.f32.mrb[0].mxu0
      %v2776 = vadd.f32 0.0, %v2775
      %v2777 = vpop.f32.mrb[0].mxu0
      %v2778 = vadd.f32 0.0, %v2777
      %2779 = vmatprep.mubr.f32.mxu0 0.0
      %2780 = vmatmul.mubr.f32.gmra.mrb[0].mxu0 %v1482
      %v2781 = vpop.f32.mrb[0].mxu0
      %v2782 = vadd.f32 0.0, %v2781
      %v2783 = vpop.f32.mrb[0].mxu0
      %v2784 = vadd.f32 0.0, %v2783
      %2785 = vmatprep.mubr.f32.mxu0 0.0
      %2786 = vmatmul.mubr.f32.gmra.mrb[0].mxu0 %v1485
      %v2787 = vpop.f32.mrb[0].mxu0
      %v2788 = vadd.f32 0.0, %v2787
      %v2789 = vpop.f32.mrb[0].mxu0
      %v2790 = vadd.f32 0.0, %v2789
      %2791 = vmatprep.mubr.f32.mxu0 0.0
      %2792 = vmatmul.mubr.f32.gmra.mrb[0].mxu0 %v1488
      %v2793 = vpop.f32.mrb[0].mxu0
      %v2794 = vadd.f32 0.0, %v2793
      %v2795 = vpop.f32.mrb[0].mxu0
      %v2796 = vadd.f32 0.0, %v2795
      %2797 = vdwg.mxu0
      %2798 = vmatprep.subr.mxu0 %v1537
      %2799 = vmatpush1.msra.mxu0 %v1535
      %2800 = vmatprep.subr.mxu0 0.0
      %2801 = vmatpush1.msra.mxu0 0.0
      %2802 = vmatprep.subr.mxu0 0.0
      %2803 = vmatpush1.msra.mxu0 0.0
      %2804 = vmatprep.subr.mxu0 0.0
      %2805 = vmatpush1.msra.mxu0 0.0
      %2806 = vmatprep.subr.mxu0 0.0
      %2807 = vmatpush1.msra.mxu0 0.0
      %2808 = vmatprep.subr.mxu0 0.0
      %2809 = vmatpush1.msra.mxu0 0.0
      %2810 = vmatprep.subr.mxu0 0.0
      %2811 = vmatpush1.msra.mxu0 0.0
      %2812 = vmatprep.subr.mxu0 0.0
      %2813 = vmatpush1.msra.mxu0 0.0
      %2814 = vmatprep.subr.mxu0 0.0
      %2815 = vmatpush1.msra.mxu0 0.0
      %2816 = vmatprep.subr.mxu0 0.0
      %2817 = vmatpush1.msra.mxu0 0.0
      %2818 = vmatprep.subr.mxu0 0.0
      %2819 = vmatpush1.msra.mxu0 0.0
      %2820 = vmatprep.subr.mxu0 0.0
      %2821 = vmatpush1.msra.mxu0 0.0
      %2822 = vmatprep.subr.mxu0 0.0
      %2823 = vmatpush1.msra.mxu0 0.0
      %2824 = vmatprep.subr.mxu0 0.0
      %2825 = vmatpush1.msra.mxu0 0.0
      %2826 = vmatprep.subr.mxu0 0.0
      %2827 = vmatpush1.msra.mxu0 0.0
      %2828 = vmatprep.subr.mxu0 0.0
      %2829 = vmatpush1.msra.mxu0 0.0
      %2830 = vmatprep.subr.mxu0 0.0
      %2831 = vmatpush1.msra.mxu0 0.0
      %2832 = vmatprep.subr.mxu0 0.0
      %2833 = vmatpush1.msra.mxu0 0.0
      %2834 = vmatprep.subr.mxu0 0.0
      %2835 = vmatpush1.msra.mxu0 0.0
      %2836 = vmatprep.subr.mxu0 0.0
      %2837 = vmatpush1.msra.mxu0 0.0
      %2838 = vmatprep.subr.mxu0 0.0
      %2839 = vmatpush1.msra.mxu0 0.0
      %2840 = vmatprep.subr.mxu0 0.0
      %2841 = vmatpush1.msra.mxu0 0.0
      %2842 = vmatprep.subr.mxu0 0.0
      %2843 = vmatpush1.msra.mxu0 0.0
      %2844 = vmatprep.subr.mxu0 0.0
      %2845 = vmatpush1.msra.mxu0 0.0
      %2846 = vmatprep.subr.mxu0 0.0
      %2847 = vmatpush1.msra.mxu0 0.0
      %2848 = vmatprep.subr.mxu0 0.0
      %2849 = vmatpush1.msra.mxu0 0.0
      %2850 = vmatprep.subr.mxu0 0.0
      %2851 = vmatpush1.msra.mxu0 0.0
      %2852 = vmatprep.subr.mxu0 0.0
      %2853 = vmatpush1.msra.mxu0 0.0
      %2854 = vmatprep.subr.mxu0 0.0
      %2855 = vmatpush1.msra.mxu0 0.0
      %2856 = vmatprep.subr.mxu0 0.0
      %2857 = vmatpush1.msra.mxu0 0.0
      %2858 = vmatprep.subr.mxu0 0.0
      %2859 = vmatpush1.msra.mxu0 0.0
      %2860 = vmatprep.subr.mxu0 0.0
      %2861 = vmatpush1.msra.mxu0 0.0
      %2862 = vmatprep.mubr.f32.mxu0 0.0
      %2863 = vmatmul.mubr.f32.gmra.mrb[0].mxu0 %v1467
      %v2864 = vpop.f32.mrb[0].mxu0
      %v2865 = vadd.f32 0.0, %v2864
      %v2866 = vpop.f32.mrb[0].mxu0
      %v2867 = vadd.f32 0.0, %v2866
      %2868 = vmatprep.mubr.f32.mxu0 0.0
      %2869 = vmatmul.mubr.f32.gmra.mrb[0].mxu0 %v1470
      %v2870 = vpop.f32.mrb[0].mxu0
      %v2871 = vadd.f32 0.0, %v2870
      %v2872 = vpop.f32.mrb[0].mxu0
      %v2873 = vadd.f32 0.0, %v2872
      %2874 = vmatprep.mubr.f32.mxu0 0.0
      %2875 = vmatmul.mubr.f32.gmra.mrb[0].mxu0 %v1473
      %v2876 = vpop.f32.mrb[0].mxu0
      %v2877 = vadd.f32 0.0, %v2876
      %v2878 = vpop.f32.mrb[0].mxu0
      %v2879 = vadd.f32 0.0, %v2878
      %2880 = vmatprep.mubr.f32.mxu0 0.0
      %2881 = vmatmul.mubr.f32.gmra.mrb[0].mxu0 %v1476
      %v2882 = vpop.f32.mrb[0].mxu0
      %v2883 = vadd.f32 0.0, %v2882
      %v2884 = vpop.f32.mrb[0].mxu0
      %v2885 = vadd.f32 0.0, %v2884
      %2886 = vmatprep.mubr.f32.mxu0 0.0
      %2887 = vmatmul.mubr.f32.gmra.mrb[0].mxu0 %v1479
      %v2888 = vpop.f32.mrb[0].mxu0
      %v2889 = vadd.f32 0.0, %v2888
      %v2890 = vpop.f32.mrb[0].mxu0
      %v2891 = vadd.f32 0.0, %v2890
      %2892 = vmatprep.mubr.f32.mxu0 0.0
      %2893 = vmatmul.mubr.f32.gmra.mrb[0].mxu0 %v1482
      %v2894 = vpop.f32.mrb[0].mxu0
      %v2895 = vadd.f32 0.0, %v2894
      %v2896 = vpop.f32.mrb[0].mxu0
      %v2897 = vadd.f32 0.0, %v2896
      %2898 = vmatprep.mubr.f32.mxu0 0.0
      %2899 = vmatmul.mubr.f32.gmra.mrb[0].mxu0 %v1485
      %v2900 = vpop.f32.mrb[0].mxu0
      %v2901 = vadd.f32 0.0, %v2900
      %v2902 = vpop.f32.mrb[0].mxu0
      %v2903 = vadd.f32 0.0, %v2902
      %2904 = vmatprep.mubr.f32.mxu0 0.0
      %2905 = vmatmul.mubr.f32.gmra.mrb[0].mxu0 %v1488
      %v2906 = vpop.f32.mrb[0].mxu0
      %v2907 = vadd.f32 0.0, %v2906
      %v2908 = vpop.f32.mrb[0].mxu0
      %v2909 = vadd.f32 0.0, %v2908
      %2910 = vdwg.mxu0
      %2911 = vmatprep.subr.mxu0 %v1541
      %2912 = vmatpush1.msra.mxu0 %v1539
      %2913 = vmatprep.subr.mxu0 0.0
      %2914 = vmatpush1.msra.mxu0 0.0
      %2915 = vmatprep.subr.mxu0 0.0
      %2916 = vmatpush1.msra.mxu0 0.0
      %2917 = vmatprep.subr.mxu0 0.0
      %2918 = vmatpush1.msra.mxu0 0.0
      %2919 = vmatprep.subr.mxu0 0.0
      %2920 = vmatpush1.msra.mxu0 0.0
      %2921 = vmatprep.subr.mxu0 0.0
      %2922 = vmatpush1.msra.mxu0 0.0
      %2923 = vmatprep.subr.mxu0 0.0
      %2924 = vmatpush1.msra.mxu0 0.0
      %2925 = vmatprep.subr.mxu0 0.0
      %2926 = vmatpush1.msra.mxu0 0.0
      %2927 = vmatprep.subr.mxu0 0.0
      %2928 = vmatpush1.msra.mxu0 0.0
      %2929 = vmatprep.subr.mxu0 0.0
      %2930 = vmatpush1.msra.mxu0 0.0
      %2931 = vmatprep.subr.mxu0 0.0
      %2932 = vmatpush1.msra.mxu0 0.0
      %2933 = vmatprep.subr.mxu0 0.0
      %2934 = vmatpush1.msra.mxu0 0.0
      %2935 = vmatprep.subr.mxu0 0.0
      %2936 = vmatpush1.msra.mxu0 0.0
      %2937 = vmatprep.subr.mxu0 0.0
      %2938 = vmatpush1.msra.mxu0 0.0
      %2939 = vmatprep.subr.mxu0 0.0
      %2940 = vmatpush1.msra.mxu0 0.0
      %2941 = vmatprep.subr.mxu0 0.0
      %2942 = vmatpush1.msra.mxu0 0.0
      %2943 = vmatprep.subr.mxu0 0.0
      %2944 = vmatpush1.msra.mxu0 0.0
      %2945 = vmatprep.subr.mxu0 0.0
      %2946 = vmatpush1.msra.mxu0 0.0
      %2947 = vmatprep.subr.mxu0 0.0
      %2948 = vmatpush1.msra.mxu0 0.0
      %2949 = vmatprep.subr.mxu0 0.0
      %2950 = vmatpush1.msra.mxu0 0.0
      %2951 = vmatprep.subr.mxu0 0.0
      %2952 = vmatpush1.msra.mxu0 0.0
      %2953 = vmatprep.subr.mxu0 0.0
      %2954 = vmatpush1.msra.mxu0 0.0
      %2955 = vmatprep.subr.mxu0 0.0
      %2956 = vmatpush1.msra.mxu0 0.0
      %2957 = vmatprep.subr.mxu0 0.0
      %2958 = vmatpush1.msra.mxu0 0.0
      %2959 = vmatprep.subr.mxu0 0.0
      %2960 = vmatpush1.msra.mxu0 0.0
      %2961 = vmatprep.subr.mxu0 0.0
      %2962 = vmatpush1.msra.mxu0 0.0
      %2963 = vmatprep.subr.mxu0 0.0
      %2964 = vmatpush1.msra.mxu0 0.0
      %2965 = vmatprep.subr.mxu0 0.0
      %2966 = vmatpush1.msra.mxu0 0.0
      %2967 = vmatprep.subr.mxu0 0.0
      %2968 = vmatpush1.msra.mxu0 0.0
      %2969 = vmatprep.subr.mxu0 0.0
      %2970 = vmatpush1.msra.mxu0 0.0
      %2971 = vmatprep.subr.mxu0 0.0
      %2972 = vmatpush1.msra.mxu0 0.0
      %2973 = vmatprep.subr.mxu0 0.0
      %2974 = vmatpush1.msra.mxu0 0.0
      %2975 = vmatprep.mubr.f32.mxu0 0.0
      %2976 = vmatmul.mubr.f32.gmra.mrb[0].mxu0 %v1467
      %v2977 = vpop.f32.mrb[0].mxu0
      %v2978 = vadd.f32 0.0, %v2977
      %v2979 = vpop.f32.mrb[0].mxu0
      %v2980 = vadd.f32 0.0, %v2979
      %2981 = vmatprep.mubr.f32.mxu0 0.0
      %2982 = vmatmul.mubr.f32.gmra.mrb[0].mxu0 %v1470
      %v2983 = vpop.f32.mrb[0].mxu0
      %v2984 = vadd.f32 0.0, %v2983
      %v2985 = vpop.f32.mrb[0].mxu0
      %v2986 = vadd.f32 0.0, %v2985
      %2987 = vmatprep.mubr.f32.mxu0 0.0
      %2988 = vmatmul.mubr.f32.gmra.mrb[0].mxu0 %v1473
      %v2989 = vpop.f32.mrb[0].mxu0
      %v2990 = vadd.f32 0.0, %v2989
      %v2991 = vpop.f32.mrb[0].mxu0
      %v2992 = vadd.f32 0.0, %v2991
      %2993 = vmatprep.mubr.f32.mxu0 0.0
      %2994 = vmatmul.mubr.f32.gmra.mrb[0].mxu0 %v1476
      %v2995 = vpop.f32.mrb[0].mxu0
      %v2996 = vadd.f32 0.0, %v2995
      %v2997 = vpop.f32.mrb[0].mxu0
      %v2998 = vadd.f32 0.0, %v2997
      %2999 = vmatprep.mubr.f32.mxu0 0.0
      %3000 = vmatmul.mubr.f32.gmra.mrb[0].mxu0 %v1479
      %v3001 = vpop.f32.mrb[0].mxu0
      %v3002 = vadd.f32 0.0, %v3001
      %v3003 = vpop.f32.mrb[0].mxu0
      %v3004 = vadd.f32 0.0, %v3003
      %3005 = vmatprep.mubr.f32.mxu0 0.0
      %3006 = vmatmul.mubr.f32.gmra.mrb[0].mxu0 %v1482
      %v3007 = vpop.f32.mrb[0].mxu0
      %v3008 = vadd.f32 0.0, %v3007
      %v3009 = vpop.f32.mrb[0].mxu0
      %v3010 = vadd.f32 0.0, %v3009
      %3011 = vmatprep.mubr.f32.mxu0 0.0
      %3012 = vmatmul.mubr.f32.gmra.mrb[0].mxu0 %v1485
      %v3013 = vpop.f32.mrb[0].mxu0
      %v3014 = vadd.f32 0.0, %v3013
      %v3015 = vpop.f32.mrb[0].mxu0
      %v3016 = vadd.f32 0.0, %v3015
      %3017 = vmatprep.mubr.f32.mxu0 0.0
      %3018 = vmatmul.mubr.f32.gmra.mrb[0].mxu0 %v1488
      %v3019 = vpop.f32.mrb[0].mxu0
      %v3020 = vadd.f32 0.0, %v3019
      %v3021 = vpop.f32.mrb[0].mxu0
      %v3022 = vadd.f32 0.0, %v3021
      %3023 = vdwg.mxu0
      %3024 = vmatprep.subr.mxu0 %v1545
      %3025 = vmatpush1.msra.mxu0 %v1543
      %3026 = vmatprep.subr.mxu0 0.0
      %3027 = vmatpush1.msra.mxu0 0.0
      %3028 = vmatprep.subr.mxu0 0.0
      %3029 = vmatpush1.msra.mxu0 0.0
      %3030 = vmatprep.subr.mxu0 0.0
      %3031 = vmatpush1.msra.mxu0 0.0
      %3032 = vmatprep.subr.mxu0 0.0
      %3033 = vmatpush1.msra.mxu0 0.0
      %3034 = vmatprep.subr.mxu0 0.0
      %3035 = vmatpush1.msra.mxu0 0.0
      %3036 = vmatprep.subr.mxu0 0.0
      %3037 = vmatpush1.msra.mxu0 0.0
      %3038 = vmatprep.subr.mxu0 0.0
      %3039 = vmatpush1.msra.mxu0 0.0
      %3040 = vmatprep.subr.mxu0 0.0
      %3041 = vmatpush1.msra.mxu0 0.0
      %3042 = vmatprep.subr.mxu0 0.0
      %3043 = vmatpush1.msra.mxu0 0.0
      %3044 = vmatprep.subr.mxu0 0.0
      %3045 = vmatpush1.msra.mxu0 0.0
      %3046 = vmatprep.subr.mxu0 0.0
      %3047 = vmatpush1.msra.mxu0 0.0
      %3048 = vmatprep.subr.mxu0 0.0
      %3049 = vmatpush1.msra.mxu0 0.0
      %3050 = vmatprep.subr.mxu0 0.0
      %3051 = vmatpush1.msra.mxu0 0.0
      %3052 = vmatprep.subr.mxu0 0.0
      %3053 = vmatpush1.msra.mxu0 0.0
      %3054 = vmatprep.subr.mxu0 0.0
      %3055 = vmatpush1.msra.mxu0 0.0
      %3056 = vmatprep.subr.mxu0 0.0
      %3057 = vmatpush1.msra.mxu0 0.0
      %3058 = vmatprep.subr.mxu0 0.0
      %3059 = vmatpush1.msra.mxu0 0.0
      %3060 = vmatprep.subr.mxu0 0.0
      %3061 = vmatpush1.msra.mxu0 0.0
      %3062 = vmatprep.subr.mxu0 0.0
      %3063 = vmatpush1.msra.mxu0 0.0
      %3064 = vmatprep.subr.mxu0 0.0
      %3065 = vmatpush1.msra.mxu0 0.0
      %3066 = vmatprep.subr.mxu0 0.0
      %3067 = vmatpush1.msra.mxu0 0.0
      %3068 = vmatprep.subr.mxu0 0.0
      %3069 = vmatpush1.msra.mxu0 0.0
      %3070 = vmatprep.subr.mxu0 0.0
      %3071 = vmatpush1.msra.mxu0 0.0
      %3072 = vmatprep.subr.mxu0 0.0
      %3073 = vmatpush1.msra.mxu0 0.0
      %3074 = vmatprep.subr.mxu0 0.0
      %3075 = vmatpush1.msra.mxu0 0.0
      %3076 = vmatprep.subr.mxu0 0.0
      %3077 = vmatpush1.msra.mxu0 0.0
      %3078 = vmatprep.subr.mxu0 0.0
      %3079 = vmatpush1.msra.mxu0 0.0
      %3080 = vmatprep.subr.mxu0 0.0
      %3081 = vmatpush1.msra.mxu0 0.0
      %3082 = vmatprep.subr.mxu0 0.0
      %3083 = vmatpush1.msra.mxu0 0.0
      %3084 = vmatprep.subr.mxu0 0.0
      %3085 = vmatpush1.msra.mxu0 0.0
      %3086 = vmatprep.subr.mxu0 0.0
      %3087 = vmatpush1.msra.mxu0 0.0
      %3088 = vmatprep.mubr.f32.mxu0 0.0
      %3089 = vmatmul.mubr.f32.gmra.mrb[0].mxu0 %v1467
      %v3090 = vpop.f32.mrb[0].mxu0
      %v3091 = vadd.f32 0.0, %v3090
      %v3092 = vpop.f32.mrb[0].mxu0
      %v3093 = vadd.f32 0.0, %v3092
      %3094 = vmatprep.mubr.f32.mxu0 0.0
      %3095 = vmatmul.mubr.f32.gmra.mrb[0].mxu0 %v1470
      %v3096 = vpop.f32.mrb[0].mxu0
      %v3097 = vadd.f32 0.0, %v3096
      %v3098 = vpop.f32.mrb[0].mxu0
      %v3099 = vadd.f32 0.0, %v3098
      %3100 = vmatprep.mubr.f32.mxu0 0.0
      %3101 = vmatmul.mubr.f32.gmra.mrb[0].mxu0 %v1473
      %v3102 = vpop.f32.mrb[0].mxu0
      %v3103 = vadd.f32 0.0, %v3102
      %v3104 = vpop.f32.mrb[0].mxu0
      %v3105 = vadd.f32 0.0, %v3104
      %3106 = vmatprep.mubr.f32.mxu0 0.0
      %3107 = vmatmul.mubr.f32.gmra.mrb[0].mxu0 %v1476
      %v3108 = vpop.f32.mrb[0].mxu0
      %v3109 = vadd.f32 0.0, %v3108
      %v3110 = vpop.f32.mrb[0].mxu0
      %v3111 = vadd.f32 0.0, %v3110
      %3112 = vmatprep.mubr.f32.mxu0 0.0
      %3113 = vmatmul.mubr.f32.gmra.mrb[0].mxu0 %v1479
      %v3114 = vpop.f32.mrb[0].mxu0
      %v3115 = vadd.f32 0.0, %v3114
      %v3116 = vpop.f32.mrb[0].mxu0
      %v3117 = vadd.f32 0.0, %v3116
      %3118 = vmatprep.mubr.f32.mxu0 0.0
      %3119 = vmatmul.mubr.f32.gmra.mrb[0].mxu0 %v1482
      %v3120 = vpop.f32.mrb[0].mxu0
      %v3121 = vadd.f32 0.0, %v3120
      %v3122 = vpop.f32.mrb[0].mxu0
      %v3123 = vadd.f32 0.0, %v3122
      %3124 = vmatprep.mubr.f32.mxu0 0.0
      %3125 = vmatmul.mubr.f32.gmra.mrb[0].mxu0 %v1485
      %v3126 = vpop.f32.mrb[0].mxu0
      %v3127 = vadd.f32 0.0, %v3126
      %v3128 = vpop.f32.mrb[0].mxu0
      %v3129 = vadd.f32 0.0, %v3128
      %3130 = vmatprep.mubr.f32.mxu0 0.0
      %3131 = vmatmul.mubr.f32.gmra.mrb[0].mxu0 %v1488
      %v3132 = vpop.f32.mrb[0].mxu0
      %v3133 = vadd.f32 0.0, %v3132
      %v3134 = vpop.f32.mrb[0].mxu0
      %v3135 = vadd.f32 0.0, %v3134
      %3136 = vdwg.mxu0
      %3137 = vmatprep.subr.mxu0 %v1549
      %3138 = vmatpush1.msra.mxu0 %v1547
      %3139 = vmatprep.subr.mxu0 0.0
      %3140 = vmatpush1.msra.mxu0 0.0
      %3141 = vmatprep.subr.mxu0 0.0
      %3142 = vmatpush1.msra.mxu0 0.0
      %3143 = vmatprep.subr.mxu0 0.0
      %3144 = vmatpush1.msra.mxu0 0.0
      %3145 = vmatprep.subr.mxu0 0.0
      %3146 = vmatpush1.msra.mxu0 0.0
      %3147 = vmatprep.subr.mxu0 0.0
      %3148 = vmatpush1.msra.mxu0 0.0
      %3149 = vmatprep.subr.mxu0 0.0
      %3150 = vmatpush1.msra.mxu0 0.0
      %3151 = vmatprep.subr.mxu0 0.0
      %3152 = vmatpush1.msra.mxu0 0.0
      %3153 = vmatprep.subr.mxu0 0.0
      %3154 = vmatpush1.msra.mxu0 0.0
      %3155 = vmatprep.subr.mxu0 0.0
      %3156 = vmatpush1.msra.mxu0 0.0
      %3157 = vmatprep.subr.mxu0 0.0
      %3158 = vmatpush1.msra.mxu0 0.0
      %3159 = vmatprep.subr.mxu0 0.0
      %3160 = vmatpush1.msra.mxu0 0.0
      %3161 = vmatprep.subr.mxu0 0.0
      %3162 = vmatpush1.msra.mxu0 0.0
      %3163 = vmatprep.subr.mxu0 0.0
      %3164 = vmatpush1.msra.mxu0 0.0
      %3165 = vmatprep.subr.mxu0 0.0
      %3166 = vmatpush1.msra.mxu0 0.0
      %3167 = vmatprep.subr.mxu0 0.0
      %3168 = vmatpush1.msra.mxu0 0.0
      %3169 = vmatprep.subr.mxu0 0.0
      %3170 = vmatpush1.msra.mxu0 0.0
      %3171 = vmatprep.subr.mxu0 0.0
      %3172 = vmatpush1.msra.mxu0 0.0
      %3173 = vmatprep.subr.mxu0 0.0
      %3174 = vmatpush1.msra.mxu0 0.0
      %3175 = vmatprep.subr.mxu0 0.0
      %3176 = vmatpush1.msra.mxu0 0.0
      %3177 = vmatprep.subr.mxu0 0.0
      %3178 = vmatpush1.msra.mxu0 0.0
      %3179 = vmatprep.subr.mxu0 0.0
      %3180 = vmatpush1.msra.mxu0 0.0
      %3181 = vmatprep.subr.mxu0 0.0
      %3182 = vmatpush1.msra.mxu0 0.0
      %3183 = vmatprep.subr.mxu0 0.0
      %3184 = vmatpush1.msra.mxu0 0.0
      %3185 = vmatprep.subr.mxu0 0.0
      %3186 = vmatpush1.msra.mxu0 0.0
      %3187 = vmatprep.subr.mxu0 0.0
      %3188 = vmatpush1.msra.mxu0 0.0
      %3189 = vmatprep.subr.mxu0 0.0
      %3190 = vmatpush1.msra.mxu0 0.0
      %3191 = vmatprep.subr.mxu0 0.0
      %3192 = vmatpush1.msra.mxu0 0.0
      %3193 = vmatprep.subr.mxu0 0.0
      %3194 = vmatpush1.msra.mxu0 0.0
      %3195 = vmatprep.subr.mxu0 0.0
      %3196 = vmatpush1.msra.mxu0 0.0
      %3197 = vmatprep.subr.mxu0 0.0
      %3198 = vmatpush1.msra.mxu0 0.0
      %3199 = vmatprep.subr.mxu0 0.0
      %3200 = vmatpush1.msra.mxu0 0.0
      %3201 = vmatprep.mubr.f32.mxu0 0.0
      %3202 = vmatmul.mubr.f32.gmra.mrb[0].mxu0 %v1467
      %v3203 = vpop.f32.mrb[0].mxu0
      %v3204 = vadd.f32 0.0, %v3203
      %v3205 = vpop.f32.mrb[0].mxu0
      %v3206 = vadd.f32 0.0, %v3205
      %3207 = vmatprep.mubr.f32.mxu0 0.0
      %3208 = vmatmul.mubr.f32.gmra.mrb[0].mxu0 %v1470
      %v3209 = vpop.f32.mrb[0].mxu0
      %v3210 = vadd.f32 0.0, %v3209
      %v3211 = vpop.f32.mrb[0].mxu0
      %v3212 = vadd.f32 0.0, %v3211
      %3213 = vmatprep.mubr.f32.mxu0 0.0
      %3214 = vmatmul.mubr.f32.gmra.mrb[0].mxu0 %v1473
      %v3215 = vpop.f32.mrb[0].mxu0
      %v3216 = vadd.f32 0.0, %v3215
      %v3217 = vpop.f32.mrb[0].mxu0
      %v3218 = vadd.f32 0.0, %v3217
      %3219 = vmatprep.mubr.f32.mxu0 0.0
      %3220 = vmatmul.mubr.f32.gmra.mrb[0].mxu0 %v1476
      %v3221 = vpop.f32.mrb[0].mxu0
      %v3222 = vadd.f32 0.0, %v3221
      %v3223 = vpop.f32.mrb[0].mxu0
      %v3224 = vadd.f32 0.0, %v3223
      %3225 = vmatprep.mubr.f32.mxu0 0.0
      %3226 = vmatmul.mubr.f32.gmra.mrb[0].mxu0 %v1479
      %v3227 = vpop.f32.mrb[0].mxu0
      %v3228 = vadd.f32 0.0, %v3227
      %v3229 = vpop.f32.mrb[0].mxu0
      %v3230 = vadd.f32 0.0, %v3229
      %3231 = vmatprep.mubr.f32.mxu0 0.0
      %3232 = vmatmul.mubr.f32.gmra.mrb[0].mxu0 %v1482
      %v3233 = vpop.f32.mrb[0].mxu0
      %v3234 = vadd.f32 0.0, %v3233
      %v3235 = vpop.f32.mrb[0].mxu0
      %v3236 = vadd.f32 0.0, %v3235
      %3237 = vmatprep.mubr.f32.mxu0 0.0
      %3238 = vmatmul.mubr.f32.gmra.mrb[0].mxu0 %v1485
      %v3239 = vpop.f32.mrb[0].mxu0
      %v3240 = vadd.f32 0.0, %v3239
      %v3241 = vpop.f32.mrb[0].mxu0
      %v3242 = vadd.f32 0.0, %v3241
      %3243 = vmatprep.mubr.f32.mxu0 0.0
      %3244 = vmatmul.mubr.f32.gmra.mrb[0].mxu0 %v1488
      %v3245 = vpop.f32.mrb[0].mxu0
      %v3246 = vadd.f32 0.0, %v3245
      %v3247 = vpop.f32.mrb[0].mxu0
      %v3248 = vadd.f32 0.0, %v3247
      %3249 = vdwg.mxu0
      %3250 = vmatprep.subr.mxu0 %v1553
      %3251 = vmatpush1.msra.mxu0 %v1551
      %3252 = vmatprep.subr.mxu0 0.0
      %3253 = vmatpush1.msra.mxu0 0.0
      %3254 = vmatprep.subr.mxu0 0.0
      %3255 = vmatpush1.msra.mxu0 0.0
      %3256 = vmatprep.subr.mxu0 0.0
      %3257 = vmatpush1.msra.mxu0 0.0
      %3258 = vmatprep.subr.mxu0 0.0
      %3259 = vmatpush1.msra.mxu0 0.0
      %3260 = vmatprep.subr.mxu0 0.0
      %3261 = vmatpush1.msra.mxu0 0.0
      %3262 = vmatprep.subr.mxu0 0.0
      %3263 = vmatpush1.msra.mxu0 0.0
      %3264 = vmatprep.subr.mxu0 0.0
      %3265 = vmatpush1.msra.mxu0 0.0
      %3266 = vmatprep.subr.mxu0 0.0
      %3267 = vmatpush1.msra.mxu0 0.0
      %3268 = vmatprep.subr.mxu0 0.0
      %3269 = vmatpush1.msra.mxu0 0.0
      %3270 = vmatprep.subr.mxu0 0.0
      %3271 = vmatpush1.msra.mxu0 0.0
      %3272 = vmatprep.subr.mxu0 0.0
      %3273 = vmatpush1.msra.mxu0 0.0
      %3274 = vmatprep.subr.mxu0 0.0
      %3275 = vmatpush1.msra.mxu0 0.0
      %3276 = vmatprep.subr.mxu0 0.0
      %3277 = vmatpush1.msra.mxu0 0.0
      %3278 = vmatprep.subr.mxu0 0.0
      %3279 = vmatpush1.msra.mxu0 0.0
      %3280 = vmatprep.subr.mxu0 0.0
      %3281 = vmatpush1.msra.mxu0 0.0
      %3282 = vmatprep.subr.mxu0 0.0
      %3283 = vmatpush1.msra.mxu0 0.0
      %3284 = vmatprep.subr.mxu0 0.0
      %3285 = vmatpush1.msra.mxu0 0.0
      %3286 = vmatprep.subr.mxu0 0.0
      %3287 = vmatpush1.msra.mxu0 0.0
      %3288 = vmatprep.subr.mxu0 0.0
      %3289 = vmatpush1.msra.mxu0 0.0
      %3290 = vmatprep.subr.mxu0 0.0
      %3291 = vmatpush1.msra.mxu0 0.0
      %3292 = vmatprep.subr.mxu0 0.0
      %3293 = vmatpush1.msra.mxu0 0.0
      %3294 = vmatprep.subr.mxu0 0.0
      %3295 = vmatpush1.msra.mxu0 0.0
      %3296 = vmatprep.subr.mxu0 0.0
      %3297 = vmatpush1.msra.mxu0 0.0
      %3298 = vmatprep.subr.mxu0 0.0
      %3299 = vmatpush1.msra.mxu0 0.0
      %3300 = vmatprep.subr.mxu0 0.0
      %3301 = vmatpush1.msra.mxu0 0.0
      %3302 = vmatprep.subr.mxu0 0.0
      %3303 = vmatpush1.msra.mxu0 0.0
      %3304 = vmatprep.subr.mxu0 0.0
      %3305 = vmatpush1.msra.mxu0 0.0
      %3306 = vmatprep.subr.mxu0 0.0
      %3307 = vmatpush1.msra.mxu0 0.0
      %3308 = vmatprep.subr.mxu0 0.0
      %3309 = vmatpush1.msra.mxu0 0.0
      %3310 = vmatprep.subr.mxu0 0.0
      %3311 = vmatpush1.msra.mxu0 0.0
      %3312 = vmatprep.subr.mxu0 0.0
      %3313 = vmatpush1.msra.mxu0 0.0
      %3314 = vmatprep.mubr.f32.mxu0 0.0
      %3315 = vmatmul.mubr.f32.gmra.mrb[0].mxu0 %v1467
      %v3316 = vpop.f32.mrb[0].mxu0
      %v3317 = vadd.f32 0.0, %v3316
      %v3318 = vpop.f32.mrb[0].mxu0
      %v3319 = vadd.f32 0.0, %v3318
      %3320 = vmatprep.mubr.f32.mxu0 0.0
      %3321 = vmatmul.mubr.f32.gmra.mrb[0].mxu0 %v1470
      %v3322 = vpop.f32.mrb[0].mxu0
      %v3323 = vadd.f32 0.0, %v3322
      %v3324 = vpop.f32.mrb[0].mxu0
      %v3325 = vadd.f32 0.0, %v3324
      %3326 = vmatprep.mubr.f32.mxu0 0.0
      %3327 = vmatmul.mubr.f32.gmra.mrb[0].mxu0 %v1473
      %v3328 = vpop.f32.mrb[0].mxu0
      %v3329 = vadd.f32 0.0, %v3328
      %v3330 = vpop.f32.mrb[0].mxu0
      %v3331 = vadd.f32 0.0, %v3330
      %3332 = vmatprep.mubr.f32.mxu0 0.0
      %3333 = vmatmul.mubr.f32.gmra.mrb[0].mxu0 %v1476
      %v3334 = vpop.f32.mrb[0].mxu0
      %v3335 = vadd.f32 0.0, %v3334
      %v3336 = vpop.f32.mrb[0].mxu0
      %v3337 = vadd.f32 0.0, %v3336
      %3338 = vmatprep.mubr.f32.mxu0 0.0
      %3339 = vmatmul.mubr.f32.gmra.mrb[0].mxu0 %v1479
      %v3340 = vpop.f32.mrb[0].mxu0
      %v3341 = vadd.f32 0.0, %v3340
      %v3342 = vpop.f32.mrb[0].mxu0
      %v3343 = vadd.f32 0.0, %v3342
      %3344 = vmatprep.mubr.f32.mxu0 0.0
      %3345 = vmatmul.mubr.f32.gmra.mrb[0].mxu0 %v1482
      %v3346 = vpop.f32.mrb[0].mxu0
      %v3347 = vadd.f32 0.0, %v3346
      %v3348 = vpop.f32.mrb[0].mxu0
      %v3349 = vadd.f32 0.0, %v3348
      %3350 = vmatprep.mubr.f32.mxu0 0.0
      %3351 = vmatmul.mubr.f32.gmra.mrb[0].mxu0 %v1485
      %v3352 = vpop.f32.mrb[0].mxu0
      %v3353 = vadd.f32 0.0, %v3352
      %v3354 = vpop.f32.mrb[0].mxu0
      %v3355 = vadd.f32 0.0, %v3354
      %3356 = vmatprep.mubr.f32.mxu0 0.0
      %3357 = vmatmul.mubr.f32.gmra.mrb[0].mxu0 %v1488
      %v3358 = vpop.f32.mrb[0].mxu0
      %v3359 = vadd.f32 0.0, %v3358
      %v3360 = vpop.f32.mrb[0].mxu0
      %v3361 = vadd.f32 0.0, %v3360
      %3362 = vdwg.mxu0
      %v3363 = vmax.f32 %v1622, 0.0
      %v3364 = vmax.f32 %v1624, 0.0
      %v3365 = vmax.f32 %v1735, 0.0
      %v3366 = vmax.f32 %v1737, 0.0
      %v3367 = vmax.f32 %v1848, 0.0
      %v3368 = vmax.f32 %v1850, 0.0
      %v3369 = vmax.f32 %v1961, 0.0
      %v3370 = vmax.f32 %v1963, 0.0
      %v3371 = vmax.f32 %v2074, 0.0
      %v3372 = vmax.f32 %v2076, 0.0
      %v3373 = vmax.f32 %v2187, 0.0
      %v3374 = vmax.f32 %v2189, 0.0
      %v3375 = vmax.f32 %v2300, 0.0
      %v3376 = vmax.f32 %v2302, 0.0
      %v3377 = vmax.f32 %v2413, 0.0
      %v3378 = vmax.f32 %v2415, 0.0
      %v3379 = vmax.f32 %v2526, 0.0
      %v3380 = vmax.f32 %v2528, 0.0
      %v3381 = vmax.f32 %v2639, 0.0
      %v3382 = vmax.f32 %v2641, 0.0
      %v3383 = vmax.f32 %v2752, 0.0
      %v3384 = vmax.f32 %v2754, 0.0
      %v3385 = vmax.f32 %v2865, 0.0
      %v3386 = vmax.f32 %v2867, 0.0
      %v3387 = vmax.f32 %v2978, 0.0
      %v3388 = vmax.f32 %v2980, 0.0
      %v3389 = vmax.f32 %v3091, 0.0
      %v3390 = vmax.f32 %v3093, 0.0
      %v3391 = vmax.f32 %v3204, 0.0
      %v3392 = vmax.f32 %v3206, 0.0
      %v3393 = vmax.f32 %v3317, 0.0
      %v3394 = vmax.f32 %v3319, 0.0
      %v3395 = vmax.f32 %v1628, 0.0
      %v3396 = vmax.f32 %v1630, 0.0
      %v3397 = vmax.f32 %v1741, 0.0
      %v3398 = vmax.f32 %v1743, 0.0
      %v3399 = vmax.f32 %v1854, 0.0
      %v3400 = vmax.f32 %v1856, 0.0
      %v3401 = vmax.f32 %v1967, 0.0
      %v3402 = vmax.f32 %v1969, 0.0
      %v3403 = vmax.f32 %v2080, 0.0
      %v3404 = vmax.f32 %v2082, 0.0
      %v3405 = vmax.f32 %v2193, 0.0
      %v3406 = vmax.f32 %v2195, 0.0
      %v3407 = vmax.f32 %v2306, 0.0
      %v3408 = vmax.f32 %v2308, 0.0
      %v3409 = vmax.f32 %v2419, 0.0
      %v3410 = vmax.f32 %v2421, 0.0
      %v3411 = vmax.f32 %v2532, 0.0
      %v3412 = vmax.f32 %v2534, 0.0
      %v3413 = vmax.f32 %v2645, 0.0
      %v3414 = vmax.f32 %v2647, 0.0
      %v3415 = vmax.f32 %v2758, 0.0
      %v3416 = vmax.f32 %v2760, 0.0
      %v3417 = vmax.f32 %v2871, 0.0
      %v3418 = vmax.f32 %v2873, 0.0
      %v3419 = vmax.f32 %v2984, 0.0
      %v3420 = vmax.f32 %v2986, 0.0
      %v3421 = vmax.f32 %v3097, 0.0
      %v3422 = vmax.f32 %v3099, 0.0
      %v3423 = vmax.f32 %v3210, 0.0
      %v3424 = vmax.f32 %v3212, 0.0
      %v3425 = vmax.f32 %v3323, 0.0
      %v3426 = vmax.f32 %v3325, 0.0
      %v3427 = vmax.f32 %v1634, 0.0
      %v3428 = vmax.f32 %v1636, 0.0
      %v3429 = vmax.f32 %v1747, 0.0
      %v3430 = vmax.f32 %v1749, 0.0
      %v3431 = vmax.f32 %v1860, 0.0
      %v3432 = vmax.f32 %v1862, 0.0
      %v3433 = vmax.f32 %v1973, 0.0
      %v3434 = vmax.f32 %v1975, 0.0
      %v3435 = vmax.f32 %v2086, 0.0
      %v3436 = vmax.f32 %v2088, 0.0
      %v3437 = vmax.f32 %v2199, 0.0
      %v3438 = vmax.f32 %v2201, 0.0
      %v3439 = vmax.f32 %v2312, 0.0
      %v3440 = vmax.f32 %v2314, 0.0
      %v3441 = vmax.f32 %v2425, 0.0
      %v3442 = vmax.f32 %v2427, 0.0
      %v3443 = vmax.f32 %v2538, 0.0
      %v3444 = vmax.f32 %v2540, 0.0
      %v3445 = vmax.f32 %v2651, 0.0
      %v3446 = vmax.f32 %v2653, 0.0
      %v3447 = vmax.f32 %v2764, 0.0
      %v3448 = vmax.f32 %v2766, 0.0
      %v3449 = vmax.f32 %v2877, 0.0
      %v3450 = vmax.f32 %v2879, 0.0
      %v3451 = vmax.f32 %v2990, 0.0
      %v3452 = vmax.f32 %v2992, 0.0
      %v3453 = vmax.f32 %v3103, 0.0
      %v3454 = vmax.f32 %v3105, 0.0
      %v3455 = vmax.f32 %v3216, 0.0
      %v3456 = vmax.f32 %v3218, 0.0
      %v3457 = vmax.f32 %v3329, 0.0
      %v3458 = vmax.f32 %v3331, 0.0
      %v3459 = vmax.f32 %v1640, 0.0
      %v3460 = vmax.f32 %v1642, 0.0
      %v3461 = vmax.f32 %v1753, 0.0
      %v3462 = vmax.f32 %v1755, 0.0
      %v3463 = vmax.f32 %v1866, 0.0
      %v3464 = vmax.f32 %v1868, 0.0
      %v3465 = vmax.f32 %v1979, 0.0
      %v3466 = vmax.f32 %v1981, 0.0
      %v3467 = vmax.f32 %v2092, 0.0
      %v3468 = vmax.f32 %v2094, 0.0
      %v3469 = vmax.f32 %v2205, 0.0
      %v3470 = vmax.f32 %v2207, 0.0
      %v3471 = vmax.f32 %v2318, 0.0
      %v3472 = vmax.f32 %v2320, 0.0
      %v3473 = vmax.f32 %v2431, 0.0
      %v3474 = vmax.f32 %v2433, 0.0
      %v3475 = vmax.f32 %v2544, 0.0
      %v3476 = vmax.f32 %v2546, 0.0
      %v3477 = vmax.f32 %v2657, 0.0
      %v3478 = vmax.f32 %v2659, 0.0
      %v3479 = vmax.f32 %v2770, 0.0
      %v3480 = vmax.f32 %v2772, 0.0
      %v3481 = vmax.f32 %v2883, 0.0
      %v3482 = vmax.f32 %v2885, 0.0
      %v3483 = vmax.f32 %v2996, 0.0
      %v3484 = vmax.f32 %v2998, 0.0
      %v3485 = vmax.f32 %v3109, 0.0
      %v3486 = vmax.f32 %v3111, 0.0
      %v3487 = vmax.f32 %v3222, 0.0
      %v3488 = vmax.f32 %v3224, 0.0
      %v3489 = vmax.f32 %v3335, 0.0
      %v3490 = vmax.f32 %v3337, 0.0
      %v3491 = vmax.f32 %v1646, 0.0
      %v3492 = vmax.f32 %v1648, 0.0
      %v3493 = vmax.f32 %v1759, 0.0
      %v3494 = vmax.f32 %v1761, 0.0
      %v3495 = vmax.f32 %v1872, 0.0
      %v3496 = vmax.f32 %v1874, 0.0
      %v3497 = vmax.f32 %v1985, 0.0
      %v3498 = vmax.f32 %v1987, 0.0
      %v3499 = vmax.f32 %v2098, 0.0
      %v3500 = vmax.f32 %v2100, 0.0
      %v3501 = vmax.f32 %v2211, 0.0
      %v3502 = vmax.f32 %v2213, 0.0
      %v3503 = vmax.f32 %v2324, 0.0
      %v3504 = vmax.f32 %v2326, 0.0
      %v3505 = vmax.f32 %v2437, 0.0
      %v3506 = vmax.f32 %v2439, 0.0
      %v3507 = vmax.f32 %v2550, 0.0
      %v3508 = vmax.f32 %v2552, 0.0
      %v3509 = vmax.f32 %v2663, 0.0
      %v3510 = vmax.f32 %v2665, 0.0
      %v3511 = vmax.f32 %v2776, 0.0
      %v3512 = vmax.f32 %v2778, 0.0
      %v3513 = vmax.f32 %v2889, 0.0
      %v3514 = vmax.f32 %v2891, 0.0
      %v3515 = vmax.f32 %v3002, 0.0
      %v3516 = vmax.f32 %v3004, 0.0
      %v3517 = vmax.f32 %v3115, 0.0
      %v3518 = vmax.f32 %v3117, 0.0
      %v3519 = vmax.f32 %v3228, 0.0
      %v3520 = vmax.f32 %v3230, 0.0
      %v3521 = vmax.f32 %v3341, 0.0
      %v3522 = vmax.f32 %v3343, 0.0
      %v3523 = vmax.f32 %v1652, 0.0
      %v3524 = vmax.f32 %v1654, 0.0
      %v3525 = vmax.f32 %v1765, 0.0
      %v3526 = vmax.f32 %v1767, 0.0
      %v3527 = vmax.f32 %v1878, 0.0
      %v3528 = vmax.f32 %v1880, 0.0
      %v3529 = vmax.f32 %v1991, 0.0
      %v3530 = vmax.f32 %v1993, 0.0
      %v3531 = vmax.f32 %v2104, 0.0
      %v3532 = vmax.f32 %v2106, 0.0
      %v3533 = vmax.f32 %v2217, 0.0
      %v3534 = vmax.f32 %v2219, 0.0
      %v3535 = vmax.f32 %v2330, 0.0
      %v3536 = vmax.f32 %v2332, 0.0
      %v3537 = vmax.f32 %v2443, 0.0
      %v3538 = vmax.f32 %v2445, 0.0
      %v3539 = vmax.f32 %v2556, 0.0
      %v3540 = vmax.f32 %v2558, 0.0
      %v3541 = vmax.f32 %v2669, 0.0
      %v3542 = vmax.f32 %v2671, 0.0
      %v3543 = vmax.f32 %v2782, 0.0
      %v3544 = vmax.f32 %v2784, 0.0
      %v3545 = vmax.f32 %v2895, 0.0
      %v3546 = vmax.f32 %v2897, 0.0
      %v3547 = vmax.f32 %v3008, 0.0
      %v3548 = vmax.f32 %v3010, 0.0
      %v3549 = vmax.f32 %v3121, 0.0
      %v3550 = vmax.f32 %v3123, 0.0
      %v3551 = vmax.f32 %v3234, 0.0
      %v3552 = vmax.f32 %v3236, 0.0
      %v3553 = vmax.f32 %v3347, 0.0
      %v3554 = vmax.f32 %v3349, 0.0
      %v3555 = vmax.f32 %v1658, 0.0
      %v3556 = vmax.f32 %v1660, 0.0
      %v3557 = vmax.f32 %v1771, 0.0
      %v3558 = vmax.f32 %v1773, 0.0
      %v3559 = vmax.f32 %v1884, 0.0
      %v3560 = vmax.f32 %v1886, 0.0
      %v3561 = vmax.f32 %v1997, 0.0
      %v3562 = vmax.f32 %v1999, 0.0
      %v3563 = vmax.f32 %v2110, 0.0
      %v3564 = vmax.f32 %v2112, 0.0
      %v3565 = vmax.f32 %v2223, 0.0
      %v3566 = vmax.f32 %v2225, 0.0
      %v3567 = vmax.f32 %v2336, 0.0
      %v3568 = vmax.f32 %v2338, 0.0
      %v3569 = vmax.f32 %v2449, 0.0
      %v3570 = vmax.f32 %v2451, 0.0
      %v3571 = vmax.f32 %v2562, 0.0
      %v3572 = vmax.f32 %v2564, 0.0
      %v3573 = vmax.f32 %v2675, 0.0
      %v3574 = vmax.f32 %v2677, 0.0
      %v3575 = vmax.f32 %v2788, 0.0
      %v3576 = vmax.f32 %v2790, 0.0
      %v3577 = vmax.f32 %v2901, 0.0
      %v3578 = vmax.f32 %v2903, 0.0
      %v3579 = vmax.f32 %v3014, 0.0
      %v3580 = vmax.f32 %v3016, 0.0
      %v3581 = vmax.f32 %v3127, 0.0
      %v3582 = vmax.f32 %v3129, 0.0
      %v3583 = vmax.f32 %v3240, 0.0
      %v3584 = vmax.f32 %v3242, 0.0
      %v3585 = vmax.f32 %v3353, 0.0
      %v3586 = vmax.f32 %v3355, 0.0
      %v3587 = vmax.f32 %v1664, 0.0
      %v3588 = vmax.f32 %v1666, 0.0
      %v3589 = vmax.f32 %v1777, 0.0
      %v3590 = vmax.f32 %v1779, 0.0
      %v3591 = vmax.f32 %v1890, 0.0
      %v3592 = vmax.f32 %v1892, 0.0
      %v3593 = vmax.f32 %v2003, 0.0
      %v3594 = vmax.f32 %v2005, 0.0
      %v3595 = vmax.f32 %v2116, 0.0
      %v3596 = vmax.f32 %v2118, 0.0
      %v3597 = vmax.f32 %v2229, 0.0
      %v3598 = vmax.f32 %v2231, 0.0
      %v3599 = vmax.f32 %v2342, 0.0
      %v3600 = vmax.f32 %v2344, 0.0
      %v3601 = vmax.f32 %v2455, 0.0
      %v3602 = vmax.f32 %v2457, 0.0
      %v3603 = vmax.f32 %v2568, 0.0
      %v3604 = vmax.f32 %v2570, 0.0
      %v3605 = vmax.f32 %v2681, 0.0
      %v3606 = vmax.f32 %v2683, 0.0
      %v3607 = vmax.f32 %v2794, 0.0
      %v3608 = vmax.f32 %v2796, 0.0
      %v3609 = vmax.f32 %v2907, 0.0
      %v3610 = vmax.f32 %v2909, 0.0
      %v3611 = vmax.f32 %v3020, 0.0
      %v3612 = vmax.f32 %v3022, 0.0
      %v3613 = vmax.f32 %v3133, 0.0
      %v3614 = vmax.f32 %v3135, 0.0
      %v3615 = vmax.f32 %v3246, 0.0
      %v3616 = vmax.f32 %v3248, 0.0
      %v3617 = vmax.f32 %v3359, 0.0
      %v3618 = vmax.f32 %v3361, 0.0
      %v3619 = vmax.f32 %v3363, %v3364
      %v3620 = vmax.f32 %v3395, %v3396
      %v3621 = vmax.f32 %v3427, %v3428
      %v3622 = vmax.f32 %v3459, %v3460
      %v3623 = vmax.f32 %v3491, %v3492
      %v3624 = vmax.f32 %v3523, %v3524
      %v3625 = vmax.f32 %v3555, %v3556
      %v3626 = vmax.f32 %v3587, %v3588
      %v3627 = vmax.f32 %v3365, %v3366
      %v3628 = vmax.f32 %v3397, %v3398
      %v3629 = vmax.f32 %v3429, %v3430
      %v3630 = vmax.f32 %v3461, %v3462
      %v3631 = vmax.f32 %v3493, %v3494
      %v3632 = vmax.f32 %v3525, %v3526
      %v3633 = vmax.f32 %v3557, %v3558
      %v3634 = vmax.f32 %v3589, %v3590
      %v3635 = vmax.f32 %v3367, %v3368
      %v3636 = vmax.f32 %v3399, %v3400
      %v3637 = vmax.f32 %v3431, %v3432
      %v3638 = vmax.f32 %v3463, %v3464
      %v3639 = vmax.f32 %v3495, %v3496
      %v3640 = vmax.f32 %v3527, %v3528
      %v3641 = vmax.f32 %v3559, %v3560
      %v3642 = vmax.f32 %v3591, %v3592
      %v3643 = vmax.f32 %v3369, %v3370
      %v3644 = vmax.f32 %v3401, %v3402
      %v3645 = vmax.f32 %v3433, %v3434
      %v3646 = vmax.f32 %v3465, %v3466
      %v3647 = vmax.f32 %v3497, %v3498
      %v3648 = vmax.f32 %v3529, %v3530
      %v3649 = vmax.f32 %v3561, %v3562
      %v3650 = vmax.f32 %v3593, %v3594
      %v3651 = vmax.f32 %v3371, %v3372
      %v3652 = vmax.f32 %v3403, %v3404
      %v3653 = vmax.f32 %v3435, %v3436
      %v3654 = vmax.f32 %v3467, %v3468
      %v3655 = vmax.f32 %v3499, %v3500
      %v3656 = vmax.f32 %v3531, %v3532
      %v3657 = vmax.f32 %v3563, %v3564
      %v3658 = vmax.f32 %v3595, %v3596
      %v3659 = vmax.f32 %v3373, %v3374
      %v3660 = vmax.f32 %v3405, %v3406
      %v3661 = vmax.f32 %v3437, %v3438
      %v3662 = vmax.f32 %v3469, %v3470
      %v3663 = vmax.f32 %v3501, %v3502
      %v3664 = vmax.f32 %v3533, %v3534
      %v3665 = vmax.f32 %v3565, %v3566
      %v3666 = vmax.f32 %v3597, %v3598
      %v3667 = vmax.f32 %v3375, %v3376
      %v3668 = vmax.f32 %v3407, %v3408
      %v3669 = vmax.f32 %v3439, %v3440
      %v3670 = vmax.f32 %v3471, %v3472
      %v3671 = vmax.f32 %v3503, %v3504
      %v3672 = vmax.f32 %v3535, %v3536
      %v3673 = vmax.f32 %v3567, %v3568
      %v3674 = vmax.f32 %v3599, %v3600
      %v3675 = vmax.f32 %v3377, %v3378
      %v3676 = vmax.f32 %v3409, %v3410
      %v3677 = vmax.f32 %v3441, %v3442
      %v3678 = vmax.f32 %v3473, %v3474
      %v3679 = vmax.f32 %v3505, %v3506
      %v3680 = vmax.f32 %v3537, %v3538
      %v3681 = vmax.f32 %v3569, %v3570
      %v3682 = vmax.f32 %v3601, %v3602
      %v3683 = vmax.f32 %v3379, %v3380
      %v3684 = vmax.f32 %v3411, %v3412
      %v3685 = vmax.f32 %v3443, %v3444
      %v3686 = vmax.f32 %v3475, %v3476
      %v3687 = vmax.f32 %v3507, %v3508
      %v3688 = vmax.f32 %v3539, %v3540
      %v3689 = vmax.f32 %v3571, %v3572
      %v3690 = vmax.f32 %v3603, %v3604
      %v3691 = vmax.f32 %v3381, %v3382
      %v3692 = vmax.f32 %v3413, %v3414
      %v3693 = vmax.f32 %v3445, %v3446
      %v3694 = vmax.f32 %v3477, %v3478
      %v3695 = vmax.f32 %v3509, %v3510
      %v3696 = vmax.f32 %v3541, %v3542
      %v3697 = vmax.f32 %v3573, %v3574
      %v3698 = vmax.f32 %v3605, %v3606
      %v3699 = vmax.f32 %v3383, %v3384
      %v3700 = vmax.f32 %v3415, %v3416
      %v3701 = vmax.f32 %v3447, %v3448
      %v3702 = vmax.f32 %v3479, %v3480
      %v3703 = vmax.f32 %v3511, %v3512
      %v3704 = vmax.f32 %v3543, %v3544
      %v3705 = vmax.f32 %v3575, %v3576
      %v3706 = vmax.f32 %v3607, %v3608
      %v3707 = vmax.f32 %v3385, %v3386
      %v3708 = vmax.f32 %v3417, %v3418
      %v3709 = vmax.f32 %v3449, %v3450
      %v3710 = vmax.f32 %v3481, %v3482
      %v3711 = vmax.f32 %v3513, %v3514
      %v3712 = vmax.f32 %v3545, %v3546
      %v3713 = vmax.f32 %v3577, %v3578
      %v3714 = vmax.f32 %v3609, %v3610
      %v3715 = vmax.f32 %v3387, %v3388
      %v3716 = vmax.f32 %v3419, %v3420
      %v3717 = vmax.f32 %v3451, %v3452
      %v3718 = vmax.f32 %v3483, %v3484
      %v3719 = vmax.f32 %v3515, %v3516
      %v3720 = vmax.f32 %v3547, %v3548
      %v3721 = vmax.f32 %v3579, %v3580
      %v3722 = vmax.f32 %v3611, %v3612
      %v3723 = vmax.f32 %v3389, %v3390
      %v3724 = vmax.f32 %v3421, %v3422
      %v3725 = vmax.f32 %v3453, %v3454
      %v3726 = vmax.f32 %v3485, %v3486
      %v3727 = vmax.f32 %v3517, %v3518
      %v3728 = vmax.f32 %v3549, %v3550
      %v3729 = vmax.f32 %v3581, %v3582
      %v3730 = vmax.f32 %v3613, %v3614
      %v3731 = vmax.f32 %v3391, %v3392
      %v3732 = vmax.f32 %v3423, %v3424
      %v3733 = vmax.f32 %v3455, %v3456
      %v3734 = vmax.f32 %v3487, %v3488
      %v3735 = vmax.f32 %v3519, %v3520
      %v3736 = vmax.f32 %v3551, %v3552
      %v3737 = vmax.f32 %v3583, %v3584
      %v3738 = vmax.f32 %v3615, %v3616
      %v3739 = vmax.f32 %v3393, %v3394
      %v3740 = vmax.f32 %v3425, %v3426
      %v3741 = vmax.f32 %v3457, %v3458
      %v3742 = vmax.f32 %v3489, %v3490
      %v3743 = vmax.f32 %v3521, %v3522
      %v3744 = vmax.f32 %v3553, %v3554
      %v3745 = vmax.f32 %v3585, %v3586
      %v3746 = vmax.f32 %v3617, %v3618
      %v3747 = vmax.f32 %v3619, %v3627
      %v3748 = vmax.f32 %v3620, %v3628
      %v3749 = vmax.f32 %v3621, %v3629
      %v3750 = vmax.f32 %v3622, %v3630
      %v3751 = vmax.f32 %v3623, %v3631
      %v3752 = vmax.f32 %v3624, %v3632
      %v3753 = vmax.f32 %v3625, %v3633
      %v3754 = vmax.f32 %v3626, %v3634
      %v3755 = vmax.f32 %v3635, %v3643
      %v3756 = vmax.f32 %v3636, %v3644
      %v3757 = vmax.f32 %v3637, %v3645
      %v3758 = vmax.f32 %v3638, %v3646
      %v3759 = vmax.f32 %v3639, %v3647
      %v3760 = vmax.f32 %v3640, %v3648
      %v3761 = vmax.f32 %v3641, %v3649
      %v3762 = vmax.f32 %v3642, %v3650
      %v3763 = vmax.f32 %v3651, %v3659
      %v3764 = vmax.f32 %v3652, %v3660
      %v3765 = vmax.f32 %v3653, %v3661
      %v3766 = vmax.f32 %v3654, %v3662
      %v3767 = vmax.f32 %v3655, %v3663
      %v3768 = vmax.f32 %v3656, %v3664
      %v3769 = vmax.f32 %v3657, %v3665
      %v3770 = vmax.f32 %v3658, %v3666
      %v3771 = vmax.f32 %v3667, %v3675
      %v3772 = vmax.f32 %v3668, %v3676
      %v3773 = vmax.f32 %v3669, %v3677
      %v3774 = vmax.f32 %v3670, %v3678
      %v3775 = vmax.f32 %v3671, %v3679
      %v3776 = vmax.f32 %v3672, %v3680
      %v3777 = vmax.f32 %v3673, %v3681
      %v3778 = vmax.f32 %v3674, %v3682
      %v3779 = vmax.f32 %v3683, %v3691
      %v3780 = vmax.f32 %v3684, %v3692
      %v3781 = vmax.f32 %v3685, %v3693
      %v3782 = vmax.f32 %v3686, %v3694
      %v3783 = vmax.f32 %v3687, %v3695
      %v3784 = vmax.f32 %v3688, %v3696
      %v3785 = vmax.f32 %v3689, %v3697
      %v3786 = vmax.f32 %v3690, %v3698
      %v3787 = vmax.f32 %v3699, %v3707
      %v3788 = vmax.f32 %v3700, %v3708
      %v3789 = vmax.f32 %v3701, %v3709
      %v3790 = vmax.f32 %v3702, %v3710
      %v3791 = vmax.f32 %v3703, %v3711
      %v3792 = vmax.f32 %v3704, %v3712
      %v3793 = vmax.f32 %v3705, %v3713
      %v3794 = vmax.f32 %v3706, %v3714
      %v3795 = vmax.f32 %v3715, %v3723
      %v3796 = vmax.f32 %v3716, %v3724
      %v3797 = vmax.f32 %v3717, %v3725
      %v3798 = vmax.f32 %v3718, %v3726
      %v3799 = vmax.f32 %v3719, %v3727
      %v3800 = vmax.f32 %v3720, %v3728
      %v3801 = vmax.f32 %v3721, %v3729
      %v3802 = vmax.f32 %v3722, %v3730
      %v3803 = vmax.f32 %v3731, %v3739
      %v3804 = vmax.f32 %v3732, %v3740
      %v3805 = vmax.f32 %v3733, %v3741
      %v3806 = vmax.f32 %v3734, %v3742
      %v3807 = vmax.f32 %v3735, %v3743
      %v3808 = vmax.f32 %v3736, %v3744
      %v3809 = vmax.f32 %v3737, %v3745
      %v3810 = vmax.f32 %v3738, %v3746
      %v3811 = vmax.f32 %v3747, %v3755
      %v3812 = vmax.f32 %v3748, %v3756
      %v3813 = vmax.f32 %v3749, %v3757
      %v3814 = vmax.f32 %v3750, %v3758
      %v3815 = vmax.f32 %v3751, %v3759
      %v3816 = vmax.f32 %v3752, %v3760
      %v3817 = vmax.f32 %v3753, %v3761
      %v3818 = vmax.f32 %v3754, %v3762
      %v3819 = vmax.f32 %v3763, %v3771
      %v3820 = vmax.f32 %v3764, %v3772
      %v3821 = vmax.f32 %v3765, %v3773
      %v3822 = vmax.f32 %v3766, %v3774
      %v3823 = vmax.f32 %v3767, %v3775
      %v3824 = vmax.f32 %v3768, %v3776
      %v3825 = vmax.f32 %v3769, %v3777
      %v3826 = vmax.f32 %v3770, %v3778
      %v3827 = vmax.f32 %v3779, %v3787
      %v3828 = vmax.f32 %v3780, %v3788
      %v3829 = vmax.f32 %v3781, %v3789
      %v3830 = vmax.f32 %v3782, %v3790
      %v3831 = vmax.f32 %v3783, %v3791
      %v3832 = vmax.f32 %v3784, %v3792
      %v3833 = vmax.f32 %v3785, %v3793
      %v3834 = vmax.f32 %v3786, %v3794
      %v3835 = vmax.f32 %v3795, %v3803
      %v3836 = vmax.f32 %v3796, %v3804
      %v3837 = vmax.f32 %v3797, %v3805
      %v3838 = vmax.f32 %v3798, %v3806
      %v3839 = vmax.f32 %v3799, %v3807
      %v3840 = vmax.f32 %v3800, %v3808
      %v3841 = vmax.f32 %v3801, %v3809
      %v3842 = vmax.f32 %v3802, %v3810
      %v3843 = vmax.f32 %v3811, %v3819
      %v3844 = vmax.f32 %v3812, %v3820
      %v3845 = vmax.f32 %v3813, %v3821
      %v3846 = vmax.f32 %v3814, %v3822
      %v3847 = vmax.f32 %v3815, %v3823
      %v3848 = vmax.f32 %v3816, %v3824
      %v3849 = vmax.f32 %v3817, %v3825
      %v3850 = vmax.f32 %v3818, %v3826
      %v3851 = vmax.f32 %v3827, %v3835
      %v3852 = vmax.f32 %v3828, %v3836
      %v3853 = vmax.f32 %v3829, %v3837
      %v3854 = vmax.f32 %v3830, %v3838
      %v3855 = vmax.f32 %v3831, %v3839
      %v3856 = vmax.f32 %v3832, %v3840
      %v3857 = vmax.f32 %v3833, %v3841
      %v3858 = vmax.f32 %v3834, %v3842
      %v3859 = vmax.f32 %v3843, %v3851
      %v3860 = vmax.f32 %v3844, %v3852
      %v3861 = vmax.f32 %v3845, %v3853
      %v3862 = vmax.f32 %v3846, %v3854
      %v3863 = vmax.f32 %v3847, %v3855
      %v3864 = vmax.f32 %v3848, %v3856
      %v3865 = vmax.f32 %v3849, %v3857
      %v3866 = vmax.f32 %v3850, %v3858
      %v3867 = vld [vmem:[%s278] sm:$0xff]
      %v3868 = vld [vmem:[%s278 + $0x8] sm:$0xff]
      %v3869 = vld [vmem:[%s278 + $0x10] sm:$0xff]
      %v3870 = vld [vmem:[%s278 + $0x18] sm:$0xff]
      %v3871 = vld [vmem:[%s278 + $0x20] sm:$0xff]
      %v3872 = vld [vmem:[%s278 + $0x28] sm:$0xff]
      %v3873 = vld [vmem:[%s278 + $0x30] sm:$0xff]
      %v3874 = vld [vmem:[%s278 + $0x38] sm:$0xff]
      %v3875 = vmax.f32 %v3867, %v3859
      %v3876 = vmax.f32 %v3868, %v3860
      %v3877 = vmax.f32 %v3869, %v3861
      %v3878 = vmax.f32 %v3870, %v3862
      %v3879 = vmax.f32 %v3871, %v3863
      %v3880 = vmax.f32 %v3872, %v3864
      %v3881 = vmax.f32 %v3873, %v3865
      %v3882 = vmax.f32 %v3874, %v3866
      %3883 = vst [vmem:[%s278] sm:$0xff] %v3875
      %3884 = vst [vmem:[%s278 + $0x8] sm:$0xff] %v3876
      %3885 = vst [vmem:[%s278 + $0x10] sm:$0xff] %v3877
      %3886 = vst [vmem:[%s278 + $0x18] sm:$0xff] %v3878
      %3887 = vst [vmem:[%s278 + $0x20] sm:$0xff] %v3879
      %3888 = vst [vmem:[%s278 + $0x28] sm:$0xff] %v3880
      %3889 = vst [vmem:[%s278 + $0x30] sm:$0xff] %v3881
      %3890 = vst [vmem:[%s278 + $0x38] sm:$0xff] %v3882
      %s3891 = sadd.s32 %s21, %s23
      %s3892 = smul.u32 32, %s3891
      %p3893 = scmp.lt.s32.totalorder %s22, 1
      %s3894 = scalar_select %p3893, %s22, 1
      %p3895 = scmp.lt.s32.totalorder %s3892, 31
      %s3896 = scalar_select %p3895, %s3892, 31
      %s3897 = smul.addr %s3894, 32
      %s3898 = sadd.s32 %s3896, %s3897
      %s3899 = smul.addr %s3898, 4
      %s3900 = scalar_lea.vmem %s3, %s3899
      %p3901 = scmp.lt.s32.totalorder %s21, 0
      %s3902 = scalar_select %p3901, %s21, 0
      %p3903 = scmp.lt.s32.totalorder %s22, 1
      %s3904 = scalar_select %p3903, %s22, 1
      %s3905 = smul.addr %s3904, 8
      %s3906 = smul.addr %s3902, 16
      %s3907 = sadd.s32 %s3905, %s3906
      %s3908 = smul.addr %s3907, 8
      %s3909 = scalar_lea.vmem %s4, %s3908
      // Predicated region
      $region37: #{isonet_forward.1} parent=31 // pred_check
        %p3910 = pneg %p129
      $region38: #{isonet_forward.1} parent=31 // pred_check_branch
        %3912 = sbr.rel (%p3910) target = $region40
      $region39: #{isonet_forward.1} parent=31 // pred_region
        %s3913 = sadd.s32 %s21, %s23
        %s3914 = smul.u32 32, %s3913
      $region40: #{isonet_forward.1} parent=31 // pred_fallthru
        _
      // Predicated region
      $region41: #{isonet_forward.1} parent=31 // pred_check
        %p3915 = pneg %p157
      $region42: #{isonet_forward.1} parent=31 // pred_check_branch
        %3917 = sbr.rel (%p3915) target = $region44
      $region43: #{isonet_forward.1} parent=31 // pred_region
        _
      $region44: #{isonet_forward.1} parent=31 // pred_fallthru
        _
    $region32: #{isonet_forward.1} parent=5 // pred_fallthru
      _
    %p3918 = scmp.le.s32.totalorder 2, %s11
    // Predicated region
    $region45: #{isonet_forward.1} parent=5 // pred_check
      %p3919 = pneg %p3918
    $region46: #{isonet_forward.1} parent=5 // pred_check_branch
      %3921 = sbr.rel (%p3919) target = $region48
    $region47: #{isonet_forward.1} parent=5 // pred_region
      %s3922 = ssub.s32 %s11, 2
      // Predicated region
      $region49: #{isonet_forward.1} parent=47 // pred_check
        %p3923 = pneg %p135
      $region50: #{isonet_forward.1} parent=47 // pred_check_branch
        %3925 = sbr.rel (%p3923) target = $region52
      $region51: #{isonet_forward.1} parent=47 // pred_region
        %s3926 = sadd.s32 %s24, %s26
        %s3927 = smul.u32 32, %s3926
        %p3928 = scmp.lt.s32.totalorder %s25, 1
        %s3929 = scalar_select %p3928, %s25, 1
        %p3930 = scmp.lt.s32.totalorder %s3927, 31
        %s3931 = scalar_select %p3930, %s3927, 31
        %s3932 = smul.addr %s3929, 32
        %s3933 = sadd.s32 %s3931, %s3932
        %s3934 = smul.addr %s3933, 4
        %s3935 = scalar_lea.vmem %s3, %s3934
      $region52: #{isonet_forward.1} parent=47 // pred_fallthru
        _
      // Predicated region
      $region53: #{isonet_forward.1} parent=47 // pred_check
        %p3936 = pneg %p163
      $region54: #{isonet_forward.1} parent=47 // pred_check_branch
        %3938 = sbr.rel (%p3936) target = $region56
      $region55: #{isonet_forward.1} parent=47 // pred_region
        %p3939 = scmp.lt.s32.totalorder %s24, 0
        %s3940 = scalar_select %p3939, %s24, 0
        %p3941 = scmp.lt.s32.totalorder %s25, 1
        %s3942 = scalar_select %p3941, %s25, 1
        %s3943 = smul.addr %s3942, 8
        %s3944 = smul.addr %s3940, 16
        %s3945 = sadd.s32 %s3943, %s3944
        %s3946 = smul.addr %s3945, 8
        %s3947 = scalar_lea.vmem %s4, %s3946
      $region56: #{isonet_forward.1} parent=47 // pred_fallthru
        _
    $region48: #{isonet_forward.1} parent=5 // pred_fallthru
      _
  $region6: #{isonet_forward.1} parent=0 // loop_footer
    %s15 = sadd.s32 1, %s11
  $region7: #{isonet_forward.1} parent=0 // loop_footer_branch
    %10 = sbr.rel target = $region3
  $region8: #{isonet_forward.1} parent=0 // loop_exit
    _

</llo_original>
